<compile_context>
chip_gen: v6e
topology: v6e:2x2x1
jax: 0.10.0
libtpu: 0.0.40
codegen_flags: <defaults>
</compile_context>

<pallas_src>
import functools

import jax
import jax.numpy as jnp
from jax.experimental import pallas as pl
from jax.experimental.pallas import tpu as pltpu


def _attention_kernel(x_ref, wqkv_ref, wo_ref, bo_ref, o_ref, *, heads, dim_head):
    # x_ref:    (1, c, n)      tokens (channels x pixels) for this batch element
    # wqkv_ref: (3*h*d, c)     fused QKV 1x1-conv weight (q rows pre-scaled)
    # wo_ref:   (c, h*d)       output 1x1-conv weight
    # bo_ref:   (c, 1)         output 1x1-conv bias
    # o_ref:    (1, c, n)      output tokens
    n = x_ref.shape[2]
    hd = heads * dim_head

    x_bf = x_ref[0].astype(jnp.bfloat16)                    # (c, n)
    wqkv = wqkv_ref[...].astype(jnp.bfloat16)                # (3*h*d, c)

    # One wide projection: (3*h*d, c) @ (c, n) -> (3*h*d, n), f32 accumulation.
    qkv = jnp.dot(wqkv, x_bf, preferred_element_type=jnp.float32)
    q = qkv[0 * hd:1 * hd].reshape(heads, dim_head, n)       # scale folded into weight
    k = qkv[1 * hd:2 * hd].reshape(heads, dim_head, n)
    v = qkv[2 * hd:3 * hd].reshape(heads, dim_head, n)

    # sim[h, i, j] = sum_d q[h, d, i] * k[h, d, j]
    sim = jnp.einsum('hdi,hdj->hij',
                     q.astype(jnp.bfloat16), k.astype(jnp.bfloat16),
                     preferred_element_type=jnp.float32)     # (h, n, n)

    # Softmax (f32 VPU/EUP math; max-subtraction matches the reference).
    sim = sim - jnp.max(sim, axis=-1, keepdims=True)
    p = jnp.exp(sim)
    attn = p * pl.reciprocal(jnp.sum(p, axis=-1, keepdims=True), approx=True)

    # out[h, d, i] = sum_j v[h, d, j] * attn[h, i, j]   (operand order avoids a transpose)
    out = jnp.einsum('hdj,hij->hdi',
                     v.astype(jnp.bfloat16), attn.astype(jnp.bfloat16),
                     preferred_element_type=jnp.float32)     # (h, d, n)
    out = out.reshape(hd, n)

    # Output 1x1 conv: (c, h*d) @ (h*d, n) + bias -> (c, n)
    y = jnp.dot(wo_ref[...].astype(jnp.bfloat16), out.astype(jnp.bfloat16),
                preferred_element_type=jnp.float32)
    o_ref[0] = (y + bo_ref[...]).astype(o_ref.dtype)

    # TODO(synk): for production n = H*W >= 2048, add an "arbitrary" kv-tile grid
    # axis with online softmax (flash pattern) so the (n, n) sim matrix never
    # materializes -- required to fit v7x's 64 MiB VMEM.


def prepare_params(w_qkv, w_out, b_out, *, heads, dim_head):
    """One-time parameter prep (do at weight-conversion time, not per call).

    w_qkv: (3*heads*dim_head, dim)  == to_qkv.weight[:, :, 0, 0]
    w_out: (dim, heads*dim_head)    == to_out.weight[:, :, 0, 0]
    b_out: (dim,)                   == to_out.bias
    """
    hd = heads * dim_head
    scale = dim_head ** (-0.5)
    wqkv_fused = w_qkv.at[:hd, :].multiply(scale)   # fold softmax scale into q rows
    bo = b_out.reshape(-1, 1)
    return wqkv_fused, w_out, bo


def attention_pallas(x_nchw, wqkv_fused, wo, bo, *, heads, dim_head):
    """x_nchw: (b, c, H, W).  Returns (b, c, H, W), matching the PyTorch module."""
    b, c, H, W = x_nchw.shape
    n = H * W
    hd = heads * dim_head
    x_tok = x_nchw.reshape(b, c, n)                 # free reshape; no transpose

    kernel = functools.partial(_attention_kernel, heads=heads, dim_head=dim_head)

    out_tok = pl.pallas_call(
        kernel,
        out_shape=jax.ShapeDtypeStruct((b, c, n), x_tok.dtype),
        grid_spec=pltpu.PrefetchScalarGridSpec(
            num_scalar_prefetch=0,
            grid=(b,),
            in_specs=[
                pl.BlockSpec((1, c, n), lambda bi: (bi, 0, 0)),   # x tokens
                pl.BlockSpec((3 * hd, c), lambda bi: (0, 0)),     # fused Wqkv (VMEM-resident)
                pl.BlockSpec((c, hd), lambda bi: (0, 0)),         # Wout     (VMEM-resident)
                pl.BlockSpec((c, 1), lambda bi: (0, 0)),          # bias
            ],
            out_specs=pl.BlockSpec((1, c, n), lambda bi: (bi, 0, 0)),
        ),
        compiler_params=pltpu.CompilerParams(
            dimension_semantics=("parallel",)),
    )(x_tok, wqkv_fused, wo, bo)

    return out_tok.reshape(b, c, H, W)


def attention_reference(x_nchw, w_qkv, w_out, b_out, *, heads, dim_head, scale):
    """Pure-JAX (f32) reference mirroring the PyTorch forward pass exactly."""
    b, c, H, W = x_nchw.shape
    n = H * W
    hd = heads * dim_head
    x = x_nchw.reshape(b, c, n)                                     # (b, c, n)
    qkv = jnp.einsum('oc,bcn->bon', w_qkv, x)                       # (b, 3*h*d, n)
    q = qkv[:, 0 * hd:1 * hd].reshape(b, heads, dim_head, n) * scale
    k = qkv[:, 1 * hd:2 * hd].reshape(b, heads, dim_head, n)
    v = qkv[:, 2 * hd:3 * hd].reshape(b, heads, dim_head, n)
    sim = jnp.einsum('bhdi,bhdj->bhij', q, k)
    sim = sim - jnp.max(sim, axis=-1, keepdims=True)
    attn = jax.nn.softmax(sim, axis=-1)
    out = jnp.einsum('bhij,bhdj->bhdi', attn, v)                    # (b, h, d, n)
    out = out.reshape(b, hd, n)
    y = jnp.einsum('ch,bhn->bcn', w_out, out) + b_out[None, :, None]
    return y.reshape(b, c, H, W)


if __name__ == "__main__":
    # Module hyper-parameters (consistent with the PyTorch __init__).
    dim = 16          # input channels
    heads = 4
    dim_head = 32
    hidden = heads * dim_head
    scale = dim_head ** (-0.5)

    b, H, W = 2, 16, 16   # n = H*W = 256 -> lane-dense (multiple of 128)

    key = jax.random.PRNGKey(0)
    kx, kw, ko, kb = jax.random.split(key, 4)

    x = jax.random.normal(kx, (b, dim, H, W), dtype=jnp.float32)

    # PyTorch-style parameters (1x1 convs as channel matmuls):
    #   to_qkv.weight -> (3*hidden, dim); to_out.weight -> (dim, hidden); to_out.bias -> (dim,)
    w_qkv = jax.random.normal(kw, (3 * hidden, dim), dtype=jnp.float32) * 0.1
    w_out = jax.random.normal(ko, (dim, hidden), dtype=jnp.float32) * 0.1
    b_out = jax.random.normal(kb, (dim,), dtype=jnp.float32) * 0.1

    # One-time prep: fuse heads, fold softmax scale into q rows.
    wqkv_fused, wo, bo = prepare_params(w_qkv, w_out, b_out,
                                        heads=heads, dim_head=dim_head)

    y = attention_pallas(x, wqkv_fused, wo, bo, heads=heads, dim_head=dim_head)
    y = jax.block_until_ready(y)

    y_ref = attention_reference(x, w_qkv, w_out, b_out,
                                heads=heads, dim_head=dim_head, scale=scale)

    assert y.shape == (b, dim, H, W)
    # bf16 MXU inputs (f32 accumulation) -> tolerance relaxed vs pure-f32 reference.
    assert jnp.allclose(y, y_ref, atol=2e-2, rtol=2e-2), "mismatch vs reference"

    print("KERNEL_OK")
</pallas_src>

<mosaic_0001>
module attributes {stable_mosaic.version = 11 : i64} {
  func.func @_attention_kernel(%arg0: i32, %arg1: memref<1x16x256xf32, #tpu.memory_space<vmem>>, %arg2: memref<384x16xf32, #tpu.memory_space<vmem>>, %arg3: memref<16x128xf32, #tpu.memory_space<vmem>>, %arg4: memref<16x1xf32, #tpu.memory_space<vmem>>, %arg5: memref<1x16x256xf32, #tpu.memory_space<vmem>>) attributes {dimension_semantics = [#tpu.dimension_semantics<parallel>], iteration_bounds = array<i64: 2>, scalar_prefetch = 0 : i64, scratch_operands = 0 : i64, tpu.core_type = #tpu.core_type<tc>, window_params = [{transform_indices = @transform_0, window_bounds = array<i64: 1, 16, 256>}, {pipeline_mode = #tpu.pipeline_mode<synchronous>, transform_indices = @transform_1, window_bounds = array<i64: 384, 16>}, {pipeline_mode = #tpu.pipeline_mode<synchronous>, transform_indices = @transform_2, window_bounds = array<i64: 16, 128>}, {pipeline_mode = #tpu.pipeline_mode<synchronous>, transform_indices = @transform_3, window_bounds = array<i64: 16, 1>}, {transform_indices = @transform_4, window_bounds = array<i64: 1, 16, 256>}]} {
    %c0 = arith.constant 0 : index
    %c0_0 = arith.constant 0 : index
    %c0_1 = arith.constant 0 : index
    %0 = vector.load %arg1[%c0, %c0_0, %c0_1] : memref<1x16x256xf32, #tpu.memory_space<vmem>>, vector<1x16x256xf32>
    %1 = vector.shape_cast %0 : vector<1x16x256xf32> to vector<16x256xf32>
    %2 = arith.truncf %1 : vector<16x256xf32> to vector<16x256xbf16>
    %c0_2 = arith.constant 0 : index
    %c0_3 = arith.constant 0 : index
    %3 = vector.load %arg2[%c0_2, %c0_3] : memref<384x16xf32, #tpu.memory_space<vmem>>, vector<384x16xf32>
    %4 = arith.truncf %3 : vector<384x16xf32> to vector<384x16xbf16>
    %cst = arith.constant dense<0.000000e+00> : vector<384x256xf32>
    %5 = tpu.matmul %4, %2, %cst {dimension_numbers = #tpu.dot_dimension_numbers<[1], [0], [0], [1], [0, 0, 1, 1], [], []>} : vector<384x16xbf16>, vector<16x256xbf16>, vector<384x256xf32> -> vector<384x256xf32>
    %6 = vector.extract_strided_slice %5 {offsets = [0, 0], sizes = [128, 256], strides = [1, 1]} : vector<384x256xf32> to vector<128x256xf32>
    %7 = vector.shape_cast %6 : vector<128x256xf32> to vector<4x32x256xf32>
    %8 = vector.extract_strided_slice %5 {offsets = [128, 0], sizes = [128, 256], strides = [1, 1]} : vector<384x256xf32> to vector<128x256xf32>
    %9 = vector.shape_cast %8 : vector<128x256xf32> to vector<4x32x256xf32>
    %10 = vector.extract_strided_slice %5 {offsets = [256, 0], sizes = [128, 256], strides = [1, 1]} : vector<384x256xf32> to vector<128x256xf32>
    %11 = vector.shape_cast %10 : vector<128x256xf32> to vector<4x32x256xf32>
    %12 = arith.truncf %7 : vector<4x32x256xf32> to vector<4x32x256xbf16>
    %13 = arith.truncf %9 : vector<4x32x256xf32> to vector<4x32x256xbf16>
    "tpu.trace_start"() <{level = 10 : i32, message = "hdi,hdj->hij"}> : () -> ()
    %cst_4 = arith.constant dense<0.000000e+00> : vector<4x256x256xf32>
    %14 = tpu.matmul %12, %13, %cst_4 {dimension_numbers = #tpu.dot_dimension_numbers<[1], [1], [2], [2], [0, 0, 0, 2, 1, 2], [0], [0]>} : vector<4x32x256xbf16>, vector<4x32x256xbf16>, vector<4x256x256xf32> -> vector<4x256x256xf32>
    "tpu.trace_stop"() : () -> ()
    %cst_5 = arith.constant dense<0xFF800000> : vector<4x256xf32>
    %15 = vector.multi_reduction <maximumf>, %14, %cst_5 [2] : vector<4x256x256xf32> to vector<4x256xf32>
    %16 = vector.shape_cast %15 : vector<4x256xf32> to vector<4x256x1xf32>
    %17 = vector.broadcast %16 : vector<4x256x1xf32> to vector<4x256x256xf32>
    %18 = arith.subf %14, %17 : vector<4x256x256xf32>
    %19 = math.exp %18 : vector<4x256x256xf32>
    %cst_6 = arith.constant dense<0.000000e+00> : vector<4x256xf32>
    %20 = vector.multi_reduction <add>, %19, %cst_6 [2] : vector<4x256x256xf32> to vector<4x256xf32>
    %21 = vector.shape_cast %20 : vector<4x256xf32> to vector<4x256x1xf32>
    %22 = tpu.reciprocal %21 {approx = true} : vector<4x256x1xf32> -> vector<4x256x1xf32>
    %23 = vector.broadcast %22 : vector<4x256x1xf32> to vector<4x256x256xf32>
    %24 = arith.mulf %19, %23 : vector<4x256x256xf32>
    %25 = arith.truncf %11 : vector<4x32x256xf32> to vector<4x32x256xbf16>
    %26 = arith.truncf %24 : vector<4x256x256xf32> to vector<4x256x256xbf16>
    "tpu.trace_start"() <{level = 10 : i32, message = "hdj,hij->hdi"}> : () -> ()
    %cst_7 = arith.constant dense<0.000000e+00> : vector<4x32x256xf32>
    %27 = tpu.matmul %25, %26, %cst_7 {dimension_numbers = #tpu.dot_dimension_numbers<[2], [2], [1], [1], [0, 0, 0, 1, 1, 1], [0], [0]>} : vector<4x32x256xbf16>, vector<4x256x256xbf16>, vector<4x32x256xf32> -> vector<4x32x256xf32>
    "tpu.trace_stop"() : () -> ()
    %28 = vector.shape_cast %27 : vector<4x32x256xf32> to vector<128x256xf32>
    %c0_8 = arith.constant 0 : index
    %c0_9 = arith.constant 0 : index
    %29 = vector.load %arg3[%c0_8, %c0_9] : memref<16x128xf32, #tpu.memory_space<vmem>>, vector<16x128xf32>
    %30 = arith.truncf %29 : vector<16x128xf32> to vector<16x128xbf16>
    %31 = arith.truncf %28 : vector<128x256xf32> to vector<128x256xbf16>
    %cst_10 = arith.constant dense<0.000000e+00> : vector<16x256xf32>
    %32 = tpu.matmul %30, %31, %cst_10 {dimension_numbers = #tpu.dot_dimension_numbers<[1], [0], [0], [1], [0, 0, 1, 1], [], []>} : vector<16x128xbf16>, vector<128x256xbf16>, vector<16x256xf32> -> vector<16x256xf32>
    %c0_11 = arith.constant 0 : index
    %c0_12 = arith.constant 0 : index
    %33 = vector.load %arg4[%c0_11, %c0_12] : memref<16x1xf32, #tpu.memory_space<vmem>>, vector<16x1xf32>
    %34 = vector.broadcast %33 : vector<16x1xf32> to vector<16x256xf32>
    %35 = arith.addf %32, %34 : vector<16x256xf32>
    %c0_13 = arith.constant 0 : index
    %c0_14 = arith.constant 0 : index
    %c0_15 = arith.constant 0 : index
    %36 = vector.load %arg5[%c0_13, %c0_14, %c0_15] : memref<1x16x256xf32, #tpu.memory_space<vmem>>, vector<1x16x256xf32>
    %37 = vector.shape_cast %36 : vector<1x16x256xf32> to vector<16x256xf32>
    %38 = vector.shape_cast %35 : vector<16x256xf32> to vector<1x16x256xf32>
    tpu.vector_store %arg5[%c0_13, %c0_14, %c0_15], %38 {strides = array<i32>} : memref<1x16x256xf32, #tpu.memory_space<vmem>>, vector<1x16x256xf32>,
    return
  }
  func.func @transform_0(%arg0: i32) -> (i32, i32, i32) {
    %c0_i32 = arith.constant 0 : i32
    %c0_i32_0 = arith.constant 0 : i32
    %c0_i32_1 = arith.constant 0 : i32
    return %arg0, %c0_i32, %c0_i32_0 : i32, i32, i32
  }
  func.func @transform_1(%arg0: i32) -> (i32, i32) {
    %c0_i32 = arith.constant 0 : i32
    %c0_i32_0 = arith.constant 0 : i32
    %c0_i32_1 = arith.constant 0 : i32
    return %c0_i32, %c0_i32_0 : i32, i32
  }
  func.func @transform_2(%arg0: i32) -> (i32, i32) {
    %c0_i32 = arith.constant 0 : i32
    %c0_i32_0 = arith.constant 0 : i32
    %c0_i32_1 = arith.constant 0 : i32
    return %c0_i32, %c0_i32_0 : i32, i32
  }
  func.func @transform_3(%arg0: i32) -> (i32, i32) {
    %c0_i32 = arith.constant 0 : i32
    %c0_i32_0 = arith.constant 0 : i32
    %c0_i32_1 = arith.constant 0 : i32
    return %c0_i32, %c0_i32_0 : i32, i32
  }
  func.func @transform_4(%arg0: i32) -> (i32, i32, i32) {
    %c0_i32 = arith.constant 0 : i32
    %c0_i32_0 = arith.constant 0 : i32
    %c0_i32_1 = arith.constant 0 : i32
    return %arg0, %c0_i32, %c0_i32_0 : i32, i32, i32
  }
}

</mosaic_0001>

<llo_original>
// kernel: tpu_custom_call.1
$region0: #{tpu_custom_call.1}
  #allocation0 [shape = 'u32[]', space=smem, size = 0x4, offset = 0x4, fixed_abs, tag = 'smem constant byte address 0x4 - core index']
  #allocation1 [shape = 'u32[144,128]{1,0:T(1,128)}', space=vmem, size = 0x12000, scoped, tag = 'internal scratch']
  %s0 = inlined_call_operand.vmem [shape: f32[2,16,256], index: 0, kind: input, shape index: {}]
  %s1 = inlined_call_operand.vmem [shape: f32[384,16], index: 1, kind: input, shape index: {}]
  %s2 = inlined_call_operand.vmem [shape: f32[16,128], index: 2, kind: input, shape index: {}]
  %s3 = inlined_call_operand.vmem [shape: f32[16,1], index: 3, kind: input, shape index: {}]
  %s4 = inlined_call_operand.hbm [shape: f32[2,16,256], index: 4, kind: output, shape index: {}]
  %s5 = sld [smem:[#allocation0]]
  $region49: #{tpu_custom_call.1} parent=0
    _
  %s7 = ssub.s32 1, %s5
  %s8 = scalar_select 0, %s7, %s5
  $region1: #{tpu_custom_call.1} parent=0
    #allocation2 [shape = 'u8[32768]{0}', space=vmem, size = 0x8000, scoped, tag = 'output window, operand 0']
    #allocation3 [shape = 's32[2]{0}', space=sflag, size = 0x8, scoped, tag = 'scoped memory for tpu_custom_call.1']
    %9 = vsyncpa [#allocation3], 0
    %s10 = scalar_lea.sflag [#allocation3], 1
    %11 = vsyncpa %s10, 0
    loop: start=0, step=1, limit=4
    $region2: #{tpu_custom_call.1} parent=1 // loop_pre_header
      _
    $region3: #{tpu_custom_call.1} parent=1 // loop_header
      %s13 = sphi 0, %s17
      %p14 = scmp.ge.s32.totalorder %s13, 4
      %s23 = sphi 0, %s25
      %s26 = sphi 0, %s23
      %s27 = sphi 0, %s26
      %s43 = sphi 0, %s27
      %s47 = sphi 0, %s47
      %s49 = sphi 0, %s47
      %s50 = sphi 0, %s49
      %s64 = sphi 0, %s50
      %s68 = sphi 0, %s68
      %s70 = sphi 0, %s68
      %s71 = sphi 0, %s70
      %s85 = sphi 0, %s71
      %s89 = sphi 0, %s89
      %s91 = sphi 0, %s89
      %s92 = sphi 0, %s91
      %s106 = sphi 0, %s92
      %s112 = sphi 0, %s114
      %s115 = sphi 0, %s112
      %s116 = sphi 0, %s115
      %s132 = sphi 0, %s116
    $region4: #{tpu_custom_call.1} parent=1 // loop_header_branch
      %16 = sbr.rel (%p14) target = $region8
    $region5: #{tpu_custom_call.1} parent=1 // loop_body
      %s18 = ssub.s32 %s13, 1
      %s19 = ssub.s32 %s13, 2
      %s20 = sadd.s32 %s13, 1
      %s21 = ssub.s32 %s13, %s20
      %p22 = scmp.eq.s32.totalorder %s21, 0
      %s24 = sadd.s32 %s23, 1
      %s25 = scalar_select %p22, %s23, %s24
      %p28 = pneg %p22
      %p29 = scmp.eq.s32.totalorder %s13, 1
      %p30 = por %p28, %p29
      %p31 = scmp.ne.s32.totalorder %s23, %s26
      %p32 = scmp.eq.s32.totalorder %s13, 0
      %p33 = por %p31, %p32
      %p34 = scmp.ne.s32.totalorder %s23, %s26
      %p35 = scmp.eq.s32.totalorder %s18, 1
      %p36 = por %p34, %p35
      %p37 = scmp.ne.s32.totalorder %s26, %s27
      %p38 = scmp.eq.s32.totalorder %s18, 0
      %p39 = por %p37, %p38
      %p40 = scmp.ne.s32.totalorder %s26, %s27
      %p41 = scmp.eq.s32.totalorder %s19, 1
      %p42 = por %p40, %p41
      %p44 = scmp.ne.s32.totalorder %s27, %s43
      %p45 = scmp.eq.s32.totalorder %s19, 0
      %p46 = por %p44, %p45
      %s48 = sadd.s32 %s47, 1
      %p51 = scmp.eq.s32.totalorder %s13, 1
      %p52 = scmp.ne.s32.totalorder %s47, %s49
      %p53 = scmp.eq.s32.totalorder %s13, 0
      %p54 = por %p52, %p53
      %p55 = scmp.ne.s32.totalorder %s47, %s49
      %p56 = scmp.eq.s32.totalorder %s18, 1
      %p57 = por %p55, %p56
      %p58 = scmp.ne.s32.totalorder %s49, %s50
      %p59 = scmp.eq.s32.totalorder %s18, 0
      %p60 = por %p58, %p59
      %p61 = scmp.ne.s32.totalorder %s49, %s50
      %p62 = scmp.eq.s32.totalorder %s19, 1
      %p63 = por %p61, %p62
      %p65 = scmp.ne.s32.totalorder %s50, %s64
      %p66 = scmp.eq.s32.totalorder %s19, 0
      %p67 = por %p65, %p66
      %s69 = sadd.s32 %s68, 1
      %p72 = scmp.eq.s32.totalorder %s13, 1
      %p73 = scmp.ne.s32.totalorder %s68, %s70
      %p74 = scmp.eq.s32.totalorder %s13, 0
      %p75 = por %p73, %p74
      %p76 = scmp.ne.s32.totalorder %s68, %s70
      %p77 = scmp.eq.s32.totalorder %s18, 1
      %p78 = por %p76, %p77
      %p79 = scmp.ne.s32.totalorder %s70, %s71
      %p80 = scmp.eq.s32.totalorder %s18, 0
      %p81 = por %p79, %p80
      %p82 = scmp.ne.s32.totalorder %s70, %s71
      %p83 = scmp.eq.s32.totalorder %s19, 1
      %p84 = por %p82, %p83
      %p86 = scmp.ne.s32.totalorder %s71, %s85
      %p87 = scmp.eq.s32.totalorder %s19, 0
      %p88 = por %p86, %p87
      %s90 = sadd.s32 %s89, 1
      %p93 = scmp.eq.s32.totalorder %s13, 1
      %p94 = scmp.ne.s32.totalorder %s89, %s91
      %p95 = scmp.eq.s32.totalorder %s13, 0
      %p96 = por %p94, %p95
      %p97 = scmp.ne.s32.totalorder %s89, %s91
      %p98 = scmp.eq.s32.totalorder %s18, 1
      %p99 = por %p97, %p98
      %p100 = scmp.ne.s32.totalorder %s91, %s92
      %p101 = scmp.eq.s32.totalorder %s18, 0
      %p102 = por %p100, %p101
      %p103 = scmp.ne.s32.totalorder %s91, %s92
      %p104 = scmp.eq.s32.totalorder %s19, 1
      %p105 = por %p103, %p104
      %p107 = scmp.ne.s32.totalorder %s92, %s106
      %p108 = scmp.eq.s32.totalorder %s19, 0
      %p109 = por %p107, %p108
      %s110 = ssub.s32 %s13, %s20
      %p111 = scmp.eq.s32.totalorder %s110, 0
      %s113 = sadd.s32 %s112, 1
      %s114 = scalar_select %p111, %s112, %s113
      %p117 = pneg %p111
      %p118 = scmp.eq.s32.totalorder %s13, 1
      %p119 = por %p117, %p118
      %p120 = scmp.ne.s32.totalorder %s112, %s115
      %p121 = scmp.eq.s32.totalorder %s13, 0
      %p122 = por %p120, %p121
      %p123 = scmp.ne.s32.totalorder %s112, %s115
      %p124 = scmp.eq.s32.totalorder %s18, 1
      %p125 = por %p123, %p124
      %p126 = scmp.ne.s32.totalorder %s115, %s116
      %p127 = scmp.eq.s32.totalorder %s18, 0
      %p128 = por %p126, %p127
      %p129 = scmp.ne.s32.totalorder %s115, %s116
      %p130 = scmp.eq.s32.totalorder %s19, 1
      %p131 = por %p129, %p130
      %p133 = scmp.ne.s32.totalorder %s116, %s132
      %p134 = scmp.eq.s32.totalorder %s19, 0
      %p135 = por %p133, %p134
      %p136 = scmp.le.s32.totalorder 1, %s13
      %p137 = scmp.lt.s32.totalorder %s13, 3
      %p138 = pnand %p136, %p137
      %p139 = pneg %p138
      // Predicated region
      $region9: #{tpu_custom_call.1} parent=5 // pred_check
        _
      $region10: #{tpu_custom_call.1} parent=5 // pred_check_branch
        %141 = sbr.rel (%p138) target = $region12
      $region11: #{tpu_custom_call.1} parent=5 // pred_region
        %s142 = ssub.s32 %s13, 1
        // Predicated region
        $region13: #{tpu_custom_call.1} parent=11 // pred_check
          %p143 = pneg %p60
        $region14: #{tpu_custom_call.1} parent=11 // pred_check_branch
          %145 = sbr.rel (%p143) target = $region16
        $region15: #{tpu_custom_call.1} parent=11 // pred_region
          _
        $region16: #{tpu_custom_call.1} parent=11 // pred_fallthru
          _
        // Predicated region
        $region17: #{tpu_custom_call.1} parent=11 // pred_check
          %p146 = pneg %p81
        $region18: #{tpu_custom_call.1} parent=11 // pred_check_branch
          %148 = sbr.rel (%p146) target = $region20
        $region19: #{tpu_custom_call.1} parent=11 // pred_region
          _
        $region20: #{tpu_custom_call.1} parent=11 // pred_fallthru
          _
        // Predicated region
        $region21: #{tpu_custom_call.1} parent=11 // pred_check
          %p149 = pneg %p102
        $region22: #{tpu_custom_call.1} parent=11 // pred_check_branch
          %151 = sbr.rel (%p149) target = $region24
        $region23: #{tpu_custom_call.1} parent=11 // pred_region
          _
        $region24: #{tpu_custom_call.1} parent=11 // pred_fallthru
          _
      $region12: #{tpu_custom_call.1} parent=5 // pred_fallthru
        _
      %p152 = scmp.lt.s32.totalorder %s13, 2
      // Predicated region
      $region25: #{tpu_custom_call.1} parent=5 // pred_check
        %p153 = pneg %p152
      $region26: #{tpu_custom_call.1} parent=5 // pred_check_branch
        %155 = sbr.rel (%p153) target = $region28
      $region27: #{tpu_custom_call.1} parent=5 // pred_region
        // Predicated region
        $region29: #{tpu_custom_call.1} parent=27 // pred_check
          %p156 = pneg %p33
        $region30: #{tpu_custom_call.1} parent=27 // pred_check_branch
          %158 = sbr.rel (%p156) target = $region32
        $region31: #{tpu_custom_call.1} parent=27 // pred_region
          %p159 = scmp.lt.s32.totalorder %s13, 1
          %s160 = scalar_select %p159, %s13, 1
          %s161 = smul.addr %s160, 4
          %s162 = smul.addr %s161, 8
          %s163 = scalar_lea.vmem %s0, %s162
        $region32: #{tpu_custom_call.1} parent=27 // pred_fallthru
          _
      $region28: #{tpu_custom_call.1} parent=5 // pred_fallthru
        _
      %p164 = scmp.le.s32.totalorder 1, %s13
      %p165 = scmp.lt.s32.totalorder %s13, 3
      %p166 = pnand %p164, %p165
      %p167 = pneg %p166
      // Predicated region
      $region33: #{tpu_custom_call.1} parent=5 // pred_check
        _
      $region34: #{tpu_custom_call.1} parent=5 // pred_check_branch
        %169 = sbr.rel (%p166) target = $region36
      $region35: #{tpu_custom_call.1} parent=5 // pred_region
        %s170 = ssub.s32 %s13, 1
        %p171 = scmp.lt.s32.totalorder %s18, 1
        %s172 = scalar_select %p171, %s18, 1
        %s173 = smul.addr %s172, 4
        %s174 = smul.addr %s173, 8
        %s175 = scalar_lea.vmem %s0, %s174
        %p176 = pneg %p39
        %p177 = pneg %p36
        %p178 = pneg %p60
        %p179 = pneg %p57
        %p180 = pneg %p81
        %p181 = pneg %p78
        %p182 = pneg %p102
        %p183 = pneg %p99
        %p184 = pneg %p128
        %p185 = pneg %p125
        %s186 = sand.u32 %s115, 1
        %s187 = scalar_lea.sflag [#allocation3], %s186
        %s188 = sand.u32 %s115, 1
        %s189 = smul.addr %s188, 32
        %s190 = scalar_lea.vmem [#allocation2], %s189
        %p191 = scmp.lt.s32.totalorder %s18, 1
        %s192 = scalar_select %p191, %s18, 1
        %s193 = smul.addr %s192, 4
        %s194 = smul.addr %s193, 8
        %s195 = scalar_lea.vmem %s0, %s194
        %v197 = vld [vmem:[%s195] sm:$0xff]
        %v198 = vld [vmem:[%s195 + $0x8] sm:$0xff]
        %v199 = vld [vmem:[%s195 + $0x10] sm:$0xff]
        %v200 = vld [vmem:[%s195 + $0x18] sm:$0xff]
        %v201 = vpack.c.bf16 %v199, %v197
        %v202 = vpack.c.bf16 %v200, %v198
        %v203 = vld [vmem:[%s1] sm:$0xff]
        %v204 = vld [vmem:[%s1 + $0x8] sm:$0xff]
        %v205 = vld [vmem:[%s1 + $0x10] sm:$0xff]
        %v206 = vld [vmem:[%s1 + $0x18] sm:$0xff]
        %v207 = vld [vmem:[%s1 + $0x20] sm:$0xff]
        %v208 = vld [vmem:[%s1 + $0x28] sm:$0xff]
        %v209 = vld [vmem:[%s1 + $0x30] sm:$0xff]
        %v210 = vld [vmem:[%s1 + $0x38] sm:$0xff]
        %v211 = vld [vmem:[%s1 + $0x40] sm:$0xff]
        %v212 = vld [vmem:[%s1 + $0x48] sm:$0xff]
        %v213 = vld [vmem:[%s1 + $0x50] sm:$0xff]
        %v214 = vld [vmem:[%s1 + $0x58] sm:$0xff]
        %v215 = vld [vmem:[%s1 + $0x60] sm:$0xff]
        %v216 = vld [vmem:[%s1 + $0x68] sm:$0xff]
        %v217 = vld [vmem:[%s1 + $0x70] sm:$0xff]
        %v218 = vld [vmem:[%s1 + $0x78] sm:$0xff]
        %v219 = vld [vmem:[%s1 + $0x80] sm:$0xff]
        %v220 = vld [vmem:[%s1 + $0x88] sm:$0xff]
        %v221 = vld [vmem:[%s1 + $0x90] sm:$0xff]
        %v222 = vld [vmem:[%s1 + $0x98] sm:$0xff]
        %v223 = vld [vmem:[%s1 + $0xa0] sm:$0xff]
        %v224 = vld [vmem:[%s1 + $0xa8] sm:$0xff]
        %v225 = vld [vmem:[%s1 + $0xb0] sm:$0xff]
        %v226 = vld [vmem:[%s1 + $0xb8] sm:$0xff]
        %v227 = vld [vmem:[%s1 + $0xc0] sm:$0xff]
        %v228 = vld [vmem:[%s1 + $0xc8] sm:$0xff]
        %v229 = vld [vmem:[%s1 + $0xd0] sm:$0xff]
        %v230 = vld [vmem:[%s1 + $0xd8] sm:$0xff]
        %v231 = vld [vmem:[%s1 + $0xe0] sm:$0xff]
        %v232 = vld [vmem:[%s1 + $0xe8] sm:$0xff]
        %v233 = vld [vmem:[%s1 + $0xf0] sm:$0xff]
        %v234 = vld [vmem:[%s1 + $0xf8] sm:$0xff]
        %v235 = vld [vmem:[%s1 + $0x100] sm:$0xff]
        %v236 = vld [vmem:[%s1 + $0x108] sm:$0xff]
        %v237 = vld [vmem:[%s1 + $0x110] sm:$0xff]
        %v238 = vld [vmem:[%s1 + $0x118] sm:$0xff]
        %v239 = vld [vmem:[%s1 + $0x120] sm:$0xff]
        %v240 = vld [vmem:[%s1 + $0x128] sm:$0xff]
        %v241 = vld [vmem:[%s1 + $0x130] sm:$0xff]
        %v242 = vld [vmem:[%s1 + $0x138] sm:$0xff]
        %v243 = vld [vmem:[%s1 + $0x140] sm:$0xff]
        %v244 = vld [vmem:[%s1 + $0x148] sm:$0xff]
        %v245 = vld [vmem:[%s1 + $0x150] sm:$0xff]
        %v246 = vld [vmem:[%s1 + $0x158] sm:$0xff]
        %v247 = vld [vmem:[%s1 + $0x160] sm:$0xff]
        %v248 = vld [vmem:[%s1 + $0x168] sm:$0xff]
        %v249 = vld [vmem:[%s1 + $0x170] sm:$0xff]
        %v250 = vld [vmem:[%s1 + $0x178] sm:$0xff]
        %v251 = vpack.c.bf16 %v204, %v203
        %v252 = vpack.c.bf16 %v206, %v205
        %v253 = vpack.c.bf16 %v208, %v207
        %v254 = vpack.c.bf16 %v210, %v209
        %v255 = vpack.c.bf16 %v212, %v211
        %v256 = vpack.c.bf16 %v214, %v213
        %v257 = vpack.c.bf16 %v216, %v215
        %v258 = vpack.c.bf16 %v218, %v217
        %v259 = vpack.c.bf16 %v220, %v219
        %v260 = vpack.c.bf16 %v222, %v221
        %v261 = vpack.c.bf16 %v224, %v223
        %v262 = vpack.c.bf16 %v226, %v225
        %v263 = vpack.c.bf16 %v228, %v227
        %v264 = vpack.c.bf16 %v230, %v229
        %v265 = vpack.c.bf16 %v232, %v231
        %v266 = vpack.c.bf16 %v234, %v233
        %v267 = vpack.c.bf16 %v236, %v235
        %v268 = vpack.c.bf16 %v238, %v237
        %v269 = vpack.c.bf16 %v240, %v239
        %v270 = vpack.c.bf16 %v242, %v241
        %v271 = vpack.c.bf16 %v244, %v243
        %v272 = vpack.c.bf16 %v246, %v245
        %v273 = vpack.c.bf16 %v248, %v247
        %v274 = vpack.c.bf16 %v250, %v249
        %vm275 = vcmask 130048
        %v277 = vsel %vm275, %v251, 0
        %v280 = vsel %vm275, %v252, 0
        %v283 = vsel %vm275, %v253, 0
        %v286 = vsel %vm275, %v254, 0
        %v289 = vsel %vm275, %v255, 0
        %v292 = vsel %vm275, %v256, 0
        %v295 = vsel %vm275, %v257, 0
        %v298 = vsel %vm275, %v258, 0
        %v301 = vsel %vm275, %v259, 0
        %v304 = vsel %vm275, %v260, 0
        %v307 = vsel %vm275, %v261, 0
        %v310 = vsel %vm275, %v262, 0
        %v313 = vsel %vm275, %v263, 0
        %v316 = vsel %vm275, %v264, 0
        %v319 = vsel %vm275, %v265, 0
        %v322 = vsel %vm275, %v266, 0
        %v325 = vsel %vm275, %v267, 0
        %v328 = vsel %vm275, %v268, 0
        %v331 = vsel %vm275, %v269, 0
        %v334 = vsel %vm275, %v270, 0
        %v337 = vsel %vm275, %v271, 0
        %v340 = vsel %vm275, %v272, 0
        %v343 = vsel %vm275, %v273, 0
        %v346 = vsel %vm275, %v274, 0
        %348 = vmatprep.subr.bf16.mxu0 0
        %349 = vmatpush1.bf16.msra.mxu0 0
        %350 = vmatprep.subr.bf16.mxu0 0
        %351 = vmatpush1.bf16.msra.mxu0 0
        %352 = vmatprep.subr.bf16.mxu0 0
        %353 = vmatpush1.bf16.msra.mxu0 0
        %354 = vmatprep.subr.bf16.mxu0 0
        %355 = vmatpush1.bf16.msra.mxu0 0
        %356 = vmatprep.subr.bf16.mxu0 0
        %357 = vmatpush1.bf16.msra.mxu0 0
        %358 = vmatprep.subr.bf16.mxu0 0
        %359 = vmatpush1.bf16.msra.mxu0 0
        %360 = vmatprep.subr.bf16.mxu0 0
        %361 = vmatpush1.bf16.msra.mxu0 0
        %362 = vmatprep.subr.bf16.mxu0 %v202
        %363 = vmatpush1.bf16.msra.mxu0 %v201
        %364 = vmatprep.subr.bf16.mxu0 0
        %365 = vmatpush2.bf16.msra.mxu0 0
        %366 = vmatprep.subr.bf16.mxu0 0
        %367 = vmatpush2.bf16.msra.mxu0 0
        %368 = vmatprep.subr.bf16.mxu0 0
        %369 = vmatpush2.bf16.msra.mxu0 0
        %370 = vmatprep.subr.bf16.mxu0 0
        %371 = vmatpush2.bf16.msra.mxu0 0
        %372 = vmatprep.subr.bf16.mxu0 0
        %373 = vmatpush2.bf16.msra.mxu0 0
        %374 = vmatprep.subr.bf16.mxu0 0
        %375 = vmatpush2.bf16.msra.mxu0 0
        %376 = vmatprep.subr.bf16.mxu0 0
        %377 = vmatpush2.bf16.msra.mxu0 0
        %378 = vmatprep.subr.bf16.mxu0 0
        %379 = vmatpush2.bf16.msra.mxu0 0
        %380 = vmatprep.mubr.bf16.mxu0 0
        %381 = vmatmul.mubr.bf16.gmra.mxu0 %v277
        %v382 = vpop.f32.mrf.mxu0
        %v383 = vadd.f32 0.0, %v382
        %v384 = vpop.f32.mrf.mxu0
        %v385 = vadd.f32 0.0, %v384
        %v386 = vpop.f32.mrf.mxu0
        %v387 = vadd.f32 0.0, %v386
        %v388 = vpop.f32.mrf.mxu0
        %v389 = vadd.f32 0.0, %v388
        %390 = vmatprep.mubr.bf16.mxu0 0
        %391 = vmatmul.mubr.bf16.gmra.mxu0 %v280
        %v392 = vpop.f32.mrf.mxu0
        %v393 = vadd.f32 0.0, %v392
        %v394 = vpop.f32.mrf.mxu0
        %v395 = vadd.f32 0.0, %v394
        %v396 = vpop.f32.mrf.mxu0
        %v397 = vadd.f32 0.0, %v396
        %v398 = vpop.f32.mrf.mxu0
        %v399 = vadd.f32 0.0, %v398
        %400 = vmatprep.mubr.bf16.mxu0 0
        %401 = vmatmul.mubr.bf16.gmra.mxu0 %v283
        %v402 = vpop.f32.mrf.mxu0
        %v403 = vadd.f32 0.0, %v402
        %v404 = vpop.f32.mrf.mxu0
        %v405 = vadd.f32 0.0, %v404
        %v406 = vpop.f32.mrf.mxu0
        %v407 = vadd.f32 0.0, %v406
        %v408 = vpop.f32.mrf.mxu0
        %v409 = vadd.f32 0.0, %v408
        %410 = vmatprep.mubr.bf16.mxu0 0
        %411 = vmatmul.mubr.bf16.gmra.mxu0 %v286
        %v412 = vpop.f32.mrf.mxu0
        %v413 = vadd.f32 0.0, %v412
        %v414 = vpop.f32.mrf.mxu0
        %v415 = vadd.f32 0.0, %v414
        %v416 = vpop.f32.mrf.mxu0
        %v417 = vadd.f32 0.0, %v416
        %v418 = vpop.f32.mrf.mxu0
        %v419 = vadd.f32 0.0, %v418
        %420 = vmatprep.mubr.bf16.mxu0 0
        %421 = vmatmul.mubr.bf16.gmra.mxu0 %v289
        %v422 = vpop.f32.mrf.mxu0
        %v423 = vadd.f32 0.0, %v422
        %v424 = vpop.f32.mrf.mxu0
        %v425 = vadd.f32 0.0, %v424
        %v426 = vpop.f32.mrf.mxu0
        %v427 = vadd.f32 0.0, %v426
        %v428 = vpop.f32.mrf.mxu0
        %v429 = vadd.f32 0.0, %v428
        %430 = vmatprep.mubr.bf16.mxu0 0
        %431 = vmatmul.mubr.bf16.gmra.mxu0 %v292
        %v432 = vpop.f32.mrf.mxu0
        %v433 = vadd.f32 0.0, %v432
        %v434 = vpop.f32.mrf.mxu0
        %v435 = vadd.f32 0.0, %v434
        %v436 = vpop.f32.mrf.mxu0
        %v437 = vadd.f32 0.0, %v436
        %v438 = vpop.f32.mrf.mxu0
        %v439 = vadd.f32 0.0, %v438
        %440 = vmatprep.mubr.bf16.mxu0 0
        %441 = vmatmul.mubr.bf16.gmra.mxu0 %v295
        %v442 = vpop.f32.mrf.mxu0
        %v443 = vadd.f32 0.0, %v442
        %v444 = vpop.f32.mrf.mxu0
        %v445 = vadd.f32 0.0, %v444
        %v446 = vpop.f32.mrf.mxu0
        %v447 = vadd.f32 0.0, %v446
        %v448 = vpop.f32.mrf.mxu0
        %v449 = vadd.f32 0.0, %v448
        %450 = vmatprep.mubr.bf16.mxu0 0
        %451 = vmatmul.mubr.bf16.gmra.mxu0 %v298
        %v452 = vpop.f32.mrf.mxu0
        %v453 = vadd.f32 0.0, %v452
        %v454 = vpop.f32.mrf.mxu0
        %v455 = vadd.f32 0.0, %v454
        %v456 = vpop.f32.mrf.mxu0
        %v457 = vadd.f32 0.0, %v456
        %v458 = vpop.f32.mrf.mxu0
        %v459 = vadd.f32 0.0, %v458
        %460 = vmatprep.mubr.bf16.mxu0 0
        %461 = vmatmul.mubr.bf16.gmra.mxu0 %v301
        %v462 = vpop.f32.mrf.mxu0
        %v463 = vadd.f32 0.0, %v462
        %v464 = vpop.f32.mrf.mxu0
        %v465 = vadd.f32 0.0, %v464
        %v466 = vpop.f32.mrf.mxu0
        %v467 = vadd.f32 0.0, %v466
        %v468 = vpop.f32.mrf.mxu0
        %v469 = vadd.f32 0.0, %v468
        %470 = vmatprep.mubr.bf16.mxu0 0
        %471 = vmatmul.mubr.bf16.gmra.mxu0 %v304
        %v472 = vpop.f32.mrf.mxu0
        %v473 = vadd.f32 0.0, %v472
        %v474 = vpop.f32.mrf.mxu0
        %v475 = vadd.f32 0.0, %v474
        %v476 = vpop.f32.mrf.mxu0
        %v477 = vadd.f32 0.0, %v476
        %v478 = vpop.f32.mrf.mxu0
        %v479 = vadd.f32 0.0, %v478
        %480 = vmatprep.mubr.bf16.mxu0 0
        %481 = vmatmul.mubr.bf16.gmra.mxu0 %v307
        %v482 = vpop.f32.mrf.mxu0
        %v483 = vadd.f32 0.0, %v482
        %v484 = vpop.f32.mrf.mxu0
        %v485 = vadd.f32 0.0, %v484
        %v486 = vpop.f32.mrf.mxu0
        %v487 = vadd.f32 0.0, %v486
        %v488 = vpop.f32.mrf.mxu0
        %v489 = vadd.f32 0.0, %v488
        %490 = vmatprep.mubr.bf16.mxu0 0
        %491 = vmatmul.mubr.bf16.gmra.mxu0 %v310
        %v492 = vpop.f32.mrf.mxu0
        %v493 = vadd.f32 0.0, %v492
        %v494 = vpop.f32.mrf.mxu0
        %v495 = vadd.f32 0.0, %v494
        %v496 = vpop.f32.mrf.mxu0
        %v497 = vadd.f32 0.0, %v496
        %v498 = vpop.f32.mrf.mxu0
        %v499 = vadd.f32 0.0, %v498
        %500 = vmatprep.mubr.bf16.mxu0 0
        %501 = vmatmul.mubr.bf16.gmra.mxu0 %v313
        %v502 = vpop.f32.mrf.mxu0
        %v503 = vadd.f32 0.0, %v502
        %v504 = vpop.f32.mrf.mxu0
        %v505 = vadd.f32 0.0, %v504
        %v506 = vpop.f32.mrf.mxu0
        %v507 = vadd.f32 0.0, %v506
        %v508 = vpop.f32.mrf.mxu0
        %v509 = vadd.f32 0.0, %v508
        %510 = vmatprep.mubr.bf16.mxu0 0
        %511 = vmatmul.mubr.bf16.gmra.mxu0 %v316
        %v512 = vpop.f32.mrf.mxu0
        %v513 = vadd.f32 0.0, %v512
        %v514 = vpop.f32.mrf.mxu0
        %v515 = vadd.f32 0.0, %v514
        %v516 = vpop.f32.mrf.mxu0
        %v517 = vadd.f32 0.0, %v516
        %v518 = vpop.f32.mrf.mxu0
        %v519 = vadd.f32 0.0, %v518
        %520 = vmatprep.mubr.bf16.mxu0 0
        %521 = vmatmul.mubr.bf16.gmra.mxu0 %v319
        %v522 = vpop.f32.mrf.mxu0
        %v523 = vadd.f32 0.0, %v522
        %v524 = vpop.f32.mrf.mxu0
        %v525 = vadd.f32 0.0, %v524
        %v526 = vpop.f32.mrf.mxu0
        %v527 = vadd.f32 0.0, %v526
        %v528 = vpop.f32.mrf.mxu0
        %v529 = vadd.f32 0.0, %v528
        %530 = vmatprep.mubr.bf16.mxu0 0
        %531 = vmatmul.mubr.bf16.gmra.mxu0 %v322
        %v532 = vpop.f32.mrf.mxu0
        %v533 = vadd.f32 0.0, %v532
        %v534 = vpop.f32.mrf.mxu0
        %v535 = vadd.f32 0.0, %v534
        %v536 = vpop.f32.mrf.mxu0
        %v537 = vadd.f32 0.0, %v536
        %v538 = vpop.f32.mrf.mxu0
        %v539 = vadd.f32 0.0, %v538
        %540 = vmatprep.mubr.bf16.mxu0 0
        %541 = vmatmul.mubr.bf16.gmra.mxu0 %v325
        %v542 = vpop.f32.mrf.mxu0
        %v543 = vadd.f32 0.0, %v542
        %v544 = vpop.f32.mrf.mxu0
        %v545 = vadd.f32 0.0, %v544
        %v546 = vpop.f32.mrf.mxu0
        %v547 = vadd.f32 0.0, %v546
        %v548 = vpop.f32.mrf.mxu0
        %v549 = vadd.f32 0.0, %v548
        %550 = vmatprep.mubr.bf16.mxu0 0
        %551 = vmatmul.mubr.bf16.gmra.mxu0 %v328
        %v552 = vpop.f32.mrf.mxu0
        %v553 = vadd.f32 0.0, %v552
        %v554 = vpop.f32.mrf.mxu0
        %v555 = vadd.f32 0.0, %v554
        %v556 = vpop.f32.mrf.mxu0
        %v557 = vadd.f32 0.0, %v556
        %v558 = vpop.f32.mrf.mxu0
        %v559 = vadd.f32 0.0, %v558
        %560 = vmatprep.mubr.bf16.mxu0 0
        %561 = vmatmul.mubr.bf16.gmra.mxu0 %v331
        %v562 = vpop.f32.mrf.mxu0
        %v563 = vadd.f32 0.0, %v562
        %v564 = vpop.f32.mrf.mxu0
        %v565 = vadd.f32 0.0, %v564
        %v566 = vpop.f32.mrf.mxu0
        %v567 = vadd.f32 0.0, %v566
        %v568 = vpop.f32.mrf.mxu0
        %v569 = vadd.f32 0.0, %v568
        %570 = vmatprep.mubr.bf16.mxu0 0
        %571 = vmatmul.mubr.bf16.gmra.mxu0 %v334
        %v572 = vpop.f32.mrf.mxu0
        %v573 = vadd.f32 0.0, %v572
        %v574 = vpop.f32.mrf.mxu0
        %v575 = vadd.f32 0.0, %v574
        %v576 = vpop.f32.mrf.mxu0
        %v577 = vadd.f32 0.0, %v576
        %v578 = vpop.f32.mrf.mxu0
        %v579 = vadd.f32 0.0, %v578
        %580 = vmatprep.mubr.bf16.mxu0 0
        %581 = vmatmul.mubr.bf16.gmra.mxu0 %v337
        %v582 = vpop.f32.mrf.mxu0
        %v583 = vadd.f32 0.0, %v582
        %v584 = vpop.f32.mrf.mxu0
        %v585 = vadd.f32 0.0, %v584
        %v586 = vpop.f32.mrf.mxu0
        %v587 = vadd.f32 0.0, %v586
        %v588 = vpop.f32.mrf.mxu0
        %v589 = vadd.f32 0.0, %v588
        %590 = vmatprep.mubr.bf16.mxu0 0
        %591 = vmatmul.mubr.bf16.gmra.mxu0 %v340
        %v592 = vpop.f32.mrf.mxu0
        %v593 = vadd.f32 0.0, %v592
        %v594 = vpop.f32.mrf.mxu0
        %v595 = vadd.f32 0.0, %v594
        %v596 = vpop.f32.mrf.mxu0
        %v597 = vadd.f32 0.0, %v596
        %v598 = vpop.f32.mrf.mxu0
        %v599 = vadd.f32 0.0, %v598
        %600 = vmatprep.mubr.bf16.mxu0 0
        %601 = vmatmul.mubr.bf16.gmra.mxu0 %v343
        %v602 = vpop.f32.mrf.mxu0
        %v603 = vadd.f32 0.0, %v602
        %v604 = vpop.f32.mrf.mxu0
        %v605 = vadd.f32 0.0, %v604
        %v606 = vpop.f32.mrf.mxu0
        %v607 = vadd.f32 0.0, %v606
        %v608 = vpop.f32.mrf.mxu0
        %v609 = vadd.f32 0.0, %v608
        %610 = vmatprep.mubr.bf16.mxu0 0
        %611 = vmatmul.mubr.bf16.gmra.mxu0 %v346
        %v612 = vpop.f32.mrf.mxu0
        %v613 = vadd.f32 0.0, %v612
        %v614 = vpop.f32.mrf.mxu0
        %v615 = vadd.f32 0.0, %v614
        %v616 = vpop.f32.mrf.mxu0
        %v617 = vadd.f32 0.0, %v616
        %v618 = vpop.f32.mrf.mxu0
        %v619 = vadd.f32 0.0, %v618
        %620 = vdwg.mxu0
        %v621 = vpack.c.bf16 %v387, %v383
        %v622 = vpack.c.bf16 %v389, %v385
        %v623 = vpack.c.bf16 %v397, %v393
        %v624 = vpack.c.bf16 %v399, %v395
        %v625 = vpack.c.bf16 %v407, %v403
        %v626 = vpack.c.bf16 %v409, %v405
        %v627 = vpack.c.bf16 %v417, %v413
        %v628 = vpack.c.bf16 %v419, %v415
        %v629 = vpack.c.bf16 %v427, %v423
        %v630 = vpack.c.bf16 %v429, %v425
        %v631 = vpack.c.bf16 %v437, %v433
        %v632 = vpack.c.bf16 %v439, %v435
        %v633 = vpack.c.bf16 %v447, %v443
        %v634 = vpack.c.bf16 %v449, %v445
        %v635 = vpack.c.bf16 %v457, %v453
        %v636 = vpack.c.bf16 %v459, %v455
        %v637 = vpack.c.bf16 %v467, %v463
        %v638 = vpack.c.bf16 %v469, %v465
        %v639 = vpack.c.bf16 %v477, %v473
        %v640 = vpack.c.bf16 %v479, %v475
        %v641 = vpack.c.bf16 %v487, %v483
        %v642 = vpack.c.bf16 %v489, %v485
        %v643 = vpack.c.bf16 %v497, %v493
        %v644 = vpack.c.bf16 %v499, %v495
        %v645 = vpack.c.bf16 %v507, %v503
        %v646 = vpack.c.bf16 %v509, %v505
        %v647 = vpack.c.bf16 %v517, %v513
        %v648 = vpack.c.bf16 %v519, %v515
        %v649 = vpack.c.bf16 %v527, %v523
        %v650 = vpack.c.bf16 %v529, %v525
        %v651 = vpack.c.bf16 %v537, %v533
        %v652 = vpack.c.bf16 %v539, %v535
        %653 = vxpose.xlu0.c.b16.start [1/8] %v621, 128
        %654 = vxpose.xlu0.c.b16.cont [2/8] %v623, 128
        %655 = vxpose.xlu0.c.b16.cont [3/8] 0, 128
        %656 = vxpose.xlu0.c.b16.cont [4/8] 0, 128
        %657 = vxpose.xlu0.c.b16.cont [5/8] 0, 128
        %658 = vxpose.xlu0.c.b16.cont [6/8] 0, 128
        %659 = vxpose.xlu0.c.b16.cont [7/8] 0, 128
        %660 = vxpose.xlu0.c.b16.end [8/8] 0, 128
        %v661 = vpop.trf.xlu0
        %v662 = vpop.trf.xlu0
        %v663 = vpop.trf.xlu0
        %v664 = vpop.trf.xlu0
        %v665 = vpop.trf.xlu0
        %v666 = vpop.trf.xlu0
        %v667 = vpop.trf.xlu0
        %v668 = vpop.trf.xlu0
        %669 = vxpose.xlu0.c.b16.start [1/8] %v622, 128
        %670 = vxpose.xlu0.c.b16.cont [2/8] %v624, 128
        %671 = vxpose.xlu0.c.b16.cont [3/8] 0, 128
        %672 = vxpose.xlu0.c.b16.cont [4/8] 0, 128
        %673 = vxpose.xlu0.c.b16.cont [5/8] 0, 128
        %674 = vxpose.xlu0.c.b16.cont [6/8] 0, 128
        %675 = vxpose.xlu0.c.b16.cont [7/8] 0, 128
        %676 = vxpose.xlu0.c.b16.end [8/8] 0, 128
        %v677 = vpop.trf.xlu0
        %v678 = vpop.trf.xlu0
        %v679 = vpop.trf.xlu0
        %v680 = vpop.trf.xlu0
        %v681 = vpop.trf.xlu0
        %v682 = vpop.trf.xlu0
        %v683 = vpop.trf.xlu0
        %v684 = vpop.trf.xlu0
        %vm685 = vcmask 261120
        %v687 = vsel %vm685, %v661, 0
        %v690 = vsel %vm685, %v662, 0
        %v693 = vsel %vm685, %v663, 0
        %v696 = vsel %vm685, %v664, 0
        %v699 = vsel %vm685, %v665, 0
        %v702 = vsel %vm685, %v666, 0
        %v705 = vsel %vm685, %v667, 0
        %v708 = vsel %vm685, %v668, 0
        %v711 = vsel %vm685, %v677, 0
        %v714 = vsel %vm685, %v678, 0
        %v717 = vsel %vm685, %v679, 0
        %v720 = vsel %vm685, %v680, 0
        %v723 = vsel %vm685, %v681, 0
        %v726 = vsel %vm685, %v682, 0
        %v729 = vsel %vm685, %v683, 0
        %v732 = vsel %vm685, %v684, 0
        %734 = vmatprep.subr.bf16.mxu0 0
        %735 = vmatpush1.bf16.msra.mxu0 0
        %736 = vmatprep.subr.bf16.mxu0 0
        %737 = vmatpush1.bf16.msra.mxu0 0
        %738 = vmatprep.subr.bf16.mxu0 0
        %739 = vmatpush1.bf16.msra.mxu0 0
        %740 = vmatprep.subr.bf16.mxu0 0
        %741 = vmatpush1.bf16.msra.mxu0 0
        %742 = vmatprep.subr.bf16.mxu0 0
        %743 = vmatpush1.bf16.msra.mxu0 0
        %744 = vmatprep.subr.bf16.mxu0 0
        %745 = vmatpush1.bf16.msra.mxu0 0
        %746 = vmatprep.subr.bf16.mxu0 %v640
        %747 = vmatpush1.bf16.msra.mxu0 %v639
        %748 = vmatprep.subr.bf16.mxu0 %v638
        %749 = vmatpush1.bf16.msra.mxu0 %v637
        %750 = vmatprep.subr.bf16.mxu0 0
        %751 = vmatpush2.bf16.msra.mxu0 0
        %752 = vmatprep.subr.bf16.mxu0 0
        %753 = vmatpush2.bf16.msra.mxu0 0
        %754 = vmatprep.subr.bf16.mxu0 0
        %755 = vmatpush2.bf16.msra.mxu0 0
        %756 = vmatprep.subr.bf16.mxu0 0
        %757 = vmatpush2.bf16.msra.mxu0 0
        %758 = vmatprep.subr.bf16.mxu0 0
        %759 = vmatpush2.bf16.msra.mxu0 0
        %760 = vmatprep.subr.bf16.mxu0 0
        %761 = vmatpush2.bf16.msra.mxu0 0
        %762 = vmatprep.subr.bf16.mxu0 0
        %763 = vmatpush2.bf16.msra.mxu0 0
        %764 = vmatprep.subr.bf16.mxu0 0
        %765 = vmatpush2.bf16.msra.mxu0 0
        %766 = vmatprep.mubr.bf16.mxu0 0
        %767 = vmatmul.mubr.bf16.gmra.mxu0 %v687
        %v768 = vpop.f32.mrf.mxu0
        %v769 = vadd.f32 0.0, %v768
        %v770 = vpop.f32.mrf.mxu0
        %v771 = vadd.f32 0.0, %v770
        %v772 = vpop.f32.mrf.mxu0
        %v773 = vadd.f32 0.0, %v772
        %v774 = vpop.f32.mrf.mxu0
        %v775 = vadd.f32 0.0, %v774
        %776 = vmatprep.mubr.bf16.mxu0 0
        %777 = vmatmul.mubr.bf16.gmra.mxu0 %v690
        %v778 = vpop.f32.mrf.mxu0
        %v779 = vadd.f32 0.0, %v778
        %v780 = vpop.f32.mrf.mxu0
        %v781 = vadd.f32 0.0, %v780
        %v782 = vpop.f32.mrf.mxu0
        %v783 = vadd.f32 0.0, %v782
        %v784 = vpop.f32.mrf.mxu0
        %v785 = vadd.f32 0.0, %v784
        %786 = vmatprep.mubr.bf16.mxu0 0
        %787 = vmatmul.mubr.bf16.gmra.mxu0 %v693
        %v788 = vpop.f32.mrf.mxu0
        %v789 = vadd.f32 0.0, %v788
        %v790 = vpop.f32.mrf.mxu0
        %v791 = vadd.f32 0.0, %v790
        %v792 = vpop.f32.mrf.mxu0
        %v793 = vadd.f32 0.0, %v792
        %v794 = vpop.f32.mrf.mxu0
        %v795 = vadd.f32 0.0, %v794
        %796 = vmatprep.mubr.bf16.mxu0 0
        %797 = vmatmul.mubr.bf16.gmra.mxu0 %v696
        %v798 = vpop.f32.mrf.mxu0
        %v799 = vadd.f32 0.0, %v798
        %v800 = vpop.f32.mrf.mxu0
        %v801 = vadd.f32 0.0, %v800
        %v802 = vpop.f32.mrf.mxu0
        %v803 = vadd.f32 0.0, %v802
        %v804 = vpop.f32.mrf.mxu0
        %v805 = vadd.f32 0.0, %v804
        %806 = vmatprep.mubr.bf16.mxu0 0
        %807 = vmatmul.mubr.bf16.gmra.mxu0 %v699
        %v808 = vpop.f32.mrf.mxu0
        %v809 = vadd.f32 0.0, %v808
        %v810 = vpop.f32.mrf.mxu0
        %v811 = vadd.f32 0.0, %v810
        %v812 = vpop.f32.mrf.mxu0
        %v813 = vadd.f32 0.0, %v812
        %v814 = vpop.f32.mrf.mxu0
        %v815 = vadd.f32 0.0, %v814
        %816 = vmatprep.mubr.bf16.mxu0 0
        %817 = vmatmul.mubr.bf16.gmra.mxu0 %v702
        %v818 = vpop.f32.mrf.mxu0
        %v819 = vadd.f32 0.0, %v818
        %v820 = vpop.f32.mrf.mxu0
        %v821 = vadd.f32 0.0, %v820
        %v822 = vpop.f32.mrf.mxu0
        %v823 = vadd.f32 0.0, %v822
        %v824 = vpop.f32.mrf.mxu0
        %v825 = vadd.f32 0.0, %v824
        %826 = vmatprep.mubr.bf16.mxu0 0
        %827 = vmatmul.mubr.bf16.gmra.mxu0 %v705
        %v828 = vpop.f32.mrf.mxu0
        %v829 = vadd.f32 0.0, %v828
        %v830 = vpop.f32.mrf.mxu0
        %v831 = vadd.f32 0.0, %v830
        %v832 = vpop.f32.mrf.mxu0
        %v833 = vadd.f32 0.0, %v832
        %v834 = vpop.f32.mrf.mxu0
        %v835 = vadd.f32 0.0, %v834
        %836 = vmatprep.mubr.bf16.mxu0 0
        %837 = vmatmul.mubr.bf16.gmra.mxu0 %v708
        %v838 = vpop.f32.mrf.mxu0
        %v839 = vadd.f32 0.0, %v838
        %v840 = vpop.f32.mrf.mxu0
        %v841 = vadd.f32 0.0, %v840
        %v842 = vpop.f32.mrf.mxu0
        %v843 = vadd.f32 0.0, %v842
        %v844 = vpop.f32.mrf.mxu0
        %v845 = vadd.f32 0.0, %v844
        %846 = vmatprep.mubr.bf16.mxu0 0
        %847 = vmatmul.mubr.bf16.gmra.mxu0 %v711
        %v848 = vpop.f32.mrf.mxu0
        %v849 = vadd.f32 0.0, %v848
        %v850 = vpop.f32.mrf.mxu0
        %v851 = vadd.f32 0.0, %v850
        %v852 = vpop.f32.mrf.mxu0
        %v853 = vadd.f32 0.0, %v852
        %v854 = vpop.f32.mrf.mxu0
        %v855 = vadd.f32 0.0, %v854
        %856 = vmatprep.mubr.bf16.mxu0 0
        %857 = vmatmul.mubr.bf16.gmra.mxu0 %v714
        %v858 = vpop.f32.mrf.mxu0
        %v859 = vadd.f32 0.0, %v858
        %v860 = vpop.f32.mrf.mxu0
        %v861 = vadd.f32 0.0, %v860
        %v862 = vpop.f32.mrf.mxu0
        %v863 = vadd.f32 0.0, %v862
        %v864 = vpop.f32.mrf.mxu0
        %v865 = vadd.f32 0.0, %v864
        %866 = vmatprep.mubr.bf16.mxu0 0
        %867 = vmatmul.mubr.bf16.gmra.mxu0 %v717
        %v868 = vpop.f32.mrf.mxu0
        %v869 = vadd.f32 0.0, %v868
        %v870 = vpop.f32.mrf.mxu0
        %v871 = vadd.f32 0.0, %v870
        %v872 = vpop.f32.mrf.mxu0
        %v873 = vadd.f32 0.0, %v872
        %v874 = vpop.f32.mrf.mxu0
        %v875 = vadd.f32 0.0, %v874
        %876 = vmatprep.mubr.bf16.mxu0 0
        %877 = vmatmul.mubr.bf16.gmra.mxu0 %v720
        %v878 = vpop.f32.mrf.mxu0
        %v879 = vadd.f32 0.0, %v878
        %v880 = vpop.f32.mrf.mxu0
        %v881 = vadd.f32 0.0, %v880
        %v882 = vpop.f32.mrf.mxu0
        %v883 = vadd.f32 0.0, %v882
        %v884 = vpop.f32.mrf.mxu0
        %v885 = vadd.f32 0.0, %v884
        %886 = vmatprep.mubr.bf16.mxu0 0
        %887 = vmatmul.mubr.bf16.gmra.mxu0 %v723
        %v888 = vpop.f32.mrf.mxu0
        %v889 = vadd.f32 0.0, %v888
        %v890 = vpop.f32.mrf.mxu0
        %v891 = vadd.f32 0.0, %v890
        %v892 = vpop.f32.mrf.mxu0
        %v893 = vadd.f32 0.0, %v892
        %v894 = vpop.f32.mrf.mxu0
        %v895 = vadd.f32 0.0, %v894
        %896 = vmatprep.mubr.bf16.mxu0 0
        %897 = vmatmul.mubr.bf16.gmra.mxu0 %v726
        %v898 = vpop.f32.mrf.mxu0
        %v899 = vadd.f32 0.0, %v898
        %v900 = vpop.f32.mrf.mxu0
        %v901 = vadd.f32 0.0, %v900
        %v902 = vpop.f32.mrf.mxu0
        %v903 = vadd.f32 0.0, %v902
        %v904 = vpop.f32.mrf.mxu0
        %v905 = vadd.f32 0.0, %v904
        %906 = vmatprep.mubr.bf16.mxu0 0
        %907 = vmatmul.mubr.bf16.gmra.mxu0 %v729
        %v908 = vpop.f32.mrf.mxu0
        %v909 = vadd.f32 0.0, %v908
        %v910 = vpop.f32.mrf.mxu0
        %v911 = vadd.f32 0.0, %v910
        %v912 = vpop.f32.mrf.mxu0
        %v913 = vadd.f32 0.0, %v912
        %v914 = vpop.f32.mrf.mxu0
        %v915 = vadd.f32 0.0, %v914
        %916 = vmatprep.mubr.bf16.mxu0 0
        %917 = vmatmul.mubr.bf16.gmra.mxu0 %v732
        %v918 = vpop.f32.mrf.mxu0
        %v919 = vadd.f32 0.0, %v918
        %v920 = vpop.f32.mrf.mxu0
        %v921 = vadd.f32 0.0, %v920
        %v922 = vpop.f32.mrf.mxu0
        %v923 = vadd.f32 0.0, %v922
        %v924 = vpop.f32.mrf.mxu0
        %v925 = vadd.f32 0.0, %v924
        %926 = vdwg.mxu0
        %927 = vxpose.xlu0.c.b16.start [1/8] %v625, 128
        %928 = vxpose.xlu0.c.b16.cont [2/8] %v627, 128
        %929 = vxpose.xlu0.c.b16.cont [3/8] 0, 128
        %930 = vxpose.xlu0.c.b16.cont [4/8] 0, 128
        %931 = vxpose.xlu0.c.b16.cont [5/8] 0, 128
        %932 = vxpose.xlu0.c.b16.cont [6/8] 0, 128
        %933 = vxpose.xlu0.c.b16.cont [7/8] 0, 128
        %934 = vxpose.xlu0.c.b16.end [8/8] 0, 128
        %v935 = vpop.trf.xlu0
        %v936 = vpop.trf.xlu0
        %v937 = vpop.trf.xlu0
        %v938 = vpop.trf.xlu0
        %v939 = vpop.trf.xlu0
        %v940 = vpop.trf.xlu0
        %v941 = vpop.trf.xlu0
        %v942 = vpop.trf.xlu0
        %943 = vxpose.xlu0.c.b16.start [1/8] %v626, 128
        %944 = vxpose.xlu0.c.b16.cont [2/8] %v628, 128
        %945 = vxpose.xlu0.c.b16.cont [3/8] 0, 128
        %946 = vxpose.xlu0.c.b16.cont [4/8] 0, 128
        %947 = vxpose.xlu0.c.b16.cont [5/8] 0, 128
        %948 = vxpose.xlu0.c.b16.cont [6/8] 0, 128
        %949 = vxpose.xlu0.c.b16.cont [7/8] 0, 128
        %950 = vxpose.xlu0.c.b16.end [8/8] 0, 128
        %v951 = vpop.trf.xlu0
        %v952 = vpop.trf.xlu0
        %v953 = vpop.trf.xlu0
        %v954 = vpop.trf.xlu0
        %v955 = vpop.trf.xlu0
        %v956 = vpop.trf.xlu0
        %v957 = vpop.trf.xlu0
        %v958 = vpop.trf.xlu0
        %v960 = vsel %vm685, %v935, 0
        %v963 = vsel %vm685, %v936, 0
        %v966 = vsel %vm685, %v937, 0
        %v969 = vsel %vm685, %v938, 0
        %v972 = vsel %vm685, %v939, 0
        %v975 = vsel %vm685, %v940, 0
        %v978 = vsel %vm685, %v941, 0
        %v981 = vsel %vm685, %v942, 0
        %v984 = vsel %vm685, %v951, 0
        %v987 = vsel %vm685, %v952, 0
        %v990 = vsel %vm685, %v953, 0
        %v993 = vsel %vm685, %v954, 0
        %v996 = vsel %vm685, %v955, 0
        %v999 = vsel %vm685, %v956, 0
        %v1002 = vsel %vm685, %v957, 0
        %v1005 = vsel %vm685, %v958, 0
        %1007 = vmatprep.subr.bf16.mxu0 0
        %1008 = vmatpush1.bf16.msra.mxu0 0
        %1009 = vmatprep.subr.bf16.mxu0 0
        %1010 = vmatpush1.bf16.msra.mxu0 0
        %1011 = vmatprep.subr.bf16.mxu0 0
        %1012 = vmatpush1.bf16.msra.mxu0 0
        %1013 = vmatprep.subr.bf16.mxu0 0
        %1014 = vmatpush1.bf16.msra.mxu0 0
        %1015 = vmatprep.subr.bf16.mxu0 0
        %1016 = vmatpush1.bf16.msra.mxu0 0
        %1017 = vmatprep.subr.bf16.mxu0 0
        %1018 = vmatpush1.bf16.msra.mxu0 0
        %1019 = vmatprep.subr.bf16.mxu0 %v644
        %1020 = vmatpush1.bf16.msra.mxu0 %v643
        %1021 = vmatprep.subr.bf16.mxu0 %v642
        %1022 = vmatpush1.bf16.msra.mxu0 %v641
        %1023 = vmatprep.subr.bf16.mxu0 0
        %1024 = vmatpush2.bf16.msra.mxu0 0
        %1025 = vmatprep.subr.bf16.mxu0 0
        %1026 = vmatpush2.bf16.msra.mxu0 0
        %1027 = vmatprep.subr.bf16.mxu0 0
        %1028 = vmatpush2.bf16.msra.mxu0 0
        %1029 = vmatprep.subr.bf16.mxu0 0
        %1030 = vmatpush2.bf16.msra.mxu0 0
        %1031 = vmatprep.subr.bf16.mxu0 0
        %1032 = vmatpush2.bf16.msra.mxu0 0
        %1033 = vmatprep.subr.bf16.mxu0 0
        %1034 = vmatpush2.bf16.msra.mxu0 0
        %1035 = vmatprep.subr.bf16.mxu0 0
        %1036 = vmatpush2.bf16.msra.mxu0 0
        %1037 = vmatprep.subr.bf16.mxu0 0
        %1038 = vmatpush2.bf16.msra.mxu0 0
        %1039 = vmatprep.mubr.bf16.mxu0 0
        %1040 = vmatmul.mubr.bf16.gmra.mxu0 %v960
        %v1041 = vpop.f32.mrf.mxu0
        %v1042 = vadd.f32 0.0, %v1041
        %v1043 = vpop.f32.mrf.mxu0
        %v1044 = vadd.f32 0.0, %v1043
        %v1045 = vpop.f32.mrf.mxu0
        %v1046 = vadd.f32 0.0, %v1045
        %v1047 = vpop.f32.mrf.mxu0
        %v1048 = vadd.f32 0.0, %v1047
        %1049 = vmatprep.mubr.bf16.mxu0 0
        %1050 = vmatmul.mubr.bf16.gmra.mxu0 %v963
        %v1051 = vpop.f32.mrf.mxu0
        %v1052 = vadd.f32 0.0, %v1051
        %v1053 = vpop.f32.mrf.mxu0
        %v1054 = vadd.f32 0.0, %v1053
        %v1055 = vpop.f32.mrf.mxu0
        %v1056 = vadd.f32 0.0, %v1055
        %v1057 = vpop.f32.mrf.mxu0
        %v1058 = vadd.f32 0.0, %v1057
        %1059 = vmatprep.mubr.bf16.mxu0 0
        %1060 = vmatmul.mubr.bf16.gmra.mxu0 %v966
        %v1061 = vpop.f32.mrf.mxu0
        %v1062 = vadd.f32 0.0, %v1061
        %v1063 = vpop.f32.mrf.mxu0
        %v1064 = vadd.f32 0.0, %v1063
        %v1065 = vpop.f32.mrf.mxu0
        %v1066 = vadd.f32 0.0, %v1065
        %v1067 = vpop.f32.mrf.mxu0
        %v1068 = vadd.f32 0.0, %v1067
        %1069 = vmatprep.mubr.bf16.mxu0 0
        %1070 = vmatmul.mubr.bf16.gmra.mxu0 %v969
        %v1071 = vpop.f32.mrf.mxu0
        %v1072 = vadd.f32 0.0, %v1071
        %v1073 = vpop.f32.mrf.mxu0
        %v1074 = vadd.f32 0.0, %v1073
        %v1075 = vpop.f32.mrf.mxu0
        %v1076 = vadd.f32 0.0, %v1075
        %v1077 = vpop.f32.mrf.mxu0
        %v1078 = vadd.f32 0.0, %v1077
        %1079 = vmatprep.mubr.bf16.mxu0 0
        %1080 = vmatmul.mubr.bf16.gmra.mxu0 %v972
        %v1081 = vpop.f32.mrf.mxu0
        %v1082 = vadd.f32 0.0, %v1081
        %v1083 = vpop.f32.mrf.mxu0
        %v1084 = vadd.f32 0.0, %v1083
        %v1085 = vpop.f32.mrf.mxu0
        %v1086 = vadd.f32 0.0, %v1085
        %v1087 = vpop.f32.mrf.mxu0
        %v1088 = vadd.f32 0.0, %v1087
        %1089 = vmatprep.mubr.bf16.mxu0 0
        %1090 = vmatmul.mubr.bf16.gmra.mxu0 %v975
        %v1091 = vpop.f32.mrf.mxu0
        %v1092 = vadd.f32 0.0, %v1091
        %v1093 = vpop.f32.mrf.mxu0
        %v1094 = vadd.f32 0.0, %v1093
        %v1095 = vpop.f32.mrf.mxu0
        %v1096 = vadd.f32 0.0, %v1095
        %v1097 = vpop.f32.mrf.mxu0
        %v1098 = vadd.f32 0.0, %v1097
        %1099 = vmatprep.mubr.bf16.mxu0 0
        %1100 = vmatmul.mubr.bf16.gmra.mxu0 %v978
        %v1101 = vpop.f32.mrf.mxu0
        %v1102 = vadd.f32 0.0, %v1101
        %v1103 = vpop.f32.mrf.mxu0
        %v1104 = vadd.f32 0.0, %v1103
        %v1105 = vpop.f32.mrf.mxu0
        %v1106 = vadd.f32 0.0, %v1105
        %v1107 = vpop.f32.mrf.mxu0
        %v1108 = vadd.f32 0.0, %v1107
        %1109 = vmatprep.mubr.bf16.mxu0 0
        %1110 = vmatmul.mubr.bf16.gmra.mxu0 %v981
        %v1111 = vpop.f32.mrf.mxu0
        %v1112 = vadd.f32 0.0, %v1111
        %v1113 = vpop.f32.mrf.mxu0
        %v1114 = vadd.f32 0.0, %v1113
        %v1115 = vpop.f32.mrf.mxu0
        %v1116 = vadd.f32 0.0, %v1115
        %v1117 = vpop.f32.mrf.mxu0
        %v1118 = vadd.f32 0.0, %v1117
        %1119 = vmatprep.mubr.bf16.mxu0 0
        %1120 = vmatmul.mubr.bf16.gmra.mxu0 %v984
        %v1121 = vpop.f32.mrf.mxu0
        %v1122 = vadd.f32 0.0, %v1121
        %v1123 = vpop.f32.mrf.mxu0
        %v1124 = vadd.f32 0.0, %v1123
        %v1125 = vpop.f32.mrf.mxu0
        %v1126 = vadd.f32 0.0, %v1125
        %v1127 = vpop.f32.mrf.mxu0
        %v1128 = vadd.f32 0.0, %v1127
        %1129 = vmatprep.mubr.bf16.mxu0 0
        %1130 = vmatmul.mubr.bf16.gmra.mxu0 %v987
        %v1131 = vpop.f32.mrf.mxu0
        %v1132 = vadd.f32 0.0, %v1131
        %v1133 = vpop.f32.mrf.mxu0
        %v1134 = vadd.f32 0.0, %v1133
        %v1135 = vpop.f32.mrf.mxu0
        %v1136 = vadd.f32 0.0, %v1135
        %v1137 = vpop.f32.mrf.mxu0
        %v1138 = vadd.f32 0.0, %v1137
        %1139 = vmatprep.mubr.bf16.mxu0 0
        %1140 = vmatmul.mubr.bf16.gmra.mxu0 %v990
        %v1141 = vpop.f32.mrf.mxu0
        %v1142 = vadd.f32 0.0, %v1141
        %v1143 = vpop.f32.mrf.mxu0
        %v1144 = vadd.f32 0.0, %v1143
        %v1145 = vpop.f32.mrf.mxu0
        %v1146 = vadd.f32 0.0, %v1145
        %v1147 = vpop.f32.mrf.mxu0
        %v1148 = vadd.f32 0.0, %v1147
        %1149 = vmatprep.mubr.bf16.mxu0 0
        %1150 = vmatmul.mubr.bf16.gmra.mxu0 %v993
        %v1151 = vpop.f32.mrf.mxu0
        %v1152 = vadd.f32 0.0, %v1151
        %v1153 = vpop.f32.mrf.mxu0
        %v1154 = vadd.f32 0.0, %v1153
        %v1155 = vpop.f32.mrf.mxu0
        %v1156 = vadd.f32 0.0, %v1155
        %v1157 = vpop.f32.mrf.mxu0
        %v1158 = vadd.f32 0.0, %v1157
        %1159 = vmatprep.mubr.bf16.mxu0 0
        %1160 = vmatmul.mubr.bf16.gmra.mxu0 %v996
        %v1161 = vpop.f32.mrf.mxu0
        %v1162 = vadd.f32 0.0, %v1161
        %v1163 = vpop.f32.mrf.mxu0
        %v1164 = vadd.f32 0.0, %v1163
        %v1165 = vpop.f32.mrf.mxu0
        %v1166 = vadd.f32 0.0, %v1165
        %v1167 = vpop.f32.mrf.mxu0
        %v1168 = vadd.f32 0.0, %v1167
        %1169 = vmatprep.mubr.bf16.mxu0 0
        %1170 = vmatmul.mubr.bf16.gmra.mxu0 %v999
        %v1171 = vpop.f32.mrf.mxu0
        %v1172 = vadd.f32 0.0, %v1171
        %v1173 = vpop.f32.mrf.mxu0
        %v1174 = vadd.f32 0.0, %v1173
        %v1175 = vpop.f32.mrf.mxu0
        %v1176 = vadd.f32 0.0, %v1175
        %v1177 = vpop.f32.mrf.mxu0
        %v1178 = vadd.f32 0.0, %v1177
        %1179 = vmatprep.mubr.bf16.mxu0 0
        %1180 = vmatmul.mubr.bf16.gmra.mxu0 %v1002
        %v1181 = vpop.f32.mrf.mxu0
        %v1182 = vadd.f32 0.0, %v1181
        %v1183 = vpop.f32.mrf.mxu0
        %v1184 = vadd.f32 0.0, %v1183
        %v1185 = vpop.f32.mrf.mxu0
        %v1186 = vadd.f32 0.0, %v1185
        %v1187 = vpop.f32.mrf.mxu0
        %v1188 = vadd.f32 0.0, %v1187
        %1189 = vmatprep.mubr.bf16.mxu0 0
        %1190 = vmatmul.mubr.bf16.gmra.mxu0 %v1005
        %v1191 = vpop.f32.mrf.mxu0
        %v1192 = vadd.f32 0.0, %v1191
        %v1193 = vpop.f32.mrf.mxu0
        %v1194 = vadd.f32 0.0, %v1193
        %v1195 = vpop.f32.mrf.mxu0
        %v1196 = vadd.f32 0.0, %v1195
        %v1197 = vpop.f32.mrf.mxu0
        %v1198 = vadd.f32 0.0, %v1197
        %1199 = vdwg.mxu0
        %1200 = vxpose.xlu0.c.b16.start [1/8] %v629, 128
        %1201 = vxpose.xlu0.c.b16.cont [2/8] %v631, 128
        %1202 = vxpose.xlu0.c.b16.cont [3/8] 0, 128
        %1203 = vxpose.xlu0.c.b16.cont [4/8] 0, 128
        %1204 = vxpose.xlu0.c.b16.cont [5/8] 0, 128
        %1205 = vxpose.xlu0.c.b16.cont [6/8] 0, 128
        %1206 = vxpose.xlu0.c.b16.cont [7/8] 0, 128
        %1207 = vxpose.xlu0.c.b16.end [8/8] 0, 128
        %v1208 = vpop.trf.xlu0
        %v1209 = vpop.trf.xlu0
        %v1210 = vpop.trf.xlu0
        %v1211 = vpop.trf.xlu0
        %v1212 = vpop.trf.xlu0
        %v1213 = vpop.trf.xlu0
        %v1214 = vpop.trf.xlu0
        %v1215 = vpop.trf.xlu0
        %1216 = vxpose.xlu0.c.b16.start [1/8] %v630, 128
        %1217 = vxpose.xlu0.c.b16.cont [2/8] %v632, 128
        %1218 = vxpose.xlu0.c.b16.cont [3/8] 0, 128
        %1219 = vxpose.xlu0.c.b16.cont [4/8] 0, 128
        %1220 = vxpose.xlu0.c.b16.cont [5/8] 0, 128
        %1221 = vxpose.xlu0.c.b16.cont [6/8] 0, 128
        %1222 = vxpose.xlu0.c.b16.cont [7/8] 0, 128
        %1223 = vxpose.xlu0.c.b16.end [8/8] 0, 128
        %v1224 = vpop.trf.xlu0
        %v1225 = vpop.trf.xlu0
        %v1226 = vpop.trf.xlu0
        %v1227 = vpop.trf.xlu0
        %v1228 = vpop.trf.xlu0
        %v1229 = vpop.trf.xlu0
        %v1230 = vpop.trf.xlu0
        %v1231 = vpop.trf.xlu0
        %v1233 = vsel %vm685, %v1208, 0
        %v1236 = vsel %vm685, %v1209, 0
        %v1239 = vsel %vm685, %v1210, 0
        %v1242 = vsel %vm685, %v1211, 0
        %v1245 = vsel %vm685, %v1212, 0
        %v1248 = vsel %vm685, %v1213, 0
        %v1251 = vsel %vm685, %v1214, 0
        %v1254 = vsel %vm685, %v1215, 0
        %v1257 = vsel %vm685, %v1224, 0
        %v1260 = vsel %vm685, %v1225, 0
        %v1263 = vsel %vm685, %v1226, 0
        %v1266 = vsel %vm685, %v1227, 0
        %v1269 = vsel %vm685, %v1228, 0
        %v1272 = vsel %vm685, %v1229, 0
        %v1275 = vsel %vm685, %v1230, 0
        %v1278 = vsel %vm685, %v1231, 0
        %1280 = vmatprep.subr.bf16.mxu0 0
        %1281 = vmatpush1.bf16.msra.mxu0 0
        %1282 = vmatprep.subr.bf16.mxu0 0
        %1283 = vmatpush1.bf16.msra.mxu0 0
        %1284 = vmatprep.subr.bf16.mxu0 0
        %1285 = vmatpush1.bf16.msra.mxu0 0
        %1286 = vmatprep.subr.bf16.mxu0 0
        %1287 = vmatpush1.bf16.msra.mxu0 0
        %1288 = vmatprep.subr.bf16.mxu0 0
        %1289 = vmatpush1.bf16.msra.mxu0 0
        %1290 = vmatprep.subr.bf16.mxu0 0
        %1291 = vmatpush1.bf16.msra.mxu0 0
        %1292 = vmatprep.subr.bf16.mxu0 %v648
        %1293 = vmatpush1.bf16.msra.mxu0 %v647
        %1294 = vmatprep.subr.bf16.mxu0 %v646
        %1295 = vmatpush1.bf16.msra.mxu0 %v645
        %1296 = vmatprep.subr.bf16.mxu0 0
        %1297 = vmatpush2.bf16.msra.mxu0 0
        %1298 = vmatprep.subr.bf16.mxu0 0
        %1299 = vmatpush2.bf16.msra.mxu0 0
        %1300 = vmatprep.subr.bf16.mxu0 0
        %1301 = vmatpush2.bf16.msra.mxu0 0
        %1302 = vmatprep.subr.bf16.mxu0 0
        %1303 = vmatpush2.bf16.msra.mxu0 0
        %1304 = vmatprep.subr.bf16.mxu0 0
        %1305 = vmatpush2.bf16.msra.mxu0 0
        %1306 = vmatprep.subr.bf16.mxu0 0
        %1307 = vmatpush2.bf16.msra.mxu0 0
        %1308 = vmatprep.subr.bf16.mxu0 0
        %1309 = vmatpush2.bf16.msra.mxu0 0
        %1310 = vmatprep.subr.bf16.mxu0 0
        %1311 = vmatpush2.bf16.msra.mxu0 0
        %1312 = vmatprep.mubr.bf16.mxu0 0
        %1313 = vmatmul.mubr.bf16.gmra.mxu0 %v1233
        %v1314 = vpop.f32.mrf.mxu0
        %v1315 = vadd.f32 0.0, %v1314
        %v1316 = vpop.f32.mrf.mxu0
        %v1317 = vadd.f32 0.0, %v1316
        %v1318 = vpop.f32.mrf.mxu0
        %v1319 = vadd.f32 0.0, %v1318
        %v1320 = vpop.f32.mrf.mxu0
        %v1321 = vadd.f32 0.0, %v1320
        %1322 = vmatprep.mubr.bf16.mxu0 0
        %1323 = vmatmul.mubr.bf16.gmra.mxu0 %v1236
        %v1324 = vpop.f32.mrf.mxu0
        %v1325 = vadd.f32 0.0, %v1324
        %v1326 = vpop.f32.mrf.mxu0
        %v1327 = vadd.f32 0.0, %v1326
        %v1328 = vpop.f32.mrf.mxu0
        %v1329 = vadd.f32 0.0, %v1328
        %v1330 = vpop.f32.mrf.mxu0
        %v1331 = vadd.f32 0.0, %v1330
        %1332 = vmatprep.mubr.bf16.mxu0 0
        %1333 = vmatmul.mubr.bf16.gmra.mxu0 %v1239
        %v1334 = vpop.f32.mrf.mxu0
        %v1335 = vadd.f32 0.0, %v1334
        %v1336 = vpop.f32.mrf.mxu0
        %v1337 = vadd.f32 0.0, %v1336
        %v1338 = vpop.f32.mrf.mxu0
        %v1339 = vadd.f32 0.0, %v1338
        %v1340 = vpop.f32.mrf.mxu0
        %v1341 = vadd.f32 0.0, %v1340
        %1342 = vmatprep.mubr.bf16.mxu0 0
        %1343 = vmatmul.mubr.bf16.gmra.mxu0 %v1242
        %v1344 = vpop.f32.mrf.mxu0
        %v1345 = vadd.f32 0.0, %v1344
        %v1346 = vpop.f32.mrf.mxu0
        %v1347 = vadd.f32 0.0, %v1346
        %v1348 = vpop.f32.mrf.mxu0
        %v1349 = vadd.f32 0.0, %v1348
        %v1350 = vpop.f32.mrf.mxu0
        %v1351 = vadd.f32 0.0, %v1350
        %1352 = vmatprep.mubr.bf16.mxu0 0
        %1353 = vmatmul.mubr.bf16.gmra.mxu0 %v1245
        %v1354 = vpop.f32.mrf.mxu0
        %v1355 = vadd.f32 0.0, %v1354
        %v1356 = vpop.f32.mrf.mxu0
        %v1357 = vadd.f32 0.0, %v1356
        %v1358 = vpop.f32.mrf.mxu0
        %v1359 = vadd.f32 0.0, %v1358
        %v1360 = vpop.f32.mrf.mxu0
        %v1361 = vadd.f32 0.0, %v1360
        %1362 = vmatprep.mubr.bf16.mxu0 0
        %1363 = vmatmul.mubr.bf16.gmra.mxu0 %v1248
        %v1364 = vpop.f32.mrf.mxu0
        %v1365 = vadd.f32 0.0, %v1364
        %v1366 = vpop.f32.mrf.mxu0
        %v1367 = vadd.f32 0.0, %v1366
        %v1368 = vpop.f32.mrf.mxu0
        %v1369 = vadd.f32 0.0, %v1368
        %v1370 = vpop.f32.mrf.mxu0
        %v1371 = vadd.f32 0.0, %v1370
        %1372 = vmatprep.mubr.bf16.mxu0 0
        %1373 = vmatmul.mubr.bf16.gmra.mxu0 %v1251
        %v1374 = vpop.f32.mrf.mxu0
        %v1375 = vadd.f32 0.0, %v1374
        %v1376 = vpop.f32.mrf.mxu0
        %v1377 = vadd.f32 0.0, %v1376
        %v1378 = vpop.f32.mrf.mxu0
        %v1379 = vadd.f32 0.0, %v1378
        %v1380 = vpop.f32.mrf.mxu0
        %v1381 = vadd.f32 0.0, %v1380
        %1382 = vmatprep.mubr.bf16.mxu0 0
        %1383 = vmatmul.mubr.bf16.gmra.mxu0 %v1254
        %v1384 = vpop.f32.mrf.mxu0
        %v1385 = vadd.f32 0.0, %v1384
        %v1386 = vpop.f32.mrf.mxu0
        %v1387 = vadd.f32 0.0, %v1386
        %v1388 = vpop.f32.mrf.mxu0
        %v1389 = vadd.f32 0.0, %v1388
        %v1390 = vpop.f32.mrf.mxu0
        %v1391 = vadd.f32 0.0, %v1390
        %1392 = vmatprep.mubr.bf16.mxu0 0
        %1393 = vmatmul.mubr.bf16.gmra.mxu0 %v1257
        %v1394 = vpop.f32.mrf.mxu0
        %v1395 = vadd.f32 0.0, %v1394
        %v1396 = vpop.f32.mrf.mxu0
        %v1397 = vadd.f32 0.0, %v1396
        %v1398 = vpop.f32.mrf.mxu0
        %v1399 = vadd.f32 0.0, %v1398
        %v1400 = vpop.f32.mrf.mxu0
        %v1401 = vadd.f32 0.0, %v1400
        %1402 = vmatprep.mubr.bf16.mxu0 0
        %1403 = vmatmul.mubr.bf16.gmra.mxu0 %v1260
        %v1404 = vpop.f32.mrf.mxu0
        %v1405 = vadd.f32 0.0, %v1404
        %v1406 = vpop.f32.mrf.mxu0
        %v1407 = vadd.f32 0.0, %v1406
        %v1408 = vpop.f32.mrf.mxu0
        %v1409 = vadd.f32 0.0, %v1408
        %v1410 = vpop.f32.mrf.mxu0
        %v1411 = vadd.f32 0.0, %v1410
        %1412 = vmatprep.mubr.bf16.mxu0 0
        %1413 = vmatmul.mubr.bf16.gmra.mxu0 %v1263
        %v1414 = vpop.f32.mrf.mxu0
        %v1415 = vadd.f32 0.0, %v1414
        %v1416 = vpop.f32.mrf.mxu0
        %v1417 = vadd.f32 0.0, %v1416
        %v1418 = vpop.f32.mrf.mxu0
        %v1419 = vadd.f32 0.0, %v1418
        %v1420 = vpop.f32.mrf.mxu0
        %v1421 = vadd.f32 0.0, %v1420
        %1422 = vmatprep.mubr.bf16.mxu0 0
        %1423 = vmatmul.mubr.bf16.gmra.mxu0 %v1266
        %v1424 = vpop.f32.mrf.mxu0
        %v1425 = vadd.f32 0.0, %v1424
        %v1426 = vpop.f32.mrf.mxu0
        %v1427 = vadd.f32 0.0, %v1426
        %v1428 = vpop.f32.mrf.mxu0
        %v1429 = vadd.f32 0.0, %v1428
        %v1430 = vpop.f32.mrf.mxu0
        %v1431 = vadd.f32 0.0, %v1430
        %1432 = vmatprep.mubr.bf16.mxu0 0
        %1433 = vmatmul.mubr.bf16.gmra.mxu0 %v1269
        %v1434 = vpop.f32.mrf.mxu0
        %v1435 = vadd.f32 0.0, %v1434
        %v1436 = vpop.f32.mrf.mxu0
        %v1437 = vadd.f32 0.0, %v1436
        %v1438 = vpop.f32.mrf.mxu0
        %v1439 = vadd.f32 0.0, %v1438
        %v1440 = vpop.f32.mrf.mxu0
        %v1441 = vadd.f32 0.0, %v1440
        %1442 = vmatprep.mubr.bf16.mxu0 0
        %1443 = vmatmul.mubr.bf16.gmra.mxu0 %v1272
        %v1444 = vpop.f32.mrf.mxu0
        %v1445 = vadd.f32 0.0, %v1444
        %v1446 = vpop.f32.mrf.mxu0
        %v1447 = vadd.f32 0.0, %v1446
        %v1448 = vpop.f32.mrf.mxu0
        %v1449 = vadd.f32 0.0, %v1448
        %v1450 = vpop.f32.mrf.mxu0
        %v1451 = vadd.f32 0.0, %v1450
        %1452 = vmatprep.mubr.bf16.mxu0 0
        %1453 = vmatmul.mubr.bf16.gmra.mxu0 %v1275
        %v1454 = vpop.f32.mrf.mxu0
        %v1455 = vadd.f32 0.0, %v1454
        %v1456 = vpop.f32.mrf.mxu0
        %v1457 = vadd.f32 0.0, %v1456
        %v1458 = vpop.f32.mrf.mxu0
        %v1459 = vadd.f32 0.0, %v1458
        %v1460 = vpop.f32.mrf.mxu0
        %v1461 = vadd.f32 0.0, %v1460
        %1462 = vmatprep.mubr.bf16.mxu0 0
        %1463 = vmatmul.mubr.bf16.gmra.mxu0 %v1278
        %v1464 = vpop.f32.mrf.mxu0
        %v1465 = vadd.f32 0.0, %v1464
        %v1466 = vpop.f32.mrf.mxu0
        %v1467 = vadd.f32 0.0, %v1466
        %v1468 = vpop.f32.mrf.mxu0
        %v1469 = vadd.f32 0.0, %v1468
        %v1470 = vpop.f32.mrf.mxu0
        %v1471 = vadd.f32 0.0, %v1470
        %1472 = vdwg.mxu0
        %1473 = vxpose.xlu0.c.b16.start [1/8] %v633, 128
        %1474 = vxpose.xlu0.c.b16.cont [2/8] %v635, 128
        %1475 = vxpose.xlu0.c.b16.cont [3/8] 0, 128
        %1476 = vxpose.xlu0.c.b16.cont [4/8] 0, 128
        %1477 = vxpose.xlu0.c.b16.cont [5/8] 0, 128
        %1478 = vxpose.xlu0.c.b16.cont [6/8] 0, 128
        %1479 = vxpose.xlu0.c.b16.cont [7/8] 0, 128
        %1480 = vxpose.xlu0.c.b16.end [8/8] 0, 128
        %v1481 = vpop.trf.xlu0
        %v1482 = vpop.trf.xlu0
        %v1483 = vpop.trf.xlu0
        %v1484 = vpop.trf.xlu0
        %v1485 = vpop.trf.xlu0
        %v1486 = vpop.trf.xlu0
        %v1487 = vpop.trf.xlu0
        %v1488 = vpop.trf.xlu0
        %1489 = vxpose.xlu0.c.b16.start [1/8] %v634, 128
        %1490 = vxpose.xlu0.c.b16.cont [2/8] %v636, 128
        %1491 = vxpose.xlu0.c.b16.cont [3/8] 0, 128
        %1492 = vxpose.xlu0.c.b16.cont [4/8] 0, 128
        %1493 = vxpose.xlu0.c.b16.cont [5/8] 0, 128
        %1494 = vxpose.xlu0.c.b16.cont [6/8] 0, 128
        %1495 = vxpose.xlu0.c.b16.cont [7/8] 0, 128
        %1496 = vxpose.xlu0.c.b16.end [8/8] 0, 128
        %v1497 = vpop.trf.xlu0
        %v1498 = vpop.trf.xlu0
        %v1499 = vpop.trf.xlu0
        %v1500 = vpop.trf.xlu0
        %v1501 = vpop.trf.xlu0
        %v1502 = vpop.trf.xlu0
        %v1503 = vpop.trf.xlu0
        %v1504 = vpop.trf.xlu0
        %v1506 = vsel %vm685, %v1481, 0
        %v1509 = vsel %vm685, %v1482, 0
        %v1512 = vsel %vm685, %v1483, 0
        %v1515 = vsel %vm685, %v1484, 0
        %v1518 = vsel %vm685, %v1485, 0
        %v1521 = vsel %vm685, %v1486, 0
        %v1524 = vsel %vm685, %v1487, 0
        %v1527 = vsel %vm685, %v1488, 0
        %v1530 = vsel %vm685, %v1497, 0
        %v1533 = vsel %vm685, %v1498, 0
        %v1536 = vsel %vm685, %v1499, 0
        %v1539 = vsel %vm685, %v1500, 0
        %v1542 = vsel %vm685, %v1501, 0
        %v1545 = vsel %vm685, %v1502, 0
        %v1548 = vsel %vm685, %v1503, 0
        %v1551 = vsel %vm685, %v1504, 0
        %1553 = vmatprep.subr.bf16.mxu0 0
        %1554 = vmatpush1.bf16.msra.mxu0 0
        %1555 = vmatprep.subr.bf16.mxu0 0
        %1556 = vmatpush1.bf16.msra.mxu0 0
        %1557 = vmatprep.subr.bf16.mxu0 0
        %1558 = vmatpush1.bf16.msra.mxu0 0
        %1559 = vmatprep.subr.bf16.mxu0 0
        %1560 = vmatpush1.bf16.msra.mxu0 0
        %1561 = vmatprep.subr.bf16.mxu0 0
        %1562 = vmatpush1.bf16.msra.mxu0 0
        %1563 = vmatprep.subr.bf16.mxu0 0
        %1564 = vmatpush1.bf16.msra.mxu0 0
        %1565 = vmatprep.subr.bf16.mxu0 %v652
        %1566 = vmatpush1.bf16.msra.mxu0 %v651
        %1567 = vmatprep.subr.bf16.mxu0 %v650
        %1568 = vmatpush1.bf16.msra.mxu0 %v649
        %1569 = vmatprep.subr.bf16.mxu0 0
        %1570 = vmatpush2.bf16.msra.mxu0 0
        %1571 = vmatprep.subr.bf16.mxu0 0
        %1572 = vmatpush2.bf16.msra.mxu0 0
        %1573 = vmatprep.subr.bf16.mxu0 0
        %1574 = vmatpush2.bf16.msra.mxu0 0
        %1575 = vmatprep.subr.bf16.mxu0 0
        %1576 = vmatpush2.bf16.msra.mxu0 0
        %1577 = vmatprep.subr.bf16.mxu0 0
        %1578 = vmatpush2.bf16.msra.mxu0 0
        %1579 = vmatprep.subr.bf16.mxu0 0
        %1580 = vmatpush2.bf16.msra.mxu0 0
        %1581 = vmatprep.subr.bf16.mxu0 0
        %1582 = vmatpush2.bf16.msra.mxu0 0
        %1583 = vmatprep.subr.bf16.mxu0 0
        %1584 = vmatpush2.bf16.msra.mxu0 0
        %1585 = vmatprep.mubr.bf16.mxu0 0
        %1586 = vmatmul.mubr.bf16.gmra.mxu0 %v1506
        %v1587 = vpop.f32.mrf.mxu0
        %v1588 = vadd.f32 0.0, %v1587
        %v1589 = vpop.f32.mrf.mxu0
        %v1590 = vadd.f32 0.0, %v1589
        %v1591 = vpop.f32.mrf.mxu0
        %v1592 = vadd.f32 0.0, %v1591
        %v1593 = vpop.f32.mrf.mxu0
        %v1594 = vadd.f32 0.0, %v1593
        %1595 = vmatprep.mubr.bf16.mxu0 0
        %1596 = vmatmul.mubr.bf16.gmra.mxu0 %v1509
        %v1597 = vpop.f32.mrf.mxu0
        %v1598 = vadd.f32 0.0, %v1597
        %v1599 = vpop.f32.mrf.mxu0
        %v1600 = vadd.f32 0.0, %v1599
        %v1601 = vpop.f32.mrf.mxu0
        %v1602 = vadd.f32 0.0, %v1601
        %v1603 = vpop.f32.mrf.mxu0
        %v1604 = vadd.f32 0.0, %v1603
        %1605 = vmatprep.mubr.bf16.mxu0 0
        %1606 = vmatmul.mubr.bf16.gmra.mxu0 %v1512
        %v1607 = vpop.f32.mrf.mxu0
        %v1608 = vadd.f32 0.0, %v1607
        %v1609 = vpop.f32.mrf.mxu0
        %v1610 = vadd.f32 0.0, %v1609
        %v1611 = vpop.f32.mrf.mxu0
        %v1612 = vadd.f32 0.0, %v1611
        %v1613 = vpop.f32.mrf.mxu0
        %v1614 = vadd.f32 0.0, %v1613
        %1615 = vmatprep.mubr.bf16.mxu0 0
        %1616 = vmatmul.mubr.bf16.gmra.mxu0 %v1515
        %v1617 = vpop.f32.mrf.mxu0
        %v1618 = vadd.f32 0.0, %v1617
        %v1619 = vpop.f32.mrf.mxu0
        %v1620 = vadd.f32 0.0, %v1619
        %v1621 = vpop.f32.mrf.mxu0
        %v1622 = vadd.f32 0.0, %v1621
        %v1623 = vpop.f32.mrf.mxu0
        %v1624 = vadd.f32 0.0, %v1623
        %1625 = vmatprep.mubr.bf16.mxu0 0
        %1626 = vmatmul.mubr.bf16.gmra.mxu0 %v1518
        %v1627 = vpop.f32.mrf.mxu0
        %v1628 = vadd.f32 0.0, %v1627
        %v1629 = vpop.f32.mrf.mxu0
        %v1630 = vadd.f32 0.0, %v1629
        %v1631 = vpop.f32.mrf.mxu0
        %v1632 = vadd.f32 0.0, %v1631
        %v1633 = vpop.f32.mrf.mxu0
        %v1634 = vadd.f32 0.0, %v1633
        %1635 = vmatprep.mubr.bf16.mxu0 0
        %1636 = vmatmul.mubr.bf16.gmra.mxu0 %v1521
        %v1637 = vpop.f32.mrf.mxu0
        %v1638 = vadd.f32 0.0, %v1637
        %v1639 = vpop.f32.mrf.mxu0
        %v1640 = vadd.f32 0.0, %v1639
        %v1641 = vpop.f32.mrf.mxu0
        %v1642 = vadd.f32 0.0, %v1641
        %v1643 = vpop.f32.mrf.mxu0
        %v1644 = vadd.f32 0.0, %v1643
        %1645 = vmatprep.mubr.bf16.mxu0 0
        %1646 = vmatmul.mubr.bf16.gmra.mxu0 %v1524
        %v1647 = vpop.f32.mrf.mxu0
        %v1648 = vadd.f32 0.0, %v1647
        %v1649 = vpop.f32.mrf.mxu0
        %v1650 = vadd.f32 0.0, %v1649
        %v1651 = vpop.f32.mrf.mxu0
        %v1652 = vadd.f32 0.0, %v1651
        %v1653 = vpop.f32.mrf.mxu0
        %v1654 = vadd.f32 0.0, %v1653
        %1655 = vmatprep.mubr.bf16.mxu0 0
        %1656 = vmatmul.mubr.bf16.gmra.mxu0 %v1527
        %v1657 = vpop.f32.mrf.mxu0
        %v1658 = vadd.f32 0.0, %v1657
        %v1659 = vpop.f32.mrf.mxu0
        %v1660 = vadd.f32 0.0, %v1659
        %v1661 = vpop.f32.mrf.mxu0
        %v1662 = vadd.f32 0.0, %v1661
        %v1663 = vpop.f32.mrf.mxu0
        %v1664 = vadd.f32 0.0, %v1663
        %1665 = vmatprep.mubr.bf16.mxu0 0
        %1666 = vmatmul.mubr.bf16.gmra.mxu0 %v1530
        %v1667 = vpop.f32.mrf.mxu0
        %v1668 = vadd.f32 0.0, %v1667
        %v1669 = vpop.f32.mrf.mxu0
        %v1670 = vadd.f32 0.0, %v1669
        %v1671 = vpop.f32.mrf.mxu0
        %v1672 = vadd.f32 0.0, %v1671
        %v1673 = vpop.f32.mrf.mxu0
        %v1674 = vadd.f32 0.0, %v1673
        %1675 = vmatprep.mubr.bf16.mxu0 0
        %1676 = vmatmul.mubr.bf16.gmra.mxu0 %v1533
        %v1677 = vpop.f32.mrf.mxu0
        %v1678 = vadd.f32 0.0, %v1677
        %v1679 = vpop.f32.mrf.mxu0
        %v1680 = vadd.f32 0.0, %v1679
        %v1681 = vpop.f32.mrf.mxu0
        %v1682 = vadd.f32 0.0, %v1681
        %v1683 = vpop.f32.mrf.mxu0
        %v1684 = vadd.f32 0.0, %v1683
        %1685 = vmatprep.mubr.bf16.mxu0 0
        %1686 = vmatmul.mubr.bf16.gmra.mxu0 %v1536
        %v1687 = vpop.f32.mrf.mxu0
        %v1688 = vadd.f32 0.0, %v1687
        %v1689 = vpop.f32.mrf.mxu0
        %v1690 = vadd.f32 0.0, %v1689
        %v1691 = vpop.f32.mrf.mxu0
        %v1692 = vadd.f32 0.0, %v1691
        %v1693 = vpop.f32.mrf.mxu0
        %v1694 = vadd.f32 0.0, %v1693
        %1695 = vmatprep.mubr.bf16.mxu0 0
        %1696 = vmatmul.mubr.bf16.gmra.mxu0 %v1539
        %v1697 = vpop.f32.mrf.mxu0
        %v1698 = vadd.f32 0.0, %v1697
        %v1699 = vpop.f32.mrf.mxu0
        %v1700 = vadd.f32 0.0, %v1699
        %v1701 = vpop.f32.mrf.mxu0
        %v1702 = vadd.f32 0.0, %v1701
        %v1703 = vpop.f32.mrf.mxu0
        %v1704 = vadd.f32 0.0, %v1703
        %1705 = vmatprep.mubr.bf16.mxu0 0
        %1706 = vmatmul.mubr.bf16.gmra.mxu0 %v1542
        %v1707 = vpop.f32.mrf.mxu0
        %v1708 = vadd.f32 0.0, %v1707
        %v1709 = vpop.f32.mrf.mxu0
        %v1710 = vadd.f32 0.0, %v1709
        %v1711 = vpop.f32.mrf.mxu0
        %v1712 = vadd.f32 0.0, %v1711
        %v1713 = vpop.f32.mrf.mxu0
        %v1714 = vadd.f32 0.0, %v1713
        %1715 = vmatprep.mubr.bf16.mxu0 0
        %1716 = vmatmul.mubr.bf16.gmra.mxu0 %v1545
        %v1717 = vpop.f32.mrf.mxu0
        %v1718 = vadd.f32 0.0, %v1717
        %v1719 = vpop.f32.mrf.mxu0
        %v1720 = vadd.f32 0.0, %v1719
        %v1721 = vpop.f32.mrf.mxu0
        %v1722 = vadd.f32 0.0, %v1721
        %v1723 = vpop.f32.mrf.mxu0
        %v1724 = vadd.f32 0.0, %v1723
        %1725 = vmatprep.mubr.bf16.mxu0 0
        %1726 = vmatmul.mubr.bf16.gmra.mxu0 %v1548
        %v1727 = vpop.f32.mrf.mxu0
        %v1728 = vadd.f32 0.0, %v1727
        %v1729 = vpop.f32.mrf.mxu0
        %v1730 = vadd.f32 0.0, %v1729
        %v1731 = vpop.f32.mrf.mxu0
        %v1732 = vadd.f32 0.0, %v1731
        %v1733 = vpop.f32.mrf.mxu0
        %v1734 = vadd.f32 0.0, %v1733
        %1735 = vmatprep.mubr.bf16.mxu0 0
        %1736 = vmatmul.mubr.bf16.gmra.mxu0 %v1551
        %v1737 = vpop.f32.mrf.mxu0
        %v1738 = vadd.f32 0.0, %v1737
        %v1739 = vpop.f32.mrf.mxu0
        %v1740 = vadd.f32 0.0, %v1739
        %v1741 = vpop.f32.mrf.mxu0
        %v1742 = vadd.f32 0.0, %v1741
        %v1743 = vpop.f32.mrf.mxu0
        %v1744 = vadd.f32 0.0, %v1743
        %1745 = vdwg.mxu0
        %v1746 = vmax.f32 %v769, %v771
        %1747 = vmax.xlane.f32.xlu0 %v1746
        %v1748 = vpop.xlane.xlu0 %1747
        %v1749 = vmax.f32 %v773, %v775
        %1750 = vmax.xlane.f32.xlu0 %v1749
        %v1751 = vpop.xlane.xlu0 %1750
        %v1752 = vmax.f32 %v779, %v781
        %1753 = vmax.xlane.f32.xlu0 %v1752
        %v1754 = vpop.xlane.xlu0 %1753
        %v1755 = vmax.f32 %v783, %v785
        %1756 = vmax.xlane.f32.xlu0 %v1755
        %v1757 = vpop.xlane.xlu0 %1756
        %v1758 = vmax.f32 %v789, %v791
        %1759 = vmax.xlane.f32.xlu0 %v1758
        %v1760 = vpop.xlane.xlu0 %1759
        %v1761 = vmax.f32 %v793, %v795
        %1762 = vmax.xlane.f32.xlu0 %v1761
        %v1763 = vpop.xlane.xlu0 %1762
        %v1764 = vmax.f32 %v799, %v801
        %1765 = vmax.xlane.f32.xlu0 %v1764
        %v1766 = vpop.xlane.xlu0 %1765
        %v1767 = vmax.f32 %v803, %v805
        %1768 = vmax.xlane.f32.xlu0 %v1767
        %v1769 = vpop.xlane.xlu0 %1768
        %v1770 = vmax.f32 %v809, %v811
        %1771 = vmax.xlane.f32.xlu0 %v1770
        %v1772 = vpop.xlane.xlu0 %1771
        %v1773 = vmax.f32 %v813, %v815
        %1774 = vmax.xlane.f32.xlu0 %v1773
        %v1775 = vpop.xlane.xlu0 %1774
        %v1776 = vmax.f32 %v819, %v821
        %1777 = vmax.xlane.f32.xlu0 %v1776
        %v1778 = vpop.xlane.xlu0 %1777
        %v1779 = vmax.f32 %v823, %v825
        %1780 = vmax.xlane.f32.xlu0 %v1779
        %v1781 = vpop.xlane.xlu0 %1780
        %v1782 = vmax.f32 %v829, %v831
        %1783 = vmax.xlane.f32.xlu0 %v1782
        %v1784 = vpop.xlane.xlu0 %1783
        %v1785 = vmax.f32 %v833, %v835
        %1786 = vmax.xlane.f32.xlu0 %v1785
        %v1787 = vpop.xlane.xlu0 %1786
        %v1788 = vmax.f32 %v839, %v841
        %1789 = vmax.xlane.f32.xlu0 %v1788
        %v1790 = vpop.xlane.xlu0 %1789
        %v1791 = vmax.f32 %v843, %v845
        %1792 = vmax.xlane.f32.xlu0 %v1791
        %v1793 = vpop.xlane.xlu0 %1792
        %v1794 = vmax.f32 %v849, %v851
        %1795 = vmax.xlane.f32.xlu0 %v1794
        %v1796 = vpop.xlane.xlu0 %1795
        %v1797 = vmax.f32 %v853, %v855
        %1798 = vmax.xlane.f32.xlu0 %v1797
        %v1799 = vpop.xlane.xlu0 %1798
        %v1800 = vmax.f32 %v859, %v861
        %1801 = vmax.xlane.f32.xlu0 %v1800
        %v1802 = vpop.xlane.xlu0 %1801
        %v1803 = vmax.f32 %v863, %v865
        %1804 = vmax.xlane.f32.xlu0 %v1803
        %v1805 = vpop.xlane.xlu0 %1804
        %v1806 = vmax.f32 %v869, %v871
        %1807 = vmax.xlane.f32.xlu0 %v1806
        %v1808 = vpop.xlane.xlu0 %1807
        %v1809 = vmax.f32 %v873, %v875
        %1810 = vmax.xlane.f32.xlu0 %v1809
        %v1811 = vpop.xlane.xlu0 %1810
        %v1812 = vmax.f32 %v879, %v881
        %1813 = vmax.xlane.f32.xlu0 %v1812
        %v1814 = vpop.xlane.xlu0 %1813
        %v1815 = vmax.f32 %v883, %v885
        %1816 = vmax.xlane.f32.xlu0 %v1815
        %v1817 = vpop.xlane.xlu0 %1816
        %v1818 = vmax.f32 %v889, %v891
        %1819 = vmax.xlane.f32.xlu0 %v1818
        %v1820 = vpop.xlane.xlu0 %1819
        %v1821 = vmax.f32 %v893, %v895
        %1822 = vmax.xlane.f32.xlu0 %v1821
        %v1823 = vpop.xlane.xlu0 %1822
        %v1824 = vmax.f32 %v899, %v901
        %1825 = vmax.xlane.f32.xlu0 %v1824
        %v1826 = vpop.xlane.xlu0 %1825
        %v1827 = vmax.f32 %v903, %v905
        %1828 = vmax.xlane.f32.xlu0 %v1827
        %v1829 = vpop.xlane.xlu0 %1828
        %v1830 = vmax.f32 %v909, %v911
        %1831 = vmax.xlane.f32.xlu0 %v1830
        %v1832 = vpop.xlane.xlu0 %1831
        %v1833 = vmax.f32 %v913, %v915
        %1834 = vmax.xlane.f32.xlu0 %v1833
        %v1835 = vpop.xlane.xlu0 %1834
        %v1836 = vmax.f32 %v919, %v921
        %1837 = vmax.xlane.f32.xlu0 %v1836
        %v1838 = vpop.xlane.xlu0 %1837
        %v1839 = vmax.f32 %v923, %v925
        %1840 = vmax.xlane.f32.xlu0 %v1839
        %v1841 = vpop.xlane.xlu0 %1840
        %v1842 = vmax.f32 %v1042, %v1044
        %1843 = vmax.xlane.f32.xlu0 %v1842
        %v1844 = vpop.xlane.xlu0 %1843
        %v1845 = vmax.f32 %v1046, %v1048
        %1846 = vmax.xlane.f32.xlu0 %v1845
        %v1847 = vpop.xlane.xlu0 %1846
        %v1848 = vmax.f32 %v1052, %v1054
        %1849 = vmax.xlane.f32.xlu0 %v1848
        %v1850 = vpop.xlane.xlu0 %1849
        %v1851 = vmax.f32 %v1056, %v1058
        %1852 = vmax.xlane.f32.xlu0 %v1851
        %v1853 = vpop.xlane.xlu0 %1852
        %v1854 = vmax.f32 %v1062, %v1064
        %1855 = vmax.xlane.f32.xlu0 %v1854
        %v1856 = vpop.xlane.xlu0 %1855
        %v1857 = vmax.f32 %v1066, %v1068
        %1858 = vmax.xlane.f32.xlu0 %v1857
        %v1859 = vpop.xlane.xlu0 %1858
        %v1860 = vmax.f32 %v1072, %v1074
        %1861 = vmax.xlane.f32.xlu0 %v1860
        %v1862 = vpop.xlane.xlu0 %1861
        %v1863 = vmax.f32 %v1076, %v1078
        %1864 = vmax.xlane.f32.xlu0 %v1863
        %v1865 = vpop.xlane.xlu0 %1864
        %v1866 = vmax.f32 %v1082, %v1084
        %1867 = vmax.xlane.f32.xlu0 %v1866
        %v1868 = vpop.xlane.xlu0 %1867
        %v1869 = vmax.f32 %v1086, %v1088
        %1870 = vmax.xlane.f32.xlu0 %v1869
        %v1871 = vpop.xlane.xlu0 %1870
        %v1872 = vmax.f32 %v1092, %v1094
        %1873 = vmax.xlane.f32.xlu0 %v1872
        %v1874 = vpop.xlane.xlu0 %1873
        %v1875 = vmax.f32 %v1096, %v1098
        %1876 = vmax.xlane.f32.xlu0 %v1875
        %v1877 = vpop.xlane.xlu0 %1876
        %v1878 = vmax.f32 %v1102, %v1104
        %1879 = vmax.xlane.f32.xlu0 %v1878
        %v1880 = vpop.xlane.xlu0 %1879
        %v1881 = vmax.f32 %v1106, %v1108
        %1882 = vmax.xlane.f32.xlu0 %v1881
        %v1883 = vpop.xlane.xlu0 %1882
        %v1884 = vmax.f32 %v1112, %v1114
        %1885 = vmax.xlane.f32.xlu0 %v1884
        %v1886 = vpop.xlane.xlu0 %1885
        %v1887 = vmax.f32 %v1116, %v1118
        %1888 = vmax.xlane.f32.xlu0 %v1887
        %v1889 = vpop.xlane.xlu0 %1888
        %v1890 = vmax.f32 %v1122, %v1124
        %1891 = vmax.xlane.f32.xlu0 %v1890
        %v1892 = vpop.xlane.xlu0 %1891
        %v1893 = vmax.f32 %v1126, %v1128
        %1894 = vmax.xlane.f32.xlu0 %v1893
        %v1895 = vpop.xlane.xlu0 %1894
        %v1896 = vmax.f32 %v1132, %v1134
        %1897 = vmax.xlane.f32.xlu0 %v1896
        %v1898 = vpop.xlane.xlu0 %1897
        %v1899 = vmax.f32 %v1136, %v1138
        %1900 = vmax.xlane.f32.xlu0 %v1899
        %v1901 = vpop.xlane.xlu0 %1900
        %v1902 = vmax.f32 %v1142, %v1144
        %1903 = vmax.xlane.f32.xlu0 %v1902
        %v1904 = vpop.xlane.xlu0 %1903
        %v1905 = vmax.f32 %v1146, %v1148
        %1906 = vmax.xlane.f32.xlu0 %v1905
        %v1907 = vpop.xlane.xlu0 %1906
        %v1908 = vmax.f32 %v1152, %v1154
        %1909 = vmax.xlane.f32.xlu0 %v1908
        %v1910 = vpop.xlane.xlu0 %1909
        %v1911 = vmax.f32 %v1156, %v1158
        %1912 = vmax.xlane.f32.xlu0 %v1911
        %v1913 = vpop.xlane.xlu0 %1912
        %v1914 = vmax.f32 %v1162, %v1164
        %1915 = vmax.xlane.f32.xlu0 %v1914
        %v1916 = vpop.xlane.xlu0 %1915
        %v1917 = vmax.f32 %v1166, %v1168
        %1918 = vmax.xlane.f32.xlu0 %v1917
        %v1919 = vpop.xlane.xlu0 %1918
        %v1920 = vmax.f32 %v1172, %v1174
        %1921 = vmax.xlane.f32.xlu0 %v1920
        %v1922 = vpop.xlane.xlu0 %1921
        %v1923 = vmax.f32 %v1176, %v1178
        %1924 = vmax.xlane.f32.xlu0 %v1923
        %v1925 = vpop.xlane.xlu0 %1924
        %v1926 = vmax.f32 %v1182, %v1184
        %1927 = vmax.xlane.f32.xlu0 %v1926
        %v1928 = vpop.xlane.xlu0 %1927
        %v1929 = vmax.f32 %v1186, %v1188
        %1930 = vmax.xlane.f32.xlu0 %v1929
        %v1931 = vpop.xlane.xlu0 %1930
        %v1932 = vmax.f32 %v1192, %v1194
        %1933 = vmax.xlane.f32.xlu0 %v1932
        %v1934 = vpop.xlane.xlu0 %1933
        %v1935 = vmax.f32 %v1196, %v1198
        %1936 = vmax.xlane.f32.xlu0 %v1935
        %v1937 = vpop.xlane.xlu0 %1936
        %v1938 = vmax.f32 %v1315, %v1317
        %1939 = vmax.xlane.f32.xlu0 %v1938
        %v1940 = vpop.xlane.xlu0 %1939
        %v1941 = vmax.f32 %v1319, %v1321
        %1942 = vmax.xlane.f32.xlu0 %v1941
        %v1943 = vpop.xlane.xlu0 %1942
        %v1944 = vmax.f32 %v1325, %v1327
        %1945 = vmax.xlane.f32.xlu0 %v1944
        %v1946 = vpop.xlane.xlu0 %1945
        %v1947 = vmax.f32 %v1329, %v1331
        %1948 = vmax.xlane.f32.xlu0 %v1947
        %v1949 = vpop.xlane.xlu0 %1948
        %v1950 = vmax.f32 %v1335, %v1337
        %1951 = vmax.xlane.f32.xlu0 %v1950
        %v1952 = vpop.xlane.xlu0 %1951
        %v1953 = vmax.f32 %v1339, %v1341
        %1954 = vmax.xlane.f32.xlu0 %v1953
        %v1955 = vpop.xlane.xlu0 %1954
        %v1956 = vmax.f32 %v1345, %v1347
        %1957 = vmax.xlane.f32.xlu0 %v1956
        %v1958 = vpop.xlane.xlu0 %1957
        %v1959 = vmax.f32 %v1349, %v1351
        %1960 = vmax.xlane.f32.xlu0 %v1959
        %v1961 = vpop.xlane.xlu0 %1960
        %v1962 = vmax.f32 %v1355, %v1357
        %1963 = vmax.xlane.f32.xlu0 %v1962
        %v1964 = vpop.xlane.xlu0 %1963
        %v1965 = vmax.f32 %v1359, %v1361
        %1966 = vmax.xlane.f32.xlu0 %v1965
        %v1967 = vpop.xlane.xlu0 %1966
        %v1968 = vmax.f32 %v1365, %v1367
        %1969 = vmax.xlane.f32.xlu0 %v1968
        %v1970 = vpop.xlane.xlu0 %1969
        %v1971 = vmax.f32 %v1369, %v1371
        %1972 = vmax.xlane.f32.xlu0 %v1971
        %v1973 = vpop.xlane.xlu0 %1972
        %v1974 = vmax.f32 %v1375, %v1377
        %1975 = vmax.xlane.f32.xlu0 %v1974
        %v1976 = vpop.xlane.xlu0 %1975
        %v1977 = vmax.f32 %v1379, %v1381
        %1978 = vmax.xlane.f32.xlu0 %v1977
        %v1979 = vpop.xlane.xlu0 %1978
        %v1980 = vmax.f32 %v1385, %v1387
        %1981 = vmax.xlane.f32.xlu0 %v1980
        %v1982 = vpop.xlane.xlu0 %1981
        %v1983 = vmax.f32 %v1389, %v1391
        %1984 = vmax.xlane.f32.xlu0 %v1983
        %v1985 = vpop.xlane.xlu0 %1984
        %v1986 = vmax.f32 %v1395, %v1397
        %1987 = vmax.xlane.f32.xlu0 %v1986
        %v1988 = vpop.xlane.xlu0 %1987
        %v1989 = vmax.f32 %v1399, %v1401
        %1990 = vmax.xlane.f32.xlu0 %v1989
        %v1991 = vpop.xlane.xlu0 %1990
        %v1992 = vmax.f32 %v1405, %v1407
        %1993 = vmax.xlane.f32.xlu0 %v1992
        %v1994 = vpop.xlane.xlu0 %1993
        %v1995 = vmax.f32 %v1409, %v1411
        %1996 = vmax.xlane.f32.xlu0 %v1995
        %v1997 = vpop.xlane.xlu0 %1996
        %v1998 = vmax.f32 %v1415, %v1417
        %1999 = vmax.xlane.f32.xlu0 %v1998
        %v2000 = vpop.xlane.xlu0 %1999
        %v2001 = vmax.f32 %v1419, %v1421
        %2002 = vmax.xlane.f32.xlu0 %v2001
        %v2003 = vpop.xlane.xlu0 %2002
        %v2004 = vmax.f32 %v1425, %v1427
        %2005 = vmax.xlane.f32.xlu0 %v2004
        %v2006 = vpop.xlane.xlu0 %2005
        %v2007 = vmax.f32 %v1429, %v1431
        %2008 = vmax.xlane.f32.xlu0 %v2007
        %v2009 = vpop.xlane.xlu0 %2008
        %v2010 = vmax.f32 %v1435, %v1437
        %2011 = vmax.xlane.f32.xlu0 %v2010
        %v2012 = vpop.xlane.xlu0 %2011
        %v2013 = vmax.f32 %v1439, %v1441
        %2014 = vmax.xlane.f32.xlu0 %v2013
        %v2015 = vpop.xlane.xlu0 %2014
        %v2016 = vmax.f32 %v1445, %v1447
        %2017 = vmax.xlane.f32.xlu0 %v2016
        %v2018 = vpop.xlane.xlu0 %2017
        %v2019 = vmax.f32 %v1449, %v1451
        %2020 = vmax.xlane.f32.xlu0 %v2019
        %v2021 = vpop.xlane.xlu0 %2020
        %v2022 = vmax.f32 %v1455, %v1457
        %2023 = vmax.xlane.f32.xlu0 %v2022
        %v2024 = vpop.xlane.xlu0 %2023
        %v2025 = vmax.f32 %v1459, %v1461
        %2026 = vmax.xlane.f32.xlu0 %v2025
        %v2027 = vpop.xlane.xlu0 %2026
        %v2028 = vmax.f32 %v1465, %v1467
        %2029 = vmax.xlane.f32.xlu0 %v2028
        %v2030 = vpop.xlane.xlu0 %2029
        %v2031 = vmax.f32 %v1469, %v1471
        %2032 = vmax.xlane.f32.xlu0 %v2031
        %v2033 = vpop.xlane.xlu0 %2032
        %v2034 = vmax.f32 %v1588, %v1590
        %2035 = vmax.xlane.f32.xlu0 %v2034
        %v2036 = vpop.xlane.xlu0 %2035
        %v2037 = vmax.f32 %v1592, %v1594
        %2038 = vmax.xlane.f32.xlu0 %v2037
        %v2039 = vpop.xlane.xlu0 %2038
        %v2040 = vmax.f32 %v1598, %v1600
        %2041 = vmax.xlane.f32.xlu0 %v2040
        %v2042 = vpop.xlane.xlu0 %2041
        %v2043 = vmax.f32 %v1602, %v1604
        %2044 = vmax.xlane.f32.xlu0 %v2043
        %v2045 = vpop.xlane.xlu0 %2044
        %v2046 = vmax.f32 %v1608, %v1610
        %2047 = vmax.xlane.f32.xlu0 %v2046
        %v2048 = vpop.xlane.xlu0 %2047
        %v2049 = vmax.f32 %v1612, %v1614
        %2050 = vmax.xlane.f32.xlu0 %v2049
        %v2051 = vpop.xlane.xlu0 %2050
        %v2052 = vmax.f32 %v1618, %v1620
        %2053 = vmax.xlane.f32.xlu0 %v2052
        %v2054 = vpop.xlane.xlu0 %2053
        %v2055 = vmax.f32 %v1622, %v1624
        %2056 = vmax.xlane.f32.xlu0 %v2055
        %v2057 = vpop.xlane.xlu0 %2056
        %v2058 = vmax.f32 %v1628, %v1630
        %2059 = vmax.xlane.f32.xlu0 %v2058
        %v2060 = vpop.xlane.xlu0 %2059
        %v2061 = vmax.f32 %v1632, %v1634
        %2062 = vmax.xlane.f32.xlu0 %v2061
        %v2063 = vpop.xlane.xlu0 %2062
        %v2064 = vmax.f32 %v1638, %v1640
        %2065 = vmax.xlane.f32.xlu0 %v2064
        %v2066 = vpop.xlane.xlu0 %2065
        %v2067 = vmax.f32 %v1642, %v1644
        %2068 = vmax.xlane.f32.xlu0 %v2067
        %v2069 = vpop.xlane.xlu0 %2068
        %v2070 = vmax.f32 %v1648, %v1650
        %2071 = vmax.xlane.f32.xlu0 %v2070
        %v2072 = vpop.xlane.xlu0 %2071
        %v2073 = vmax.f32 %v1652, %v1654
        %2074 = vmax.xlane.f32.xlu0 %v2073
        %v2075 = vpop.xlane.xlu0 %2074
        %v2076 = vmax.f32 %v1658, %v1660
        %2077 = vmax.xlane.f32.xlu0 %v2076
        %v2078 = vpop.xlane.xlu0 %2077
        %v2079 = vmax.f32 %v1662, %v1664
        %2080 = vmax.xlane.f32.xlu0 %v2079
        %v2081 = vpop.xlane.xlu0 %2080
        %v2082 = vmax.f32 %v1668, %v1670
        %2083 = vmax.xlane.f32.xlu0 %v2082
        %v2084 = vpop.xlane.xlu0 %2083
        %v2085 = vmax.f32 %v1672, %v1674
        %2086 = vmax.xlane.f32.xlu0 %v2085
        %v2087 = vpop.xlane.xlu0 %2086
        %v2088 = vmax.f32 %v1678, %v1680
        %2089 = vmax.xlane.f32.xlu0 %v2088
        %v2090 = vpop.xlane.xlu0 %2089
        %v2091 = vmax.f32 %v1682, %v1684
        %2092 = vmax.xlane.f32.xlu0 %v2091
        %v2093 = vpop.xlane.xlu0 %2092
        %v2094 = vmax.f32 %v1688, %v1690
        %2095 = vmax.xlane.f32.xlu0 %v2094
        %v2096 = vpop.xlane.xlu0 %2095
        %v2097 = vmax.f32 %v1692, %v1694
        %2098 = vmax.xlane.f32.xlu0 %v2097
        %v2099 = vpop.xlane.xlu0 %2098
        %v2100 = vmax.f32 %v1698, %v1700
        %2101 = vmax.xlane.f32.xlu0 %v2100
        %v2102 = vpop.xlane.xlu0 %2101
        %v2103 = vmax.f32 %v1702, %v1704
        %2104 = vmax.xlane.f32.xlu0 %v2103
        %v2105 = vpop.xlane.xlu0 %2104
        %v2106 = vmax.f32 %v1708, %v1710
        %2107 = vmax.xlane.f32.xlu0 %v2106
        %v2108 = vpop.xlane.xlu0 %2107
        %v2109 = vmax.f32 %v1712, %v1714
        %2110 = vmax.xlane.f32.xlu0 %v2109
        %v2111 = vpop.xlane.xlu0 %2110
        %v2112 = vmax.f32 %v1718, %v1720
        %2113 = vmax.xlane.f32.xlu0 %v2112
        %v2114 = vpop.xlane.xlu0 %2113
        %v2115 = vmax.f32 %v1722, %v1724
        %2116 = vmax.xlane.f32.xlu0 %v2115
        %v2117 = vpop.xlane.xlu0 %2116
        %v2118 = vmax.f32 %v1728, %v1730
        %2119 = vmax.xlane.f32.xlu0 %v2118
        %v2120 = vpop.xlane.xlu0 %2119
        %v2121 = vmax.f32 %v1732, %v1734
        %2122 = vmax.xlane.f32.xlu0 %v2121
        %v2123 = vpop.xlane.xlu0 %2122
        %v2124 = vmax.f32 %v1738, %v1740
        %2125 = vmax.xlane.f32.xlu0 %v2124
        %v2126 = vpop.xlane.xlu0 %2125
        %v2127 = vmax.f32 %v1742, %v1744
        %2128 = vmax.xlane.f32.xlu0 %v2127
        %v2129 = vpop.xlane.xlu0 %2128
        %v2130 = vsub.f32 %v769, %v1748
        %v2131 = vsub.f32 %v771, %v1748
        %v2132 = vsub.f32 %v773, %v1751
        %v2133 = vsub.f32 %v775, %v1751
        %v2134 = vsub.f32 %v779, %v1754
        %v2135 = vsub.f32 %v781, %v1754
        %v2136 = vsub.f32 %v783, %v1757
        %v2137 = vsub.f32 %v785, %v1757
        %v2138 = vsub.f32 %v789, %v1760
        %v2139 = vsub.f32 %v791, %v1760
        %v2140 = vsub.f32 %v793, %v1763
        %v2141 = vsub.f32 %v795, %v1763
        %v2142 = vsub.f32 %v799, %v1766
        %v2143 = vsub.f32 %v801, %v1766
        %v2144 = vsub.f32 %v803, %v1769
        %v2145 = vsub.f32 %v805, %v1769
        %v2146 = vsub.f32 %v809, %v1772
        %v2147 = vsub.f32 %v811, %v1772
        %v2148 = vsub.f32 %v813, %v1775
        %v2149 = vsub.f32 %v815, %v1775
        %v2150 = vsub.f32 %v819, %v1778
        %v2151 = vsub.f32 %v821, %v1778
        %v2152 = vsub.f32 %v823, %v1781
        %v2153 = vsub.f32 %v825, %v1781
        %v2154 = vsub.f32 %v829, %v1784
        %v2155 = vsub.f32 %v831, %v1784
        %v2156 = vsub.f32 %v833, %v1787
        %v2157 = vsub.f32 %v835, %v1787
        %v2158 = vsub.f32 %v839, %v1790
        %v2159 = vsub.f32 %v841, %v1790
        %v2160 = vsub.f32 %v843, %v1793
        %v2161 = vsub.f32 %v845, %v1793
        %v2162 = vsub.f32 %v849, %v1796
        %v2163 = vsub.f32 %v851, %v1796
        %v2164 = vsub.f32 %v853, %v1799
        %v2165 = vsub.f32 %v855, %v1799
        %v2166 = vsub.f32 %v859, %v1802
        %v2167 = vsub.f32 %v861, %v1802
        %v2168 = vsub.f32 %v863, %v1805
        %v2169 = vsub.f32 %v865, %v1805
        %v2170 = vsub.f32 %v869, %v1808
        %v2171 = vsub.f32 %v871, %v1808
        %v2172 = vsub.f32 %v873, %v1811
        %v2173 = vsub.f32 %v875, %v1811
        %v2174 = vsub.f32 %v879, %v1814
        %v2175 = vsub.f32 %v881, %v1814
        %v2176 = vsub.f32 %v883, %v1817
        %v2177 = vsub.f32 %v885, %v1817
        %v2178 = vsub.f32 %v889, %v1820
        %v2179 = vsub.f32 %v891, %v1820
        %v2180 = vsub.f32 %v893, %v1823
        %v2181 = vsub.f32 %v895, %v1823
        %v2182 = vsub.f32 %v899, %v1826
        %v2183 = vsub.f32 %v901, %v1826
        %v2184 = vsub.f32 %v903, %v1829
        %v2185 = vsub.f32 %v905, %v1829
        %v2186 = vsub.f32 %v909, %v1832
        %v2187 = vsub.f32 %v911, %v1832
        %v2188 = vsub.f32 %v913, %v1835
        %v2189 = vsub.f32 %v915, %v1835
        %v2190 = vsub.f32 %v919, %v1838
        %v2191 = vsub.f32 %v921, %v1838
        %v2192 = vsub.f32 %v923, %v1841
        %v2193 = vsub.f32 %v925, %v1841
        %v2194 = vsub.f32 %v1042, %v1844
        %v2195 = vsub.f32 %v1044, %v1844
        %v2196 = vsub.f32 %v1046, %v1847
        %v2197 = vsub.f32 %v1048, %v1847
        %v2198 = vsub.f32 %v1052, %v1850
        %v2199 = vsub.f32 %v1054, %v1850
        %v2200 = vsub.f32 %v1056, %v1853
        %v2201 = vsub.f32 %v1058, %v1853
        %v2202 = vsub.f32 %v1062, %v1856
        %v2203 = vsub.f32 %v1064, %v1856
        %v2204 = vsub.f32 %v1066, %v1859
        %v2205 = vsub.f32 %v1068, %v1859
        %v2206 = vsub.f32 %v1072, %v1862
        %v2207 = vsub.f32 %v1074, %v1862
        %v2208 = vsub.f32 %v1076, %v1865
        %v2209 = vsub.f32 %v1078, %v1865
        %v2210 = vsub.f32 %v1082, %v1868
        %v2211 = vsub.f32 %v1084, %v1868
        %v2212 = vsub.f32 %v1086, %v1871
        %v2213 = vsub.f32 %v1088, %v1871
        %v2214 = vsub.f32 %v1092, %v1874
        %v2215 = vsub.f32 %v1094, %v1874
        %v2216 = vsub.f32 %v1096, %v1877
        %v2217 = vsub.f32 %v1098, %v1877
        %v2218 = vsub.f32 %v1102, %v1880
        %v2219 = vsub.f32 %v1104, %v1880
        %v2220 = vsub.f32 %v1106, %v1883
        %v2221 = vsub.f32 %v1108, %v1883
        %v2222 = vsub.f32 %v1112, %v1886
        %v2223 = vsub.f32 %v1114, %v1886
        %v2224 = vsub.f32 %v1116, %v1889
        %v2225 = vsub.f32 %v1118, %v1889
        %v2226 = vsub.f32 %v1122, %v1892
        %v2227 = vsub.f32 %v1124, %v1892
        %v2228 = vsub.f32 %v1126, %v1895
        %v2229 = vsub.f32 %v1128, %v1895
        %v2230 = vsub.f32 %v1132, %v1898
        %v2231 = vsub.f32 %v1134, %v1898
        %v2232 = vsub.f32 %v1136, %v1901
        %v2233 = vsub.f32 %v1138, %v1901
        %v2234 = vsub.f32 %v1142, %v1904
        %v2235 = vsub.f32 %v1144, %v1904
        %v2236 = vsub.f32 %v1146, %v1907
        %v2237 = vsub.f32 %v1148, %v1907
        %v2238 = vsub.f32 %v1152, %v1910
        %v2239 = vsub.f32 %v1154, %v1910
        %v2240 = vsub.f32 %v1156, %v1913
        %v2241 = vsub.f32 %v1158, %v1913
        %v2242 = vsub.f32 %v1162, %v1916
        %v2243 = vsub.f32 %v1164, %v1916
        %v2244 = vsub.f32 %v1166, %v1919
        %v2245 = vsub.f32 %v1168, %v1919
        %v2246 = vsub.f32 %v1172, %v1922
        %v2247 = vsub.f32 %v1174, %v1922
        %v2248 = vsub.f32 %v1176, %v1925
        %v2249 = vsub.f32 %v1178, %v1925
        %v2250 = vsub.f32 %v1182, %v1928
        %v2251 = vsub.f32 %v1184, %v1928
        %v2252 = vsub.f32 %v1186, %v1931
        %v2253 = vsub.f32 %v1188, %v1931
        %v2254 = vsub.f32 %v1192, %v1934
        %v2255 = vsub.f32 %v1194, %v1934
        %v2256 = vsub.f32 %v1196, %v1937
        %v2257 = vsub.f32 %v1198, %v1937
        %v2258 = vsub.f32 %v1315, %v1940
        %v2259 = vsub.f32 %v1317, %v1940
        %v2260 = vsub.f32 %v1319, %v1943
        %v2261 = vsub.f32 %v1321, %v1943
        %v2262 = vsub.f32 %v1325, %v1946
        %v2263 = vsub.f32 %v1327, %v1946
        %v2264 = vsub.f32 %v1329, %v1949
        %v2265 = vsub.f32 %v1331, %v1949
        %v2266 = vsub.f32 %v1335, %v1952
        %v2267 = vsub.f32 %v1337, %v1952
        %v2268 = vsub.f32 %v1339, %v1955
        %v2269 = vsub.f32 %v1341, %v1955
        %v2270 = vsub.f32 %v1345, %v1958
        %v2271 = vsub.f32 %v1347, %v1958
        %v2272 = vsub.f32 %v1349, %v1961
        %v2273 = vsub.f32 %v1351, %v1961
        %v2274 = vsub.f32 %v1355, %v1964
        %v2275 = vsub.f32 %v1357, %v1964
        %v2276 = vsub.f32 %v1359, %v1967
        %v2277 = vsub.f32 %v1361, %v1967
        %v2278 = vsub.f32 %v1365, %v1970
        %v2279 = vsub.f32 %v1367, %v1970
        %v2280 = vsub.f32 %v1369, %v1973
        %v2281 = vsub.f32 %v1371, %v1973
        %v2282 = vsub.f32 %v1375, %v1976
        %v2283 = vsub.f32 %v1377, %v1976
        %v2284 = vsub.f32 %v1379, %v1979
        %v2285 = vsub.f32 %v1381, %v1979
        %v2286 = vsub.f32 %v1385, %v1982
        %v2287 = vsub.f32 %v1387, %v1982
        %v2288 = vsub.f32 %v1389, %v1985
        %v2289 = vsub.f32 %v1391, %v1985
        %v2290 = vsub.f32 %v1395, %v1988
        %v2291 = vsub.f32 %v1397, %v1988
        %v2292 = vsub.f32 %v1399, %v1991
        %v2293 = vsub.f32 %v1401, %v1991
        %v2294 = vsub.f32 %v1405, %v1994
        %v2295 = vsub.f32 %v1407, %v1994
        %v2296 = vsub.f32 %v1409, %v1997
        %v2297 = vsub.f32 %v1411, %v1997
        %v2298 = vsub.f32 %v1415, %v2000
        %v2299 = vsub.f32 %v1417, %v2000
        %v2300 = vsub.f32 %v1419, %v2003
        %v2301 = vsub.f32 %v1421, %v2003
        %v2302 = vsub.f32 %v1425, %v2006
        %v2303 = vsub.f32 %v1427, %v2006
        %v2304 = vsub.f32 %v1429, %v2009
        %v2305 = vsub.f32 %v1431, %v2009
        %v2306 = vsub.f32 %v1435, %v2012
        %v2307 = vsub.f32 %v1437, %v2012
        %v2308 = vsub.f32 %v1439, %v2015
        %v2309 = vsub.f32 %v1441, %v2015
        %v2310 = vsub.f32 %v1445, %v2018
        %v2311 = vsub.f32 %v1447, %v2018
        %v2312 = vsub.f32 %v1449, %v2021
        %v2313 = vsub.f32 %v1451, %v2021
        %v2314 = vsub.f32 %v1455, %v2024
        %v2315 = vsub.f32 %v1457, %v2024
        %v2316 = vsub.f32 %v1459, %v2027
        %v2317 = vsub.f32 %v1461, %v2027
        %v2318 = vsub.f32 %v1465, %v2030
        %v2319 = vsub.f32 %v1467, %v2030
        %v2320 = vsub.f32 %v1469, %v2033
        %v2321 = vsub.f32 %v1471, %v2033
        %v2322 = vsub.f32 %v1588, %v2036
        %v2323 = vsub.f32 %v1590, %v2036
        %v2324 = vsub.f32 %v1592, %v2039
        %v2325 = vsub.f32 %v1594, %v2039
        %v2326 = vsub.f32 %v1598, %v2042
        %v2327 = vsub.f32 %v1600, %v2042
        %v2328 = vsub.f32 %v1602, %v2045
        %v2329 = vsub.f32 %v1604, %v2045
        %v2330 = vsub.f32 %v1608, %v2048
        %v2331 = vsub.f32 %v1610, %v2048
        %v2332 = vsub.f32 %v1612, %v2051
        %v2333 = vsub.f32 %v1614, %v2051
        %v2334 = vsub.f32 %v1618, %v2054
        %v2335 = vsub.f32 %v1620, %v2054
        %v2336 = vsub.f32 %v1622, %v2057
        %v2337 = vsub.f32 %v1624, %v2057
        %v2338 = vsub.f32 %v1628, %v2060
        %v2339 = vsub.f32 %v1630, %v2060
        %v2340 = vsub.f32 %v1632, %v2063
        %v2341 = vsub.f32 %v1634, %v2063
        %v2342 = vsub.f32 %v1638, %v2066
        %v2343 = vsub.f32 %v1640, %v2066
        %v2344 = vsub.f32 %v1642, %v2069
        %v2345 = vsub.f32 %v1644, %v2069
        %v2346 = vsub.f32 %v1648, %v2072
        %v2347 = vsub.f32 %v1650, %v2072
        %v2348 = vsub.f32 %v1652, %v2075
        %v2349 = vsub.f32 %v1654, %v2075
        %v2350 = vsub.f32 %v1658, %v2078
        %v2351 = vsub.f32 %v1660, %v2078
        %v2352 = vsub.f32 %v1662, %v2081
        %v2353 = vsub.f32 %v1664, %v2081
        %v2354 = vsub.f32 %v1668, %v2084
        %v2355 = vsub.f32 %v1670, %v2084
        %v2356 = vsub.f32 %v1672, %v2087
        %v2357 = vsub.f32 %v1674, %v2087
        %v2358 = vsub.f32 %v1678, %v2090
        %v2359 = vsub.f32 %v1680, %v2090
        %v2360 = vsub.f32 %v1682, %v2093
        %v2361 = vsub.f32 %v1684, %v2093
        %v2362 = vsub.f32 %v1688, %v2096
        %v2363 = vsub.f32 %v1690, %v2096
        %v2364 = vsub.f32 %v1692, %v2099
        %v2365 = vsub.f32 %v1694, %v2099
        %v2366 = vsub.f32 %v1698, %v2102
        %v2367 = vsub.f32 %v1700, %v2102
        %v2368 = vsub.f32 %v1702, %v2105
        %v2369 = vsub.f32 %v1704, %v2105
        %v2370 = vsub.f32 %v1708, %v2108
        %v2371 = vsub.f32 %v1710, %v2108
        %v2372 = vsub.f32 %v1712, %v2111
        %v2373 = vsub.f32 %v1714, %v2111
        %v2374 = vsub.f32 %v1718, %v2114
        %v2375 = vsub.f32 %v1720, %v2114
        %v2376 = vsub.f32 %v1722, %v2117
        %v2377 = vsub.f32 %v1724, %v2117
        %v2378 = vsub.f32 %v1728, %v2120
        %v2379 = vsub.f32 %v1730, %v2120
        %v2380 = vsub.f32 %v1732, %v2123
        %v2381 = vsub.f32 %v1734, %v2123
        %v2382 = vsub.f32 %v1738, %v2126
        %v2383 = vsub.f32 %v1740, %v2126
        %v2384 = vsub.f32 %v1742, %v2129
        %v2385 = vsub.f32 %v1744, %v2129
        %v2386 = vmul.f32 %v2130, 1.442695
        %v2387 = vpow.pop %v2386
        %v2388 = vmul.f32 %v2131, 1.442695
        %v2389 = vpow.pop %v2388
        %v2390 = vmul.f32 %v2132, 1.442695
        %v2391 = vpow.pop %v2390
        %v2392 = vmul.f32 %v2133, 1.442695
        %v2393 = vpow.pop %v2392
        %v2394 = vmul.f32 %v2134, 1.442695
        %v2395 = vpow.pop %v2394
        %v2396 = vmul.f32 %v2135, 1.442695
        %v2397 = vpow.pop %v2396
        %v2398 = vmul.f32 %v2136, 1.442695
        %v2399 = vpow.pop %v2398
        %v2400 = vmul.f32 %v2137, 1.442695
        %v2401 = vpow.pop %v2400
        %v2402 = vmul.f32 %v2138, 1.442695
        %v2403 = vpow.pop %v2402
        %v2404 = vmul.f32 %v2139, 1.442695
        %v2405 = vpow.pop %v2404
        %v2406 = vmul.f32 %v2140, 1.442695
        %v2407 = vpow.pop %v2406
        %v2408 = vmul.f32 %v2141, 1.442695
        %v2409 = vpow.pop %v2408
        %v2410 = vmul.f32 %v2142, 1.442695
        %v2411 = vpow.pop %v2410
        %v2412 = vmul.f32 %v2143, 1.442695
        %v2413 = vpow.pop %v2412
        %v2414 = vmul.f32 %v2144, 1.442695
        %v2415 = vpow.pop %v2414
        %v2416 = vmul.f32 %v2145, 1.442695
        %v2417 = vpow.pop %v2416
        %v2418 = vmul.f32 %v2146, 1.442695
        %v2419 = vpow.pop %v2418
        %v2420 = vmul.f32 %v2147, 1.442695
        %v2421 = vpow.pop %v2420
        %v2422 = vmul.f32 %v2148, 1.442695
        %v2423 = vpow.pop %v2422
        %v2424 = vmul.f32 %v2149, 1.442695
        %v2425 = vpow.pop %v2424
        %v2426 = vmul.f32 %v2150, 1.442695
        %v2427 = vpow.pop %v2426
        %v2428 = vmul.f32 %v2151, 1.442695
        %v2429 = vpow.pop %v2428
        %v2430 = vmul.f32 %v2152, 1.442695
        %v2431 = vpow.pop %v2430
        %v2432 = vmul.f32 %v2153, 1.442695
        %v2433 = vpow.pop %v2432
        %v2434 = vmul.f32 %v2154, 1.442695
        %v2435 = vpow.pop %v2434
        %v2436 = vmul.f32 %v2155, 1.442695
        %v2437 = vpow.pop %v2436
        %v2438 = vmul.f32 %v2156, 1.442695
        %v2439 = vpow.pop %v2438
        %v2440 = vmul.f32 %v2157, 1.442695
        %v2441 = vpow.pop %v2440
        %v2442 = vmul.f32 %v2158, 1.442695
        %v2443 = vpow.pop %v2442
        %v2444 = vmul.f32 %v2159, 1.442695
        %v2445 = vpow.pop %v2444
        %v2446 = vmul.f32 %v2160, 1.442695
        %v2447 = vpow.pop %v2446
        %v2448 = vmul.f32 %v2161, 1.442695
        %v2449 = vpow.pop %v2448
        %v2450 = vmul.f32 %v2162, 1.442695
        %v2451 = vpow.pop %v2450
        %v2452 = vmul.f32 %v2163, 1.442695
        %v2453 = vpow.pop %v2452
        %v2454 = vmul.f32 %v2164, 1.442695
        %v2455 = vpow.pop %v2454
        %v2456 = vmul.f32 %v2165, 1.442695
        %v2457 = vpow.pop %v2456
        %v2458 = vmul.f32 %v2166, 1.442695
        %v2459 = vpow.pop %v2458
        %v2460 = vmul.f32 %v2167, 1.442695
        %v2461 = vpow.pop %v2460
        %v2462 = vmul.f32 %v2168, 1.442695
        %v2463 = vpow.pop %v2462
        %v2464 = vmul.f32 %v2169, 1.442695
        %v2465 = vpow.pop %v2464
        %v2466 = vmul.f32 %v2170, 1.442695
        %v2467 = vpow.pop %v2466
        %v2468 = vmul.f32 %v2171, 1.442695
        %v2469 = vpow.pop %v2468
        %v2470 = vmul.f32 %v2172, 1.442695
        %v2471 = vpow.pop %v2470
        %v2472 = vmul.f32 %v2173, 1.442695
        %v2473 = vpow.pop %v2472
        %v2474 = vmul.f32 %v2174, 1.442695
        %v2475 = vpow.pop %v2474
        %v2476 = vmul.f32 %v2175, 1.442695
        %v2477 = vpow.pop %v2476
        %v2478 = vmul.f32 %v2176, 1.442695
        %v2479 = vpow.pop %v2478
        %v2480 = vmul.f32 %v2177, 1.442695
        %v2481 = vpow.pop %v2480
        %v2482 = vmul.f32 %v2178, 1.442695
        %v2483 = vpow.pop %v2482
        %v2484 = vmul.f32 %v2179, 1.442695
        %v2485 = vpow.pop %v2484
        %v2486 = vmul.f32 %v2180, 1.442695
        %v2487 = vpow.pop %v2486
        %v2488 = vmul.f32 %v2181, 1.442695
        %v2489 = vpow.pop %v2488
        %v2490 = vmul.f32 %v2182, 1.442695
        %v2491 = vpow.pop %v2490
        %v2492 = vmul.f32 %v2183, 1.442695
        %v2493 = vpow.pop %v2492
        %v2494 = vmul.f32 %v2184, 1.442695
        %v2495 = vpow.pop %v2494
        %v2496 = vmul.f32 %v2185, 1.442695
        %v2497 = vpow.pop %v2496
        %v2498 = vmul.f32 %v2186, 1.442695
        %v2499 = vpow.pop %v2498
        %v2500 = vmul.f32 %v2187, 1.442695
        %v2501 = vpow.pop %v2500
        %v2502 = vmul.f32 %v2188, 1.442695
        %v2503 = vpow.pop %v2502
        %v2504 = vmul.f32 %v2189, 1.442695
        %v2505 = vpow.pop %v2504
        %v2506 = vmul.f32 %v2190, 1.442695
        %v2507 = vpow.pop %v2506
        %v2508 = vmul.f32 %v2191, 1.442695
        %v2509 = vpow.pop %v2508
        %v2510 = vmul.f32 %v2192, 1.442695
        %v2511 = vpow.pop %v2510
        %v2512 = vmul.f32 %v2193, 1.442695
        %v2513 = vpow.pop %v2512
        %v2514 = vmul.f32 %v2194, 1.442695
        %v2515 = vpow.pop %v2514
        %v2516 = vmul.f32 %v2195, 1.442695
        %v2517 = vpow.pop %v2516
        %v2518 = vmul.f32 %v2196, 1.442695
        %v2519 = vpow.pop %v2518
        %v2520 = vmul.f32 %v2197, 1.442695
        %v2521 = vpow.pop %v2520
        %v2522 = vmul.f32 %v2198, 1.442695
        %v2523 = vpow.pop %v2522
        %v2524 = vmul.f32 %v2199, 1.442695
        %v2525 = vpow.pop %v2524
        %v2526 = vmul.f32 %v2200, 1.442695
        %v2527 = vpow.pop %v2526
        %v2528 = vmul.f32 %v2201, 1.442695
        %v2529 = vpow.pop %v2528
        %v2530 = vmul.f32 %v2202, 1.442695
        %v2531 = vpow.pop %v2530
        %v2532 = vmul.f32 %v2203, 1.442695
        %v2533 = vpow.pop %v2532
        %v2534 = vmul.f32 %v2204, 1.442695
        %v2535 = vpow.pop %v2534
        %v2536 = vmul.f32 %v2205, 1.442695
        %v2537 = vpow.pop %v2536
        %v2538 = vmul.f32 %v2206, 1.442695
        %v2539 = vpow.pop %v2538
        %v2540 = vmul.f32 %v2207, 1.442695
        %v2541 = vpow.pop %v2540
        %v2542 = vmul.f32 %v2208, 1.442695
        %v2543 = vpow.pop %v2542
        %v2544 = vmul.f32 %v2209, 1.442695
        %v2545 = vpow.pop %v2544
        %v2546 = vmul.f32 %v2210, 1.442695
        %v2547 = vpow.pop %v2546
        %v2548 = vmul.f32 %v2211, 1.442695
        %v2549 = vpow.pop %v2548
        %v2550 = vmul.f32 %v2212, 1.442695
        %v2551 = vpow.pop %v2550
        %v2552 = vmul.f32 %v2213, 1.442695
        %v2553 = vpow.pop %v2552
        %v2554 = vmul.f32 %v2214, 1.442695
        %v2555 = vpow.pop %v2554
        %v2556 = vmul.f32 %v2215, 1.442695
        %v2557 = vpow.pop %v2556
        %v2558 = vmul.f32 %v2216, 1.442695
        %v2559 = vpow.pop %v2558
        %v2560 = vmul.f32 %v2217, 1.442695
        %v2561 = vpow.pop %v2560
        %v2562 = vmul.f32 %v2218, 1.442695
        %v2563 = vpow.pop %v2562
        %v2564 = vmul.f32 %v2219, 1.442695
        %v2565 = vpow.pop %v2564
        %v2566 = vmul.f32 %v2220, 1.442695
        %v2567 = vpow.pop %v2566
        %v2568 = vmul.f32 %v2221, 1.442695
        %v2569 = vpow.pop %v2568
        %v2570 = vmul.f32 %v2222, 1.442695
        %v2571 = vpow.pop %v2570
        %v2572 = vmul.f32 %v2223, 1.442695
        %v2573 = vpow.pop %v2572
        %v2574 = vmul.f32 %v2224, 1.442695
        %v2575 = vpow.pop %v2574
        %v2576 = vmul.f32 %v2225, 1.442695
        %v2577 = vpow.pop %v2576
        %v2578 = vmul.f32 %v2226, 1.442695
        %v2579 = vpow.pop %v2578
        %v2580 = vmul.f32 %v2227, 1.442695
        %v2581 = vpow.pop %v2580
        %v2582 = vmul.f32 %v2228, 1.442695
        %v2583 = vpow.pop %v2582
        %v2584 = vmul.f32 %v2229, 1.442695
        %v2585 = vpow.pop %v2584
        %v2586 = vmul.f32 %v2230, 1.442695
        %v2587 = vpow.pop %v2586
        %v2588 = vmul.f32 %v2231, 1.442695
        %v2589 = vpow.pop %v2588
        %v2590 = vmul.f32 %v2232, 1.442695
        %v2591 = vpow.pop %v2590
        %v2592 = vmul.f32 %v2233, 1.442695
        %v2593 = vpow.pop %v2592
        %v2594 = vmul.f32 %v2234, 1.442695
        %v2595 = vpow.pop %v2594
        %v2596 = vmul.f32 %v2235, 1.442695
        %v2597 = vpow.pop %v2596
        %v2598 = vmul.f32 %v2236, 1.442695
        %v2599 = vpow.pop %v2598
        %v2600 = vmul.f32 %v2237, 1.442695
        %v2601 = vpow.pop %v2600
        %v2602 = vmul.f32 %v2238, 1.442695
        %v2603 = vpow.pop %v2602
        %v2604 = vmul.f32 %v2239, 1.442695
        %v2605 = vpow.pop %v2604
        %v2606 = vmul.f32 %v2240, 1.442695
        %v2607 = vpow.pop %v2606
        %v2608 = vmul.f32 %v2241, 1.442695
        %v2609 = vpow.pop %v2608
        %v2610 = vmul.f32 %v2242, 1.442695
        %v2611 = vpow.pop %v2610
        %v2612 = vmul.f32 %v2243, 1.442695
        %v2613 = vpow.pop %v2612
        %v2614 = vmul.f32 %v2244, 1.442695
        %v2615 = vpow.pop %v2614
        %v2616 = vmul.f32 %v2245, 1.442695
        %v2617 = vpow.pop %v2616
        %v2618 = vmul.f32 %v2246, 1.442695
        %v2619 = vpow.pop %v2618
        %v2620 = vmul.f32 %v2247, 1.442695
        %v2621 = vpow.pop %v2620
        %v2622 = vmul.f32 %v2248, 1.442695
        %v2623 = vpow.pop %v2622
        %v2624 = vmul.f32 %v2249, 1.442695
        %v2625 = vpow.pop %v2624
        %v2626 = vmul.f32 %v2250, 1.442695
        %v2627 = vpow.pop %v2626
        %v2628 = vmul.f32 %v2251, 1.442695
        %v2629 = vpow.pop %v2628
        %v2630 = vmul.f32 %v2252, 1.442695
        %v2631 = vpow.pop %v2630
        %v2632 = vmul.f32 %v2253, 1.442695
        %v2633 = vpow.pop %v2632
        %v2634 = vmul.f32 %v2254, 1.442695
        %v2635 = vpow.pop %v2634
        %v2636 = vmul.f32 %v2255, 1.442695
        %v2637 = vpow.pop %v2636
        %v2638 = vmul.f32 %v2256, 1.442695
        %v2639 = vpow.pop %v2638
        %v2640 = vmul.f32 %v2257, 1.442695
        %v2641 = vpow.pop %v2640
        %v2642 = vmul.f32 %v2258, 1.442695
        %v2643 = vpow.pop %v2642
        %v2644 = vmul.f32 %v2259, 1.442695
        %v2645 = vpow.pop %v2644
        %v2646 = vmul.f32 %v2260, 1.442695
        %v2647 = vpow.pop %v2646
        %v2648 = vmul.f32 %v2261, 1.442695
        %v2649 = vpow.pop %v2648
        %v2650 = vmul.f32 %v2262, 1.442695
        %v2651 = vpow.pop %v2650
        %v2652 = vmul.f32 %v2263, 1.442695
        %v2653 = vpow.pop %v2652
        %v2654 = vmul.f32 %v2264, 1.442695
        %v2655 = vpow.pop %v2654
        %v2656 = vmul.f32 %v2265, 1.442695
        %v2657 = vpow.pop %v2656
        %v2658 = vmul.f32 %v2266, 1.442695
        %v2659 = vpow.pop %v2658
        %v2660 = vmul.f32 %v2267, 1.442695
        %v2661 = vpow.pop %v2660
        %v2662 = vmul.f32 %v2268, 1.442695
        %v2663 = vpow.pop %v2662
        %v2664 = vmul.f32 %v2269, 1.442695
        %v2665 = vpow.pop %v2664
        %v2666 = vmul.f32 %v2270, 1.442695
        %v2667 = vpow.pop %v2666
        %v2668 = vmul.f32 %v2271, 1.442695
        %v2669 = vpow.pop %v2668
        %v2670 = vmul.f32 %v2272, 1.442695
        %v2671 = vpow.pop %v2670
        %v2672 = vmul.f32 %v2273, 1.442695
        %v2673 = vpow.pop %v2672
        %v2674 = vmul.f32 %v2274, 1.442695
        %v2675 = vpow.pop %v2674
        %v2676 = vmul.f32 %v2275, 1.442695
        %v2677 = vpow.pop %v2676
        %v2678 = vmul.f32 %v2276, 1.442695
        %v2679 = vpow.pop %v2678
        %v2680 = vmul.f32 %v2277, 1.442695
        %v2681 = vpow.pop %v2680
        %v2682 = vmul.f32 %v2278, 1.442695
        %v2683 = vpow.pop %v2682
        %v2684 = vmul.f32 %v2279, 1.442695
        %v2685 = vpow.pop %v2684
        %v2686 = vmul.f32 %v2280, 1.442695
        %v2687 = vpow.pop %v2686
        %v2688 = vmul.f32 %v2281, 1.442695
        %v2689 = vpow.pop %v2688
        %v2690 = vmul.f32 %v2282, 1.442695
        %v2691 = vpow.pop %v2690
        %v2692 = vmul.f32 %v2283, 1.442695
        %v2693 = vpow.pop %v2692
        %v2694 = vmul.f32 %v2284, 1.442695
        %v2695 = vpow.pop %v2694
        %v2696 = vmul.f32 %v2285, 1.442695
        %v2697 = vpow.pop %v2696
        %v2698 = vmul.f32 %v2286, 1.442695
        %v2699 = vpow.pop %v2698
        %v2700 = vmul.f32 %v2287, 1.442695
        %v2701 = vpow.pop %v2700
        %v2702 = vmul.f32 %v2288, 1.442695
        %v2703 = vpow.pop %v2702
        %v2704 = vmul.f32 %v2289, 1.442695
        %v2705 = vpow.pop %v2704
        %v2706 = vmul.f32 %v2290, 1.442695
        %v2707 = vpow.pop %v2706
        %v2708 = vmul.f32 %v2291, 1.442695
        %v2709 = vpow.pop %v2708
        %v2710 = vmul.f32 %v2292, 1.442695
        %v2711 = vpow.pop %v2710
        %v2712 = vmul.f32 %v2293, 1.442695
        %v2713 = vpow.pop %v2712
        %v2714 = vmul.f32 %v2294, 1.442695
        %v2715 = vpow.pop %v2714
        %v2716 = vmul.f32 %v2295, 1.442695
        %v2717 = vpow.pop %v2716
        %v2718 = vmul.f32 %v2296, 1.442695
        %v2719 = vpow.pop %v2718
        %v2720 = vmul.f32 %v2297, 1.442695
        %v2721 = vpow.pop %v2720
        %v2722 = vmul.f32 %v2298, 1.442695
        %v2723 = vpow.pop %v2722
        %v2724 = vmul.f32 %v2299, 1.442695
        %v2725 = vpow.pop %v2724
        %v2726 = vmul.f32 %v2300, 1.442695
        %v2727 = vpow.pop %v2726
        %v2728 = vmul.f32 %v2301, 1.442695
        %v2729 = vpow.pop %v2728
        %v2730 = vmul.f32 %v2302, 1.442695
        %v2731 = vpow.pop %v2730
        %v2732 = vmul.f32 %v2303, 1.442695
        %v2733 = vpow.pop %v2732
        %v2734 = vmul.f32 %v2304, 1.442695
        %v2735 = vpow.pop %v2734
        %v2736 = vmul.f32 %v2305, 1.442695
        %v2737 = vpow.pop %v2736
        %v2738 = vmul.f32 %v2306, 1.442695
        %v2739 = vpow.pop %v2738
        %v2740 = vmul.f32 %v2307, 1.442695
        %v2741 = vpow.pop %v2740
        %v2742 = vmul.f32 %v2308, 1.442695
        %v2743 = vpow.pop %v2742
        %v2744 = vmul.f32 %v2309, 1.442695
        %v2745 = vpow.pop %v2744
        %v2746 = vmul.f32 %v2310, 1.442695
        %v2747 = vpow.pop %v2746
        %v2748 = vmul.f32 %v2311, 1.442695
        %v2749 = vpow.pop %v2748
        %v2750 = vmul.f32 %v2312, 1.442695
        %v2751 = vpow.pop %v2750
        %v2752 = vmul.f32 %v2313, 1.442695
        %v2753 = vpow.pop %v2752
        %v2754 = vmul.f32 %v2314, 1.442695
        %v2755 = vpow.pop %v2754
        %v2756 = vmul.f32 %v2315, 1.442695
        %v2757 = vpow.pop %v2756
        %v2758 = vmul.f32 %v2316, 1.442695
        %v2759 = vpow.pop %v2758
        %v2760 = vmul.f32 %v2317, 1.442695
        %v2761 = vpow.pop %v2760
        %v2762 = vmul.f32 %v2318, 1.442695
        %v2763 = vpow.pop %v2762
        %v2764 = vmul.f32 %v2319, 1.442695
        %v2765 = vpow.pop %v2764
        %v2766 = vmul.f32 %v2320, 1.442695
        %v2767 = vpow.pop %v2766
        %v2768 = vmul.f32 %v2321, 1.442695
        %v2769 = vpow.pop %v2768
        %v2770 = vmul.f32 %v2322, 1.442695
        %v2771 = vpow.pop %v2770
        %v2772 = vmul.f32 %v2323, 1.442695
        %v2773 = vpow.pop %v2772
        %v2774 = vmul.f32 %v2324, 1.442695
        %v2775 = vpow.pop %v2774
        %v2776 = vmul.f32 %v2325, 1.442695
        %v2777 = vpow.pop %v2776
        %v2778 = vmul.f32 %v2326, 1.442695
        %v2779 = vpow.pop %v2778
        %v2780 = vmul.f32 %v2327, 1.442695
        %v2781 = vpow.pop %v2780
        %v2782 = vmul.f32 %v2328, 1.442695
        %v2783 = vpow.pop %v2782
        %v2784 = vmul.f32 %v2329, 1.442695
        %v2785 = vpow.pop %v2784
        %v2786 = vmul.f32 %v2330, 1.442695
        %v2787 = vpow.pop %v2786
        %v2788 = vmul.f32 %v2331, 1.442695
        %v2789 = vpow.pop %v2788
        %v2790 = vmul.f32 %v2332, 1.442695
        %v2791 = vpow.pop %v2790
        %v2792 = vmul.f32 %v2333, 1.442695
        %v2793 = vpow.pop %v2792
        %v2794 = vmul.f32 %v2334, 1.442695
        %v2795 = vpow.pop %v2794
        %v2796 = vmul.f32 %v2335, 1.442695
        %v2797 = vpow.pop %v2796
        %v2798 = vmul.f32 %v2336, 1.442695
        %v2799 = vpow.pop %v2798
        %v2800 = vmul.f32 %v2337, 1.442695
        %v2801 = vpow.pop %v2800
        %v2802 = vmul.f32 %v2338, 1.442695
        %v2803 = vpow.pop %v2802
        %v2804 = vmul.f32 %v2339, 1.442695
        %v2805 = vpow.pop %v2804
        %v2806 = vmul.f32 %v2340, 1.442695
        %v2807 = vpow.pop %v2806
        %v2808 = vmul.f32 %v2341, 1.442695
        %v2809 = vpow.pop %v2808
        %v2810 = vmul.f32 %v2342, 1.442695
        %v2811 = vpow.pop %v2810
        %v2812 = vmul.f32 %v2343, 1.442695
        %v2813 = vpow.pop %v2812
        %v2814 = vmul.f32 %v2344, 1.442695
        %v2815 = vpow.pop %v2814
        %v2816 = vmul.f32 %v2345, 1.442695
        %v2817 = vpow.pop %v2816
        %v2818 = vmul.f32 %v2346, 1.442695
        %v2819 = vpow.pop %v2818
        %v2820 = vmul.f32 %v2347, 1.442695
        %v2821 = vpow.pop %v2820
        %v2822 = vmul.f32 %v2348, 1.442695
        %v2823 = vpow.pop %v2822
        %v2824 = vmul.f32 %v2349, 1.442695
        %v2825 = vpow.pop %v2824
        %v2826 = vmul.f32 %v2350, 1.442695
        %v2827 = vpow.pop %v2826
        %v2828 = vmul.f32 %v2351, 1.442695
        %v2829 = vpow.pop %v2828
        %v2830 = vmul.f32 %v2352, 1.442695
        %v2831 = vpow.pop %v2830
        %v2832 = vmul.f32 %v2353, 1.442695
        %v2833 = vpow.pop %v2832
        %v2834 = vmul.f32 %v2354, 1.442695
        %v2835 = vpow.pop %v2834
        %v2836 = vmul.f32 %v2355, 1.442695
        %v2837 = vpow.pop %v2836
        %v2838 = vmul.f32 %v2356, 1.442695
        %v2839 = vpow.pop %v2838
        %v2840 = vmul.f32 %v2357, 1.442695
        %v2841 = vpow.pop %v2840
        %v2842 = vmul.f32 %v2358, 1.442695
        %v2843 = vpow.pop %v2842
        %v2844 = vmul.f32 %v2359, 1.442695
        %v2845 = vpow.pop %v2844
        %v2846 = vmul.f32 %v2360, 1.442695
        %v2847 = vpow.pop %v2846
        %v2848 = vmul.f32 %v2361, 1.442695
        %v2849 = vpow.pop %v2848
        %v2850 = vmul.f32 %v2362, 1.442695
        %v2851 = vpow.pop %v2850
        %v2852 = vmul.f32 %v2363, 1.442695
        %v2853 = vpow.pop %v2852
        %v2854 = vmul.f32 %v2364, 1.442695
        %v2855 = vpow.pop %v2854
        %v2856 = vmul.f32 %v2365, 1.442695
        %v2857 = vpow.pop %v2856
        %v2858 = vmul.f32 %v2366, 1.442695
        %v2859 = vpow.pop %v2858
        %v2860 = vmul.f32 %v2367, 1.442695
        %v2861 = vpow.pop %v2860
        %v2862 = vmul.f32 %v2368, 1.442695
        %v2863 = vpow.pop %v2862
        %v2864 = vmul.f32 %v2369, 1.442695
        %v2865 = vpow.pop %v2864
        %v2866 = vmul.f32 %v2370, 1.442695
        %v2867 = vpow.pop %v2866
        %v2868 = vmul.f32 %v2371, 1.442695
        %v2869 = vpow.pop %v2868
        %v2870 = vmul.f32 %v2372, 1.442695
        %v2871 = vpow.pop %v2870
        %v2872 = vmul.f32 %v2373, 1.442695
        %v2873 = vpow.pop %v2872
        %v2874 = vmul.f32 %v2374, 1.442695
        %v2875 = vpow.pop %v2874
        %v2876 = vmul.f32 %v2375, 1.442695
        %v2877 = vpow.pop %v2876
        %v2878 = vmul.f32 %v2376, 1.442695
        %v2879 = vpow.pop %v2878
        %v2880 = vmul.f32 %v2377, 1.442695
        %v2881 = vpow.pop %v2880
        %v2882 = vmul.f32 %v2378, 1.442695
        %v2883 = vpow.pop %v2882
        %v2884 = vmul.f32 %v2379, 1.442695
        %v2885 = vpow.pop %v2884
        %v2886 = vmul.f32 %v2380, 1.442695
        %v2887 = vpow.pop %v2886
        %v2888 = vmul.f32 %v2381, 1.442695
        %v2889 = vpow.pop %v2888
        %v2890 = vmul.f32 %v2382, 1.442695
        %v2891 = vpow.pop %v2890
        %v2892 = vmul.f32 %v2383, 1.442695
        %v2893 = vpow.pop %v2892
        %v2894 = vmul.f32 %v2384, 1.442695
        %v2895 = vpow.pop %v2894
        %v2896 = vmul.f32 %v2385, 1.442695
        %v2897 = vpow.pop %v2896
        %v2898 = vadd.f32 %v2387, %v2389
        %2899 = vadd.xlane.f32.xlu0 %v2898
        %v2900 = vpop.xlane.xlu0 %2899
        %v2901 = vadd.f32 %v2391, %v2393
        %2902 = vadd.xlane.f32.xlu0 %v2901
        %v2903 = vpop.xlane.xlu0 %2902
        %v2904 = vadd.f32 %v2395, %v2397
        %2905 = vadd.xlane.f32.xlu0 %v2904
        %v2906 = vpop.xlane.xlu0 %2905
        %v2907 = vadd.f32 %v2399, %v2401
        %2908 = vadd.xlane.f32.xlu0 %v2907
        %v2909 = vpop.xlane.xlu0 %2908
        %v2910 = vadd.f32 %v2403, %v2405
        %2911 = vadd.xlane.f32.xlu0 %v2910
        %v2912 = vpop.xlane.xlu0 %2911
        %v2913 = vadd.f32 %v2407, %v2409
        %2914 = vadd.xlane.f32.xlu0 %v2913
        %v2915 = vpop.xlane.xlu0 %2914
        %v2916 = vadd.f32 %v2411, %v2413
        %2917 = vadd.xlane.f32.xlu0 %v2916
        %v2918 = vpop.xlane.xlu0 %2917
        %v2919 = vadd.f32 %v2415, %v2417
        %2920 = vadd.xlane.f32.xlu0 %v2919
        %v2921 = vpop.xlane.xlu0 %2920
        %v2922 = vadd.f32 %v2419, %v2421
        %2923 = vadd.xlane.f32.xlu0 %v2922
        %v2924 = vpop.xlane.xlu0 %2923
        %v2925 = vadd.f32 %v2423, %v2425
        %2926 = vadd.xlane.f32.xlu0 %v2925
        %v2927 = vpop.xlane.xlu0 %2926
        %v2928 = vadd.f32 %v2427, %v2429
        %2929 = vadd.xlane.f32.xlu0 %v2928
        %v2930 = vpop.xlane.xlu0 %2929
        %v2931 = vadd.f32 %v2431, %v2433
        %2932 = vadd.xlane.f32.xlu0 %v2931
        %v2933 = vpop.xlane.xlu0 %2932
        %v2934 = vadd.f32 %v2435, %v2437
        %2935 = vadd.xlane.f32.xlu0 %v2934
        %v2936 = vpop.xlane.xlu0 %2935
        %v2937 = vadd.f32 %v2439, %v2441
        %2938 = vadd.xlane.f32.xlu0 %v2937
        %v2939 = vpop.xlane.xlu0 %2938
        %v2940 = vadd.f32 %v2443, %v2445
        %2941 = vadd.xlane.f32.xlu0 %v2940
        %v2942 = vpop.xlane.xlu0 %2941
        %v2943 = vadd.f32 %v2447, %v2449
        %2944 = vadd.xlane.f32.xlu0 %v2943
        %v2945 = vpop.xlane.xlu0 %2944
        %v2946 = vadd.f32 %v2451, %v2453
        %2947 = vadd.xlane.f32.xlu0 %v2946
        %v2948 = vpop.xlane.xlu0 %2947
        %v2949 = vadd.f32 %v2455, %v2457
        %2950 = vadd.xlane.f32.xlu0 %v2949
        %v2951 = vpop.xlane.xlu0 %2950
        %v2952 = vadd.f32 %v2459, %v2461
        %2953 = vadd.xlane.f32.xlu0 %v2952
        %v2954 = vpop.xlane.xlu0 %2953
        %v2955 = vadd.f32 %v2463, %v2465
        %2956 = vadd.xlane.f32.xlu0 %v2955
        %v2957 = vpop.xlane.xlu0 %2956
        %v2958 = vadd.f32 %v2467, %v2469
        %2959 = vadd.xlane.f32.xlu0 %v2958
        %v2960 = vpop.xlane.xlu0 %2959
        %v2961 = vadd.f32 %v2471, %v2473
        %2962 = vadd.xlane.f32.xlu0 %v2961
        %v2963 = vpop.xlane.xlu0 %2962
        %v2964 = vadd.f32 %v2475, %v2477
        %2965 = vadd.xlane.f32.xlu0 %v2964
        %v2966 = vpop.xlane.xlu0 %2965
        %v2967 = vadd.f32 %v2479, %v2481
        %2968 = vadd.xlane.f32.xlu0 %v2967
        %v2969 = vpop.xlane.xlu0 %2968
        %v2970 = vadd.f32 %v2483, %v2485
        %2971 = vadd.xlane.f32.xlu0 %v2970
        %v2972 = vpop.xlane.xlu0 %2971
        %v2973 = vadd.f32 %v2487, %v2489
        %2974 = vadd.xlane.f32.xlu0 %v2973
        %v2975 = vpop.xlane.xlu0 %2974
        %v2976 = vadd.f32 %v2491, %v2493
        %2977 = vadd.xlane.f32.xlu0 %v2976
        %v2978 = vpop.xlane.xlu0 %2977
        %v2979 = vadd.f32 %v2495, %v2497
        %2980 = vadd.xlane.f32.xlu0 %v2979
        %v2981 = vpop.xlane.xlu0 %2980
        %v2982 = vadd.f32 %v2499, %v2501
        %2983 = vadd.xlane.f32.xlu0 %v2982
        %v2984 = vpop.xlane.xlu0 %2983
        %v2985 = vadd.f32 %v2503, %v2505
        %2986 = vadd.xlane.f32.xlu0 %v2985
        %v2987 = vpop.xlane.xlu0 %2986
        %v2988 = vadd.f32 %v2507, %v2509
        %2989 = vadd.xlane.f32.xlu0 %v2988
        %v2990 = vpop.xlane.xlu0 %2989
        %v2991 = vadd.f32 %v2511, %v2513
        %2992 = vadd.xlane.f32.xlu0 %v2991
        %v2993 = vpop.xlane.xlu0 %2992
        %v2994 = vadd.f32 %v2515, %v2517
        %2995 = vadd.xlane.f32.xlu0 %v2994
        %v2996 = vpop.xlane.xlu0 %2995
        %v2997 = vadd.f32 %v2519, %v2521
        %2998 = vadd.xlane.f32.xlu0 %v2997
        %v2999 = vpop.xlane.xlu0 %2998
        %v3000 = vadd.f32 %v2523, %v2525
        %3001 = vadd.xlane.f32.xlu0 %v3000
        %v3002 = vpop.xlane.xlu0 %3001
        %v3003 = vadd.f32 %v2527, %v2529
        %3004 = vadd.xlane.f32.xlu0 %v3003
        %v3005 = vpop.xlane.xlu0 %3004
        %v3006 = vadd.f32 %v2531, %v2533
        %3007 = vadd.xlane.f32.xlu0 %v3006
        %v3008 = vpop.xlane.xlu0 %3007
        %v3009 = vadd.f32 %v2535, %v2537
        %3010 = vadd.xlane.f32.xlu0 %v3009
        %v3011 = vpop.xlane.xlu0 %3010
        %v3012 = vadd.f32 %v2539, %v2541
        %3013 = vadd.xlane.f32.xlu0 %v3012
        %v3014 = vpop.xlane.xlu0 %3013
        %v3015 = vadd.f32 %v2543, %v2545
        %3016 = vadd.xlane.f32.xlu0 %v3015
        %v3017 = vpop.xlane.xlu0 %3016
        %v3018 = vadd.f32 %v2547, %v2549
        %3019 = vadd.xlane.f32.xlu0 %v3018
        %v3020 = vpop.xlane.xlu0 %3019
        %v3021 = vadd.f32 %v2551, %v2553
        %3022 = vadd.xlane.f32.xlu0 %v3021
        %v3023 = vpop.xlane.xlu0 %3022
        %v3024 = vadd.f32 %v2555, %v2557
        %3025 = vadd.xlane.f32.xlu0 %v3024
        %v3026 = vpop.xlane.xlu0 %3025
        %v3027 = vadd.f32 %v2559, %v2561
        %3028 = vadd.xlane.f32.xlu0 %v3027
        %v3029 = vpop.xlane.xlu0 %3028
        %v3030 = vadd.f32 %v2563, %v2565
        %3031 = vadd.xlane.f32.xlu0 %v3030
        %v3032 = vpop.xlane.xlu0 %3031
        %v3033 = vadd.f32 %v2567, %v2569
        %3034 = vadd.xlane.f32.xlu0 %v3033
        %v3035 = vpop.xlane.xlu0 %3034
        %v3036 = vadd.f32 %v2571, %v2573
        %3037 = vadd.xlane.f32.xlu0 %v3036
        %v3038 = vpop.xlane.xlu0 %3037
        %v3039 = vadd.f32 %v2575, %v2577
        %3040 = vadd.xlane.f32.xlu0 %v3039
        %v3041 = vpop.xlane.xlu0 %3040
        %v3042 = vadd.f32 %v2579, %v2581
        %3043 = vadd.xlane.f32.xlu0 %v3042
        %v3044 = vpop.xlane.xlu0 %3043
        %v3045 = vadd.f32 %v2583, %v2585
        %3046 = vadd.xlane.f32.xlu0 %v3045
        %v3047 = vpop.xlane.xlu0 %3046
        %v3048 = vadd.f32 %v2587, %v2589
        %3049 = vadd.xlane.f32.xlu0 %v3048
        %v3050 = vpop.xlane.xlu0 %3049
        %v3051 = vadd.f32 %v2591, %v2593
        %3052 = vadd.xlane.f32.xlu0 %v3051
        %v3053 = vpop.xlane.xlu0 %3052
        %v3054 = vadd.f32 %v2595, %v2597
        %3055 = vadd.xlane.f32.xlu0 %v3054
        %v3056 = vpop.xlane.xlu0 %3055
        %v3057 = vadd.f32 %v2599, %v2601
        %3058 = vadd.xlane.f32.xlu0 %v3057
        %v3059 = vpop.xlane.xlu0 %3058
        %v3060 = vadd.f32 %v2603, %v2605
        %3061 = vadd.xlane.f32.xlu0 %v3060
        %v3062 = vpop.xlane.xlu0 %3061
        %v3063 = vadd.f32 %v2607, %v2609
        %3064 = vadd.xlane.f32.xlu0 %v3063
        %v3065 = vpop.xlane.xlu0 %3064
        %v3066 = vadd.f32 %v2611, %v2613
        %3067 = vadd.xlane.f32.xlu0 %v3066
        %v3068 = vpop.xlane.xlu0 %3067
        %v3069 = vadd.f32 %v2615, %v2617
        %3070 = vadd.xlane.f32.xlu0 %v3069
        %v3071 = vpop.xlane.xlu0 %3070
        %v3072 = vadd.f32 %v2619, %v2621
        %3073 = vadd.xlane.f32.xlu0 %v3072
        %v3074 = vpop.xlane.xlu0 %3073
        %v3075 = vadd.f32 %v2623, %v2625
        %3076 = vadd.xlane.f32.xlu0 %v3075
        %v3077 = vpop.xlane.xlu0 %3076
        %v3078 = vadd.f32 %v2627, %v2629
        %3079 = vadd.xlane.f32.xlu0 %v3078
        %v3080 = vpop.xlane.xlu0 %3079
        %v3081 = vadd.f32 %v2631, %v2633
        %3082 = vadd.xlane.f32.xlu0 %v3081
        %v3083 = vpop.xlane.xlu0 %3082
        %v3084 = vadd.f32 %v2635, %v2637
        %3085 = vadd.xlane.f32.xlu0 %v3084
        %v3086 = vpop.xlane.xlu0 %3085
        %v3087 = vadd.f32 %v2639, %v2641
        %3088 = vadd.xlane.f32.xlu0 %v3087
        %v3089 = vpop.xlane.xlu0 %3088
        %v3090 = vadd.f32 %v2643, %v2645
        %3091 = vadd.xlane.f32.xlu0 %v3090
        %v3092 = vpop.xlane.xlu0 %3091
        %v3093 = vadd.f32 %v2647, %v2649
        %3094 = vadd.xlane.f32.xlu0 %v3093
        %v3095 = vpop.xlane.xlu0 %3094
        %v3096 = vadd.f32 %v2651, %v2653
        %3097 = vadd.xlane.f32.xlu0 %v3096
        %v3098 = vpop.xlane.xlu0 %3097
        %v3099 = vadd.f32 %v2655, %v2657
        %3100 = vadd.xlane.f32.xlu0 %v3099
        %v3101 = vpop.xlane.xlu0 %3100
        %v3102 = vadd.f32 %v2659, %v2661
        %3103 = vadd.xlane.f32.xlu0 %v3102
        %v3104 = vpop.xlane.xlu0 %3103
        %v3105 = vadd.f32 %v2663, %v2665
        %3106 = vadd.xlane.f32.xlu0 %v3105
        %v3107 = vpop.xlane.xlu0 %3106
        %v3108 = vadd.f32 %v2667, %v2669
        %3109 = vadd.xlane.f32.xlu0 %v3108
        %v3110 = vpop.xlane.xlu0 %3109
        %v3111 = vadd.f32 %v2671, %v2673
        %3112 = vadd.xlane.f32.xlu0 %v3111
        %v3113 = vpop.xlane.xlu0 %3112
        %v3114 = vadd.f32 %v2675, %v2677
        %3115 = vadd.xlane.f32.xlu0 %v3114
        %v3116 = vpop.xlane.xlu0 %3115
        %v3117 = vadd.f32 %v2679, %v2681
        %3118 = vadd.xlane.f32.xlu0 %v3117
        %v3119 = vpop.xlane.xlu0 %3118
        %v3120 = vadd.f32 %v2683, %v2685
        %3121 = vadd.xlane.f32.xlu0 %v3120
        %v3122 = vpop.xlane.xlu0 %3121
        %v3123 = vadd.f32 %v2687, %v2689
        %3124 = vadd.xlane.f32.xlu0 %v3123
        %v3125 = vpop.xlane.xlu0 %3124
        %v3126 = vadd.f32 %v2691, %v2693
        %3127 = vadd.xlane.f32.xlu0 %v3126
        %v3128 = vpop.xlane.xlu0 %3127
        %v3129 = vadd.f32 %v2695, %v2697
        %3130 = vadd.xlane.f32.xlu0 %v3129
        %v3131 = vpop.xlane.xlu0 %3130
        %v3132 = vadd.f32 %v2699, %v2701
        %3133 = vadd.xlane.f32.xlu0 %v3132
        %v3134 = vpop.xlane.xlu0 %3133
        %v3135 = vadd.f32 %v2703, %v2705
        %3136 = vadd.xlane.f32.xlu0 %v3135
        %v3137 = vpop.xlane.xlu0 %3136
        %v3138 = vadd.f32 %v2707, %v2709
        %3139 = vadd.xlane.f32.xlu0 %v3138
        %v3140 = vpop.xlane.xlu0 %3139
        %v3141 = vadd.f32 %v2711, %v2713
        %3142 = vadd.xlane.f32.xlu0 %v3141
        %v3143 = vpop.xlane.xlu0 %3142
        %v3144 = vadd.f32 %v2715, %v2717
        %3145 = vadd.xlane.f32.xlu0 %v3144
        %v3146 = vpop.xlane.xlu0 %3145
        %v3147 = vadd.f32 %v2719, %v2721
        %3148 = vadd.xlane.f32.xlu0 %v3147
        %v3149 = vpop.xlane.xlu0 %3148
        %v3150 = vadd.f32 %v2723, %v2725
        %3151 = vadd.xlane.f32.xlu0 %v3150
        %v3152 = vpop.xlane.xlu0 %3151
        %v3153 = vadd.f32 %v2727, %v2729
        %3154 = vadd.xlane.f32.xlu0 %v3153
        %v3155 = vpop.xlane.xlu0 %3154
        %v3156 = vadd.f32 %v2731, %v2733
        %3157 = vadd.xlane.f32.xlu0 %v3156
        %v3158 = vpop.xlane.xlu0 %3157
        %v3159 = vadd.f32 %v2735, %v2737
        %3160 = vadd.xlane.f32.xlu0 %v3159
        %v3161 = vpop.xlane.xlu0 %3160
        %v3162 = vadd.f32 %v2739, %v2741
        %3163 = vadd.xlane.f32.xlu0 %v3162
        %v3164 = vpop.xlane.xlu0 %3163
        %v3165 = vadd.f32 %v2743, %v2745
        %3166 = vadd.xlane.f32.xlu0 %v3165
        %v3167 = vpop.xlane.xlu0 %3166
        %v3168 = vadd.f32 %v2747, %v2749
        %3169 = vadd.xlane.f32.xlu0 %v3168
        %v3170 = vpop.xlane.xlu0 %3169
        %v3171 = vadd.f32 %v2751, %v2753
        %3172 = vadd.xlane.f32.xlu0 %v3171
        %v3173 = vpop.xlane.xlu0 %3172
        %v3174 = vadd.f32 %v2755, %v2757
        %3175 = vadd.xlane.f32.xlu0 %v3174
        %v3176 = vpop.xlane.xlu0 %3175
        %v3177 = vadd.f32 %v2759, %v2761
        %3178 = vadd.xlane.f32.xlu0 %v3177
        %v3179 = vpop.xlane.xlu0 %3178
        %v3180 = vadd.f32 %v2763, %v2765
        %3181 = vadd.xlane.f32.xlu0 %v3180
        %v3182 = vpop.xlane.xlu0 %3181
        %v3183 = vadd.f32 %v2767, %v2769
        %3184 = vadd.xlane.f32.xlu0 %v3183
        %v3185 = vpop.xlane.xlu0 %3184
        %v3186 = vadd.f32 %v2771, %v2773
        %3187 = vadd.xlane.f32.xlu0 %v3186
        %v3188 = vpop.xlane.xlu0 %3187
        %v3189 = vadd.f32 %v2775, %v2777
        %3190 = vadd.xlane.f32.xlu0 %v3189
        %v3191 = vpop.xlane.xlu0 %3190
        %v3192 = vadd.f32 %v2779, %v2781
        %3193 = vadd.xlane.f32.xlu0 %v3192
        %v3194 = vpop.xlane.xlu0 %3193
        %v3195 = vadd.f32 %v2783, %v2785
        %3196 = vadd.xlane.f32.xlu0 %v3195
        %v3197 = vpop.xlane.xlu0 %3196
        %v3198 = vadd.f32 %v2787, %v2789
        %3199 = vadd.xlane.f32.xlu0 %v3198
        %v3200 = vpop.xlane.xlu0 %3199
        %v3201 = vadd.f32 %v2791, %v2793
        %3202 = vadd.xlane.f32.xlu0 %v3201
        %v3203 = vpop.xlane.xlu0 %3202
        %v3204 = vadd.f32 %v2795, %v2797
        %3205 = vadd.xlane.f32.xlu0 %v3204
        %v3206 = vpop.xlane.xlu0 %3205
        %v3207 = vadd.f32 %v2799, %v2801
        %3208 = vadd.xlane.f32.xlu0 %v3207
        %v3209 = vpop.xlane.xlu0 %3208
        %v3210 = vadd.f32 %v2803, %v2805
        %3211 = vadd.xlane.f32.xlu0 %v3210
        %v3212 = vpop.xlane.xlu0 %3211
        %v3213 = vadd.f32 %v2807, %v2809
        %3214 = vadd.xlane.f32.xlu0 %v3213
        %v3215 = vpop.xlane.xlu0 %3214
        %v3216 = vadd.f32 %v2811, %v2813
        %3217 = vadd.xlane.f32.xlu0 %v3216
        %v3218 = vpop.xlane.xlu0 %3217
        %v3219 = vadd.f32 %v2815, %v2817
        %3220 = vadd.xlane.f32.xlu0 %v3219
        %v3221 = vpop.xlane.xlu0 %3220
        %v3222 = vadd.f32 %v2819, %v2821
        %3223 = vadd.xlane.f32.xlu0 %v3222
        %v3224 = vpop.xlane.xlu0 %3223
        %v3225 = vadd.f32 %v2823, %v2825
        %3226 = vadd.xlane.f32.xlu0 %v3225
        %v3227 = vpop.xlane.xlu0 %3226
        %v3228 = vadd.f32 %v2827, %v2829
        %3229 = vadd.xlane.f32.xlu0 %v3228
        %v3230 = vpop.xlane.xlu0 %3229
        %v3231 = vadd.f32 %v2831, %v2833
        %3232 = vadd.xlane.f32.xlu0 %v3231
        %v3233 = vpop.xlane.xlu0 %3232
        %v3234 = vadd.f32 %v2835, %v2837
        %3235 = vadd.xlane.f32.xlu0 %v3234
        %v3236 = vpop.xlane.xlu0 %3235
        %v3237 = vadd.f32 %v2839, %v2841
        %3238 = vadd.xlane.f32.xlu0 %v3237
        %v3239 = vpop.xlane.xlu0 %3238
        %v3240 = vadd.f32 %v2843, %v2845
        %3241 = vadd.xlane.f32.xlu0 %v3240
        %v3242 = vpop.xlane.xlu0 %3241
        %v3243 = vadd.f32 %v2847, %v2849
        %3244 = vadd.xlane.f32.xlu0 %v3243
        %v3245 = vpop.xlane.xlu0 %3244
        %v3246 = vadd.f32 %v2851, %v2853
        %3247 = vadd.xlane.f32.xlu0 %v3246
        %v3248 = vpop.xlane.xlu0 %3247
        %v3249 = vadd.f32 %v2855, %v2857
        %3250 = vadd.xlane.f32.xlu0 %v3249
        %v3251 = vpop.xlane.xlu0 %3250
        %v3252 = vadd.f32 %v2859, %v2861
        %3253 = vadd.xlane.f32.xlu0 %v3252
        %v3254 = vpop.xlane.xlu0 %3253
        %v3255 = vadd.f32 %v2863, %v2865
        %3256 = vadd.xlane.f32.xlu0 %v3255
        %v3257 = vpop.xlane.xlu0 %3256
        %v3258 = vadd.f32 %v2867, %v2869
        %3259 = vadd.xlane.f32.xlu0 %v3258
        %v3260 = vpop.xlane.xlu0 %3259
        %v3261 = vadd.f32 %v2871, %v2873
        %3262 = vadd.xlane.f32.xlu0 %v3261
        %v3263 = vpop.xlane.xlu0 %3262
        %v3264 = vadd.f32 %v2875, %v2877
        %3265 = vadd.xlane.f32.xlu0 %v3264
        %v3266 = vpop.xlane.xlu0 %3265
        %v3267 = vadd.f32 %v2879, %v2881
        %3268 = vadd.xlane.f32.xlu0 %v3267
        %v3269 = vpop.xlane.xlu0 %3268
        %v3270 = vadd.f32 %v2883, %v2885
        %3271 = vadd.xlane.f32.xlu0 %v3270
        %v3272 = vpop.xlane.xlu0 %3271
        %v3273 = vadd.f32 %v2887, %v2889
        %3274 = vadd.xlane.f32.xlu0 %v3273
        %v3275 = vpop.xlane.xlu0 %3274
        %v3276 = vadd.f32 %v2891, %v2893
        %3277 = vadd.xlane.f32.xlu0 %v3276
        %v3278 = vpop.xlane.xlu0 %3277
        %v3279 = vadd.f32 %v2895, %v2897
        %3280 = vadd.xlane.f32.xlu0 %v3279
        %v3281 = vpop.xlane.xlu0 %3280
        %v3282 = vrcp.pop %v2900
        %v3283 = vrcp.pop %v2903
        %v3284 = vrcp.pop %v2906
        %v3285 = vrcp.pop %v2909
        %v3286 = vrcp.pop %v2912
        %v3287 = vrcp.pop %v2915
        %v3288 = vrcp.pop %v2918
        %v3289 = vrcp.pop %v2921
        %v3290 = vrcp.pop %v2924
        %v3291 = vrcp.pop %v2927
        %v3292 = vrcp.pop %v2930
        %v3293 = vrcp.pop %v2933
        %v3294 = vrcp.pop %v2936
        %v3295 = vrcp.pop %v2939
        %v3296 = vrcp.pop %v2942
        %v3297 = vrcp.pop %v2945
        %v3298 = vrcp.pop %v2948
        %v3299 = vrcp.pop %v2951
        %v3300 = vrcp.pop %v2954
        %v3301 = vrcp.pop %v2957
        %v3302 = vrcp.pop %v2960
        %v3303 = vrcp.pop %v2963
        %v3304 = vrcp.pop %v2966
        %v3305 = vrcp.pop %v2969
        %v3306 = vrcp.pop %v2972
        %v3307 = vrcp.pop %v2975
        %v3308 = vrcp.pop %v2978
        %v3309 = vrcp.pop %v2981
        %v3310 = vrcp.pop %v2984
        %v3311 = vrcp.pop %v2987
        %v3312 = vrcp.pop %v2990
        %v3313 = vrcp.pop %v2993
        %v3314 = vrcp.pop %v2996
        %v3315 = vrcp.pop %v2999
        %v3316 = vrcp.pop %v3002
        %v3317 = vrcp.pop %v3005
        %v3318 = vrcp.pop %v3008
        %v3319 = vrcp.pop %v3011
        %v3320 = vrcp.pop %v3014
        %v3321 = vrcp.pop %v3017
        %v3322 = vrcp.pop %v3020
        %v3323 = vrcp.pop %v3023
        %v3324 = vrcp.pop %v3026
        %v3325 = vrcp.pop %v3029
        %v3326 = vrcp.pop %v3032
        %v3327 = vrcp.pop %v3035
        %v3328 = vrcp.pop %v3038
        %v3329 = vrcp.pop %v3041
        %v3330 = vrcp.pop %v3044
        %v3331 = vrcp.pop %v3047
        %v3332 = vrcp.pop %v3050
        %v3333 = vrcp.pop %v3053
        %v3334 = vrcp.pop %v3056
        %v3335 = vrcp.pop %v3059
        %v3336 = vrcp.pop %v3062
        %v3337 = vrcp.pop %v3065
        %v3338 = vrcp.pop %v3068
        %v3339 = vrcp.pop %v3071
        %v3340 = vrcp.pop %v3074
        %v3341 = vrcp.pop %v3077
        %v3342 = vrcp.pop %v3080
        %v3343 = vrcp.pop %v3083
        %v3344 = vrcp.pop %v3086
        %v3345 = vrcp.pop %v3089
        %v3346 = vrcp.pop %v3092
        %v3347 = vrcp.pop %v3095
        %v3348 = vrcp.pop %v3098
        %v3349 = vrcp.pop %v3101
        %v3350 = vrcp.pop %v3104
        %v3351 = vrcp.pop %v3107
        %v3352 = vrcp.pop %v3110
        %v3353 = vrcp.pop %v3113
        %v3354 = vrcp.pop %v3116
        %v3355 = vrcp.pop %v3119
        %v3356 = vrcp.pop %v3122
        %v3357 = vrcp.pop %v3125
        %v3358 = vrcp.pop %v3128
        %v3359 = vrcp.pop %v3131
        %v3360 = vrcp.pop %v3134
        %v3361 = vrcp.pop %v3137
        %v3362 = vrcp.pop %v3140
        %v3363 = vrcp.pop %v3143
        %v3364 = vrcp.pop %v3146
        %v3365 = vrcp.pop %v3149
        %v3366 = vrcp.pop %v3152
        %v3367 = vrcp.pop %v3155
        %v3368 = vrcp.pop %v3158
        %v3369 = vrcp.pop %v3161
        %v3370 = vrcp.pop %v3164
        %v3371 = vrcp.pop %v3167
        %v3372 = vrcp.pop %v3170
        %v3373 = vrcp.pop %v3173
        %v3374 = vrcp.pop %v3176
        %v3375 = vrcp.pop %v3179
        %v3376 = vrcp.pop %v3182
        %v3377 = vrcp.pop %v3185
        %v3378 = vrcp.pop %v3188
        %v3379 = vrcp.pop %v3191
        %v3380 = vrcp.pop %v3194
        %v3381 = vrcp.pop %v3197
        %v3382 = vrcp.pop %v3200
        %v3383 = vrcp.pop %v3203
        %v3384 = vrcp.pop %v3206
        %v3385 = vrcp.pop %v3209
        %v3386 = vrcp.pop %v3212
        %v3387 = vrcp.pop %v3215
        %v3388 = vrcp.pop %v3218
        %v3389 = vrcp.pop %v3221
        %v3390 = vrcp.pop %v3224
        %v3391 = vrcp.pop %v3227
        %v3392 = vrcp.pop %v3230
        %v3393 = vrcp.pop %v3233
        %v3394 = vrcp.pop %v3236
        %v3395 = vrcp.pop %v3239
        %v3396 = vrcp.pop %v3242
        %v3397 = vrcp.pop %v3245
        %v3398 = vrcp.pop %v3248
        %v3399 = vrcp.pop %v3251
        %v3400 = vrcp.pop %v3254
        %v3401 = vrcp.pop %v3257
        %v3402 = vrcp.pop %v3260
        %v3403 = vrcp.pop %v3263
        %v3404 = vrcp.pop %v3266
        %v3405 = vrcp.pop %v3269
        %v3406 = vrcp.pop %v3272
        %v3407 = vrcp.pop %v3275
        %v3408 = vrcp.pop %v3278
        %v3409 = vrcp.pop %v3281
        %v3410 = vmul.f32 %v2387, %v3282
        %v3411 = vmul.f32 %v2389, %v3282
        %v3412 = vmul.f32 %v2391, %v3283
        %v3413 = vmul.f32 %v2393, %v3283
        %v3414 = vmul.f32 %v2395, %v3284
        %v3415 = vmul.f32 %v2397, %v3284
        %v3416 = vmul.f32 %v2399, %v3285
        %v3417 = vmul.f32 %v2401, %v3285
        %v3418 = vmul.f32 %v2403, %v3286
        %v3419 = vmul.f32 %v2405, %v3286
        %v3420 = vmul.f32 %v2407, %v3287
        %v3421 = vmul.f32 %v2409, %v3287
        %v3422 = vmul.f32 %v2411, %v3288
        %v3423 = vmul.f32 %v2413, %v3288
        %v3424 = vmul.f32 %v2415, %v3289
        %v3425 = vmul.f32 %v2417, %v3289
        %v3426 = vmul.f32 %v2419, %v3290
        %v3427 = vmul.f32 %v2421, %v3290
        %v3428 = vmul.f32 %v2423, %v3291
        %v3429 = vmul.f32 %v2425, %v3291
        %v3430 = vmul.f32 %v2427, %v3292
        %v3431 = vmul.f32 %v2429, %v3292
        %v3432 = vmul.f32 %v2431, %v3293
        %v3433 = vmul.f32 %v2433, %v3293
        %v3434 = vmul.f32 %v2435, %v3294
        %v3435 = vmul.f32 %v2437, %v3294
        %v3436 = vmul.f32 %v2439, %v3295
        %v3437 = vmul.f32 %v2441, %v3295
        %v3438 = vmul.f32 %v2443, %v3296
        %v3439 = vmul.f32 %v2445, %v3296
        %v3440 = vmul.f32 %v2447, %v3297
        %v3441 = vmul.f32 %v2449, %v3297
        %v3442 = vmul.f32 %v2451, %v3298
        %v3443 = vmul.f32 %v2453, %v3298
        %v3444 = vmul.f32 %v2455, %v3299
        %v3445 = vmul.f32 %v2457, %v3299
        %v3446 = vmul.f32 %v2459, %v3300
        %v3447 = vmul.f32 %v2461, %v3300
        %v3448 = vmul.f32 %v2463, %v3301
        %v3449 = vmul.f32 %v2465, %v3301
        %v3450 = vmul.f32 %v2467, %v3302
        %v3451 = vmul.f32 %v2469, %v3302
        %v3452 = vmul.f32 %v2471, %v3303
        %v3453 = vmul.f32 %v2473, %v3303
        %v3454 = vmul.f32 %v2475, %v3304
        %v3455 = vmul.f32 %v2477, %v3304
        %v3456 = vmul.f32 %v2479, %v3305
        %v3457 = vmul.f32 %v2481, %v3305
        %v3458 = vmul.f32 %v2483, %v3306
        %v3459 = vmul.f32 %v2485, %v3306
        %v3460 = vmul.f32 %v2487, %v3307
        %v3461 = vmul.f32 %v2489, %v3307
        %v3462 = vmul.f32 %v2491, %v3308
        %v3463 = vmul.f32 %v2493, %v3308
        %v3464 = vmul.f32 %v2495, %v3309
        %v3465 = vmul.f32 %v2497, %v3309
        %v3466 = vmul.f32 %v2499, %v3310
        %v3467 = vmul.f32 %v2501, %v3310
        %v3468 = vmul.f32 %v2503, %v3311
        %v3469 = vmul.f32 %v2505, %v3311
        %v3470 = vmul.f32 %v2507, %v3312
        %v3471 = vmul.f32 %v2509, %v3312
        %v3472 = vmul.f32 %v2511, %v3313
        %v3473 = vmul.f32 %v2513, %v3313
        %v3474 = vmul.f32 %v2515, %v3314
        %v3475 = vmul.f32 %v2517, %v3314
        %v3476 = vmul.f32 %v2519, %v3315
        %v3477 = vmul.f32 %v2521, %v3315
        %v3478 = vmul.f32 %v2523, %v3316
        %v3479 = vmul.f32 %v2525, %v3316
        %v3480 = vmul.f32 %v2527, %v3317
        %v3481 = vmul.f32 %v2529, %v3317
        %v3482 = vmul.f32 %v2531, %v3318
        %v3483 = vmul.f32 %v2533, %v3318
        %v3484 = vmul.f32 %v2535, %v3319
        %v3485 = vmul.f32 %v2537, %v3319
        %v3486 = vmul.f32 %v2539, %v3320
        %v3487 = vmul.f32 %v2541, %v3320
        %v3488 = vmul.f32 %v2543, %v3321
        %v3489 = vmul.f32 %v2545, %v3321
        %v3490 = vmul.f32 %v2547, %v3322
        %v3491 = vmul.f32 %v2549, %v3322
        %v3492 = vmul.f32 %v2551, %v3323
        %v3493 = vmul.f32 %v2553, %v3323
        %v3494 = vmul.f32 %v2555, %v3324
        %v3495 = vmul.f32 %v2557, %v3324
        %v3496 = vmul.f32 %v2559, %v3325
        %v3497 = vmul.f32 %v2561, %v3325
        %v3498 = vmul.f32 %v2563, %v3326
        %v3499 = vmul.f32 %v2565, %v3326
        %v3500 = vmul.f32 %v2567, %v3327
        %v3501 = vmul.f32 %v2569, %v3327
        %v3502 = vmul.f32 %v2571, %v3328
        %v3503 = vmul.f32 %v2573, %v3328
        %v3504 = vmul.f32 %v2575, %v3329
        %v3505 = vmul.f32 %v2577, %v3329
        %v3506 = vmul.f32 %v2579, %v3330
        %v3507 = vmul.f32 %v2581, %v3330
        %v3508 = vmul.f32 %v2583, %v3331
        %v3509 = vmul.f32 %v2585, %v3331
        %v3510 = vmul.f32 %v2587, %v3332
        %v3511 = vmul.f32 %v2589, %v3332
        %v3512 = vmul.f32 %v2591, %v3333
        %v3513 = vmul.f32 %v2593, %v3333
        %v3514 = vmul.f32 %v2595, %v3334
        %v3515 = vmul.f32 %v2597, %v3334
        %v3516 = vmul.f32 %v2599, %v3335
        %v3517 = vmul.f32 %v2601, %v3335
        %v3518 = vmul.f32 %v2603, %v3336
        %v3519 = vmul.f32 %v2605, %v3336
        %v3520 = vmul.f32 %v2607, %v3337
        %v3521 = vmul.f32 %v2609, %v3337
        %v3522 = vmul.f32 %v2611, %v3338
        %v3523 = vmul.f32 %v2613, %v3338
        %v3524 = vmul.f32 %v2615, %v3339
        %v3525 = vmul.f32 %v2617, %v3339
        %v3526 = vmul.f32 %v2619, %v3340
        %v3527 = vmul.f32 %v2621, %v3340
        %v3528 = vmul.f32 %v2623, %v3341
        %v3529 = vmul.f32 %v2625, %v3341
        %v3530 = vmul.f32 %v2627, %v3342
        %v3531 = vmul.f32 %v2629, %v3342
        %v3532 = vmul.f32 %v2631, %v3343
        %v3533 = vmul.f32 %v2633, %v3343
        %v3534 = vmul.f32 %v2635, %v3344
        %v3535 = vmul.f32 %v2637, %v3344
        %v3536 = vmul.f32 %v2639, %v3345
        %v3537 = vmul.f32 %v2641, %v3345
        %v3538 = vmul.f32 %v2643, %v3346
        %v3539 = vmul.f32 %v2645, %v3346
        %v3540 = vmul.f32 %v2647, %v3347
        %v3541 = vmul.f32 %v2649, %v3347
        %v3542 = vmul.f32 %v2651, %v3348
        %v3543 = vmul.f32 %v2653, %v3348
        %v3544 = vmul.f32 %v2655, %v3349
        %v3545 = vmul.f32 %v2657, %v3349
        %v3546 = vmul.f32 %v2659, %v3350
        %v3547 = vmul.f32 %v2661, %v3350
        %v3548 = vmul.f32 %v2663, %v3351
        %v3549 = vmul.f32 %v2665, %v3351
        %v3550 = vmul.f32 %v2667, %v3352
        %v3551 = vmul.f32 %v2669, %v3352
        %v3552 = vmul.f32 %v2671, %v3353
        %v3553 = vmul.f32 %v2673, %v3353
        %v3554 = vmul.f32 %v2675, %v3354
        %v3555 = vmul.f32 %v2677, %v3354
        %v3556 = vmul.f32 %v2679, %v3355
        %v3557 = vmul.f32 %v2681, %v3355
        %v3558 = vmul.f32 %v2683, %v3356
        %v3559 = vmul.f32 %v2685, %v3356
        %v3560 = vmul.f32 %v2687, %v3357
        %v3561 = vmul.f32 %v2689, %v3357
        %v3562 = vmul.f32 %v2691, %v3358
        %v3563 = vmul.f32 %v2693, %v3358
        %v3564 = vmul.f32 %v2695, %v3359
        %v3565 = vmul.f32 %v2697, %v3359
        %v3566 = vmul.f32 %v2699, %v3360
        %v3567 = vmul.f32 %v2701, %v3360
        %v3568 = vmul.f32 %v2703, %v3361
        %v3569 = vmul.f32 %v2705, %v3361
        %v3570 = vmul.f32 %v2707, %v3362
        %v3571 = vmul.f32 %v2709, %v3362
        %v3572 = vmul.f32 %v2711, %v3363
        %v3573 = vmul.f32 %v2713, %v3363
        %v3574 = vmul.f32 %v2715, %v3364
        %v3575 = vmul.f32 %v2717, %v3364
        %v3576 = vmul.f32 %v2719, %v3365
        %v3577 = vmul.f32 %v2721, %v3365
        %v3578 = vmul.f32 %v2723, %v3366
        %v3579 = vmul.f32 %v2725, %v3366
        %v3580 = vmul.f32 %v2727, %v3367
        %v3581 = vmul.f32 %v2729, %v3367
        %v3582 = vmul.f32 %v2731, %v3368
        %v3583 = vmul.f32 %v2733, %v3368
        %v3584 = vmul.f32 %v2735, %v3369
        %v3585 = vmul.f32 %v2737, %v3369
        %v3586 = vmul.f32 %v2739, %v3370
        %v3587 = vmul.f32 %v2741, %v3370
        %v3588 = vmul.f32 %v2743, %v3371
        %v3589 = vmul.f32 %v2745, %v3371
        %v3590 = vmul.f32 %v2747, %v3372
        %v3591 = vmul.f32 %v2749, %v3372
        %v3592 = vmul.f32 %v2751, %v3373
        %v3593 = vmul.f32 %v2753, %v3373
        %v3594 = vmul.f32 %v2755, %v3374
        %v3595 = vmul.f32 %v2757, %v3374
        %v3596 = vmul.f32 %v2759, %v3375
        %v3597 = vmul.f32 %v2761, %v3375
        %v3598 = vmul.f32 %v2763, %v3376
        %v3599 = vmul.f32 %v2765, %v3376
        %v3600 = vmul.f32 %v2767, %v3377
        %v3601 = vmul.f32 %v2769, %v3377
        %v3602 = vmul.f32 %v2771, %v3378
        %v3603 = vmul.f32 %v2773, %v3378
        %v3604 = vmul.f32 %v2775, %v3379
        %v3605 = vmul.f32 %v2777, %v3379
        %v3606 = vmul.f32 %v2779, %v3380
        %v3607 = vmul.f32 %v2781, %v3380
        %v3608 = vmul.f32 %v2783, %v3381
        %v3609 = vmul.f32 %v2785, %v3381
        %v3610 = vmul.f32 %v2787, %v3382
        %v3611 = vmul.f32 %v2789, %v3382
        %v3612 = vmul.f32 %v2791, %v3383
        %v3613 = vmul.f32 %v2793, %v3383
        %v3614 = vmul.f32 %v2795, %v3384
        %v3615 = vmul.f32 %v2797, %v3384
        %v3616 = vmul.f32 %v2799, %v3385
        %v3617 = vmul.f32 %v2801, %v3385
        %v3618 = vmul.f32 %v2803, %v3386
        %v3619 = vmul.f32 %v2805, %v3386
        %v3620 = vmul.f32 %v2807, %v3387
        %v3621 = vmul.f32 %v2809, %v3387
        %v3622 = vmul.f32 %v2811, %v3388
        %v3623 = vmul.f32 %v2813, %v3388
        %v3624 = vmul.f32 %v2815, %v3389
        %v3625 = vmul.f32 %v2817, %v3389
        %v3626 = vmul.f32 %v2819, %v3390
        %v3627 = vmul.f32 %v2821, %v3390
        %v3628 = vmul.f32 %v2823, %v3391
        %v3629 = vmul.f32 %v2825, %v3391
        %v3630 = vmul.f32 %v2827, %v3392
        %v3631 = vmul.f32 %v2829, %v3392
        %v3632 = vmul.f32 %v2831, %v3393
        %v3633 = vmul.f32 %v2833, %v3393
        %v3634 = vmul.f32 %v2835, %v3394
        %v3635 = vmul.f32 %v2837, %v3394
        %v3636 = vmul.f32 %v2839, %v3395
        %v3637 = vmul.f32 %v2841, %v3395
        %v3638 = vmul.f32 %v2843, %v3396
        %v3639 = vmul.f32 %v2845, %v3396
        %v3640 = vmul.f32 %v2847, %v3397
        %v3641 = vmul.f32 %v2849, %v3397
        %v3642 = vmul.f32 %v2851, %v3398
        %v3643 = vmul.f32 %v2853, %v3398
        %v3644 = vmul.f32 %v2855, %v3399
        %v3645 = vmul.f32 %v2857, %v3399
        %v3646 = vmul.f32 %v2859, %v3400
        %v3647 = vmul.f32 %v2861, %v3400
        %v3648 = vmul.f32 %v2863, %v3401
        %v3649 = vmul.f32 %v2865, %v3401
        %v3650 = vmul.f32 %v2867, %v3402
        %v3651 = vmul.f32 %v2869, %v3402
        %v3652 = vmul.f32 %v2871, %v3403
        %v3653 = vmul.f32 %v2873, %v3403
        %v3654 = vmul.f32 %v2875, %v3404
        %v3655 = vmul.f32 %v2877, %v3404
        %v3656 = vmul.f32 %v2879, %v3405
        %v3657 = vmul.f32 %v2881, %v3405
        %v3658 = vmul.f32 %v2883, %v3406
        %v3659 = vmul.f32 %v2885, %v3406
        %v3660 = vmul.f32 %v2887, %v3407
        %v3661 = vmul.f32 %v2889, %v3407
        %v3662 = vmul.f32 %v2891, %v3408
        %v3663 = vmul.f32 %v2893, %v3408
        %v3664 = vmul.f32 %v2895, %v3409
        %v3665 = vmul.f32 %v2897, %v3409
        %v3666 = vpack.c.bf16 %v547, %v543
        %v3667 = vpack.c.bf16 %v549, %v545
        %v3668 = vpack.c.bf16 %v557, %v553
        %v3669 = vpack.c.bf16 %v559, %v555
        %v3670 = vpack.c.bf16 %v567, %v563
        %v3671 = vpack.c.bf16 %v569, %v565
        %v3672 = vpack.c.bf16 %v577, %v573
        %v3673 = vpack.c.bf16 %v579, %v575
        %v3674 = vpack.c.bf16 %v587, %v583
        %v3675 = vpack.c.bf16 %v589, %v585
        %v3676 = vpack.c.bf16 %v597, %v593
        %v3677 = vpack.c.bf16 %v599, %v595
        %v3678 = vpack.c.bf16 %v607, %v603
        %v3679 = vpack.c.bf16 %v609, %v605
        %v3680 = vpack.c.bf16 %v617, %v613
        %v3681 = vpack.c.bf16 %v619, %v615
        %v3682 = vpack.c.bf16 %v3412, %v3410
        %v3683 = vpack.c.bf16 %v3413, %v3411
        %v3684 = vpack.c.bf16 %v3416, %v3414
        %v3685 = vpack.c.bf16 %v3417, %v3415
        %v3686 = vpack.c.bf16 %v3420, %v3418
        %v3687 = vpack.c.bf16 %v3421, %v3419
        %v3688 = vpack.c.bf16 %v3424, %v3422
        %v3689 = vpack.c.bf16 %v3425, %v3423
        %v3690 = vpack.c.bf16 %v3428, %v3426
        %v3691 = vpack.c.bf16 %v3429, %v3427
        %v3692 = vpack.c.bf16 %v3432, %v3430
        %v3693 = vpack.c.bf16 %v3433, %v3431
        %v3694 = vpack.c.bf16 %v3436, %v3434
        %v3695 = vpack.c.bf16 %v3437, %v3435
        %v3696 = vpack.c.bf16 %v3440, %v3438
        %v3697 = vpack.c.bf16 %v3441, %v3439
        %v3698 = vpack.c.bf16 %v3444, %v3442
        %v3699 = vpack.c.bf16 %v3445, %v3443
        %v3700 = vpack.c.bf16 %v3448, %v3446
        %v3701 = vpack.c.bf16 %v3449, %v3447
        %v3702 = vpack.c.bf16 %v3452, %v3450
        %v3703 = vpack.c.bf16 %v3453, %v3451
        %v3704 = vpack.c.bf16 %v3456, %v3454
        %v3705 = vpack.c.bf16 %v3457, %v3455
        %v3706 = vpack.c.bf16 %v3460, %v3458
        %v3707 = vpack.c.bf16 %v3461, %v3459
        %v3708 = vpack.c.bf16 %v3464, %v3462
        %v3709 = vpack.c.bf16 %v3465, %v3463
        %v3710 = vpack.c.bf16 %v3468, %v3466
        %v3711 = vpack.c.bf16 %v3469, %v3467
        %v3712 = vpack.c.bf16 %v3472, %v3470
        %v3713 = vpack.c.bf16 %v3473, %v3471
        %v3714 = vpack.c.bf16 %v3476, %v3474
        %v3715 = vpack.c.bf16 %v3477, %v3475
        %v3716 = vpack.c.bf16 %v3480, %v3478
        %v3717 = vpack.c.bf16 %v3481, %v3479
        %v3718 = vpack.c.bf16 %v3484, %v3482
        %v3719 = vpack.c.bf16 %v3485, %v3483
        %v3720 = vpack.c.bf16 %v3488, %v3486
        %v3721 = vpack.c.bf16 %v3489, %v3487
        %v3722 = vpack.c.bf16 %v3492, %v3490
        %v3723 = vpack.c.bf16 %v3493, %v3491
        %v3724 = vpack.c.bf16 %v3496, %v3494
        %v3725 = vpack.c.bf16 %v3497, %v3495
        %v3726 = vpack.c.bf16 %v3500, %v3498
        %v3727 = vpack.c.bf16 %v3501, %v3499
        %v3728 = vpack.c.bf16 %v3504, %v3502
        %v3729 = vpack.c.bf16 %v3505, %v3503
        %v3730 = vpack.c.bf16 %v3508, %v3506
        %v3731 = vpack.c.bf16 %v3509, %v3507
        %v3732 = vpack.c.bf16 %v3512, %v3510
        %v3733 = vpack.c.bf16 %v3513, %v3511
        %v3734 = vpack.c.bf16 %v3516, %v3514
        %v3735 = vpack.c.bf16 %v3517, %v3515
        %v3736 = vpack.c.bf16 %v3520, %v3518
        %v3737 = vpack.c.bf16 %v3521, %v3519
        %v3738 = vpack.c.bf16 %v3524, %v3522
        %v3739 = vpack.c.bf16 %v3525, %v3523
        %v3740 = vpack.c.bf16 %v3528, %v3526
        %v3741 = vpack.c.bf16 %v3529, %v3527
        %v3742 = vpack.c.bf16 %v3532, %v3530
        %v3743 = vpack.c.bf16 %v3533, %v3531
        %v3744 = vpack.c.bf16 %v3536, %v3534
        %v3745 = vpack.c.bf16 %v3537, %v3535
        %v3746 = vpack.c.bf16 %v3540, %v3538
        %v3747 = vpack.c.bf16 %v3541, %v3539
        %v3748 = vpack.c.bf16 %v3544, %v3542
        %v3749 = vpack.c.bf16 %v3545, %v3543
        %v3750 = vpack.c.bf16 %v3548, %v3546
        %v3751 = vpack.c.bf16 %v3549, %v3547
        %v3752 = vpack.c.bf16 %v3552, %v3550
        %v3753 = vpack.c.bf16 %v3553, %v3551
        %v3754 = vpack.c.bf16 %v3556, %v3554
        %v3755 = vpack.c.bf16 %v3557, %v3555
        %v3756 = vpack.c.bf16 %v3560, %v3558
        %v3757 = vpack.c.bf16 %v3561, %v3559
        %v3758 = vpack.c.bf16 %v3564, %v3562
        %v3759 = vpack.c.bf16 %v3565, %v3563
        %v3760 = vpack.c.bf16 %v3568, %v3566
        %v3761 = vpack.c.bf16 %v3569, %v3567
        %v3762 = vpack.c.bf16 %v3572, %v3570
        %v3763 = vpack.c.bf16 %v3573, %v3571
        %v3764 = vpack.c.bf16 %v3576, %v3574
        %v3765 = vpack.c.bf16 %v3577, %v3575
        %v3766 = vpack.c.bf16 %v3580, %v3578
        %v3767 = vpack.c.bf16 %v3581, %v3579
        %v3768 = vpack.c.bf16 %v3584, %v3582
        %v3769 = vpack.c.bf16 %v3585, %v3583
        %v3770 = vpack.c.bf16 %v3588, %v3586
        %v3771 = vpack.c.bf16 %v3589, %v3587
        %v3772 = vpack.c.bf16 %v3592, %v3590
        %v3773 = vpack.c.bf16 %v3593, %v3591
        %v3774 = vpack.c.bf16 %v3596, %v3594
        %v3775 = vpack.c.bf16 %v3597, %v3595
        %v3776 = vpack.c.bf16 %v3600, %v3598
        %v3777 = vpack.c.bf16 %v3601, %v3599
        %v3778 = vpack.c.bf16 %v3604, %v3602
        %v3779 = vpack.c.bf16 %v3605, %v3603
        %v3780 = vpack.c.bf16 %v3608, %v3606
        %v3781 = vpack.c.bf16 %v3609, %v3607
        %v3782 = vpack.c.bf16 %v3612, %v3610
        %v3783 = vpack.c.bf16 %v3613, %v3611
        %v3784 = vpack.c.bf16 %v3616, %v3614
        %v3785 = vpack.c.bf16 %v3617, %v3615
        %v3786 = vpack.c.bf16 %v3620, %v3618
        %v3787 = vpack.c.bf16 %v3621, %v3619
        %v3788 = vpack.c.bf16 %v3624, %v3622
        %v3789 = vpack.c.bf16 %v3625, %v3623
        %v3790 = vpack.c.bf16 %v3628, %v3626
        %v3791 = vpack.c.bf16 %v3629, %v3627
        %v3792 = vpack.c.bf16 %v3632, %v3630
        %v3793 = vpack.c.bf16 %v3633, %v3631
        %v3794 = vpack.c.bf16 %v3636, %v3634
        %v3795 = vpack.c.bf16 %v3637, %v3635
        %v3796 = vpack.c.bf16 %v3640, %v3638
        %v3797 = vpack.c.bf16 %v3641, %v3639
        %v3798 = vpack.c.bf16 %v3644, %v3642
        %v3799 = vpack.c.bf16 %v3645, %v3643
        %v3800 = vpack.c.bf16 %v3648, %v3646
        %v3801 = vpack.c.bf16 %v3649, %v3647
        %v3802 = vpack.c.bf16 %v3652, %v3650
        %v3803 = vpack.c.bf16 %v3653, %v3651
        %v3804 = vpack.c.bf16 %v3656, %v3654
        %v3805 = vpack.c.bf16 %v3657, %v3655
        %v3806 = vpack.c.bf16 %v3660, %v3658
        %v3807 = vpack.c.bf16 %v3661, %v3659
        %v3808 = vpack.c.bf16 %v3664, %v3662
        %v3809 = vpack.c.bf16 %v3665, %v3663
        %3810 = vmatprep.subr.bf16.mxu0 %v3697
        %3811 = vmatpush1.bf16.xpose.msra.mxu0 %v3696
        %3812 = vmatprep.subr.bf16.mxu0 %v3695
        %3813 = vmatpush1.bf16.xpose.msra.mxu0 %v3694
        %3814 = vmatprep.subr.bf16.mxu0 %v3693
        %3815 = vmatpush1.bf16.xpose.msra.mxu0 %v3692
        %3816 = vmatprep.subr.bf16.mxu0 %v3691
        %3817 = vmatpush1.bf16.xpose.msra.mxu0 %v3690
        %3818 = vmatprep.subr.bf16.mxu0 %v3689
        %3819 = vmatpush1.bf16.xpose.msra.mxu0 %v3688
        %3820 = vmatprep.subr.bf16.mxu0 %v3687
        %3821 = vmatpush1.bf16.xpose.msra.mxu0 %v3686
        %3822 = vmatprep.subr.bf16.mxu0 %v3685
        %3823 = vmatpush1.bf16.xpose.msra.mxu0 %v3684
        %3824 = vmatprep.subr.bf16.mxu0 %v3683
        %3825 = vmatpush1.bf16.xpose.msra.mxu0 %v3682
        %3826 = vmatprep.subr.bf16.mxu0 %v3713
        %3827 = vmatpush2.bf16.xpose.msra.mxu0 %v3712
        %3828 = vmatprep.subr.bf16.mxu0 %v3711
        %3829 = vmatpush2.bf16.xpose.msra.mxu0 %v3710
        %3830 = vmatprep.subr.bf16.mxu0 %v3709
        %3831 = vmatpush2.bf16.xpose.msra.mxu0 %v3708
        %3832 = vmatprep.subr.bf16.mxu0 %v3707
        %3833 = vmatpush2.bf16.xpose.msra.mxu0 %v3706
        %3834 = vmatprep.subr.bf16.mxu0 %v3705
        %3835 = vmatpush2.bf16.xpose.msra.mxu0 %v3704
        %3836 = vmatprep.subr.bf16.mxu0 %v3703
        %3837 = vmatpush2.bf16.xpose.msra.mxu0 %v3702
        %3838 = vmatprep.subr.bf16.mxu0 %v3701
        %3839 = vmatpush2.bf16.xpose.msra.mxu0 %v3700
        %3840 = vmatprep.subr.bf16.mxu0 %v3699
        %3841 = vmatpush2.bf16.xpose.msra.mxu0 %v3698
        %3842 = vmatprep.mubr.bf16.mxu0 %v3667
        %3843 = vmatmul.mubr.bf16.gmra.mxu0 %v3666
        %v3844 = vpop.f32.mrf.mxu0
        %v3845 = vadd.f32 0.0, %v3844
        %v3846 = vpop.f32.mrf.mxu0
        %v3847 = vadd.f32 0.0, %v3846
        %v3848 = vpop.f32.mrf.mxu0
        %v3849 = vadd.f32 0.0, %v3848
        %v3850 = vpop.f32.mrf.mxu0
        %v3851 = vadd.f32 0.0, %v3850
        %3852 = vmatprep.mubr.bf16.mxu0 %v3669
        %3853 = vmatmul.mubr.bf16.gmra.mxu0 %v3668
        %v3854 = vpop.f32.mrf.mxu0
        %v3855 = vadd.f32 0.0, %v3854
        %v3856 = vpop.f32.mrf.mxu0
        %v3857 = vadd.f32 0.0, %v3856
        %v3858 = vpop.f32.mrf.mxu0
        %v3859 = vadd.f32 0.0, %v3858
        %v3860 = vpop.f32.mrf.mxu0
        %v3861 = vadd.f32 0.0, %v3860
        %3862 = vdwg.mxu0
        %3863 = vmatprep.subr.bf16.mxu0 %v3729
        %3864 = vmatpush1.bf16.xpose.msra.mxu0 %v3728
        %3865 = vmatprep.subr.bf16.mxu0 %v3727
        %3866 = vmatpush1.bf16.xpose.msra.mxu0 %v3726
        %3867 = vmatprep.subr.bf16.mxu0 %v3725
        %3868 = vmatpush1.bf16.xpose.msra.mxu0 %v3724
        %3869 = vmatprep.subr.bf16.mxu0 %v3723
        %3870 = vmatpush1.bf16.xpose.msra.mxu0 %v3722
        %3871 = vmatprep.subr.bf16.mxu0 %v3721
        %3872 = vmatpush1.bf16.xpose.msra.mxu0 %v3720
        %3873 = vmatprep.subr.bf16.mxu0 %v3719
        %3874 = vmatpush1.bf16.xpose.msra.mxu0 %v3718
        %3875 = vmatprep.subr.bf16.mxu0 %v3717
        %3876 = vmatpush1.bf16.xpose.msra.mxu0 %v3716
        %3877 = vmatprep.subr.bf16.mxu0 %v3715
        %3878 = vmatpush1.bf16.xpose.msra.mxu0 %v3714
        %3879 = vmatprep.subr.bf16.mxu0 %v3745
        %3880 = vmatpush2.bf16.xpose.msra.mxu0 %v3744
        %3881 = vmatprep.subr.bf16.mxu0 %v3743
        %3882 = vmatpush2.bf16.xpose.msra.mxu0 %v3742
        %3883 = vmatprep.subr.bf16.mxu0 %v3741
        %3884 = vmatpush2.bf16.xpose.msra.mxu0 %v3740
        %3885 = vmatprep.subr.bf16.mxu0 %v3739
        %3886 = vmatpush2.bf16.xpose.msra.mxu0 %v3738
        %3887 = vmatprep.subr.bf16.mxu0 %v3737
        %3888 = vmatpush2.bf16.xpose.msra.mxu0 %v3736
        %3889 = vmatprep.subr.bf16.mxu0 %v3735
        %3890 = vmatpush2.bf16.xpose.msra.mxu0 %v3734
        %3891 = vmatprep.subr.bf16.mxu0 %v3733
        %3892 = vmatpush2.bf16.xpose.msra.mxu0 %v3732
        %3893 = vmatprep.subr.bf16.mxu0 %v3731
        %3894 = vmatpush2.bf16.xpose.msra.mxu0 %v3730
        %3895 = vmatprep.mubr.bf16.mxu0 %v3671
        %3896 = vmatmul.mubr.bf16.gmra.mxu0 %v3670
        %v3897 = vpop.f32.mrf.mxu0
        %v3898 = vadd.f32 0.0, %v3897
        %v3899 = vpop.f32.mrf.mxu0
        %v3900 = vadd.f32 0.0, %v3899
        %v3901 = vpop.f32.mrf.mxu0
        %v3902 = vadd.f32 0.0, %v3901
        %v3903 = vpop.f32.mrf.mxu0
        %v3904 = vadd.f32 0.0, %v3903
        %3905 = vmatprep.mubr.bf16.mxu0 %v3673
        %3906 = vmatmul.mubr.bf16.gmra.mxu0 %v3672
        %v3907 = vpop.f32.mrf.mxu0
        %v3908 = vadd.f32 0.0, %v3907
        %v3909 = vpop.f32.mrf.mxu0
        %v3910 = vadd.f32 0.0, %v3909
        %v3911 = vpop.f32.mrf.mxu0
        %v3912 = vadd.f32 0.0, %v3911
        %v3913 = vpop.f32.mrf.mxu0
        %v3914 = vadd.f32 0.0, %v3913
        %3915 = vdwg.mxu0
        %3916 = vmatprep.subr.bf16.mxu0 %v3761
        %3917 = vmatpush1.bf16.xpose.msra.mxu0 %v3760
        %3918 = vmatprep.subr.bf16.mxu0 %v3759
        %3919 = vmatpush1.bf16.xpose.msra.mxu0 %v3758
        %3920 = vmatprep.subr.bf16.mxu0 %v3757
        %3921 = vmatpush1.bf16.xpose.msra.mxu0 %v3756
        %3922 = vmatprep.subr.bf16.mxu0 %v3755
        %3923 = vmatpush1.bf16.xpose.msra.mxu0 %v3754
        %3924 = vmatprep.subr.bf16.mxu0 %v3753
        %3925 = vmatpush1.bf16.xpose.msra.mxu0 %v3752
        %3926 = vmatprep.subr.bf16.mxu0 %v3751
        %3927 = vmatpush1.bf16.xpose.msra.mxu0 %v3750
        %3928 = vmatprep.subr.bf16.mxu0 %v3749
        %3929 = vmatpush1.bf16.xpose.msra.mxu0 %v3748
        %3930 = vmatprep.subr.bf16.mxu0 %v3747
        %3931 = vmatpush1.bf16.xpose.msra.mxu0 %v3746
        %3932 = vmatprep.subr.bf16.mxu0 %v3777
        %3933 = vmatpush2.bf16.xpose.msra.mxu0 %v3776
        %3934 = vmatprep.subr.bf16.mxu0 %v3775
        %3935 = vmatpush2.bf16.xpose.msra.mxu0 %v3774
        %3936 = vmatprep.subr.bf16.mxu0 %v3773
        %3937 = vmatpush2.bf16.xpose.msra.mxu0 %v3772
        %3938 = vmatprep.subr.bf16.mxu0 %v3771
        %3939 = vmatpush2.bf16.xpose.msra.mxu0 %v3770
        %3940 = vmatprep.subr.bf16.mxu0 %v3769
        %3941 = vmatpush2.bf16.xpose.msra.mxu0 %v3768
        %3942 = vmatprep.subr.bf16.mxu0 %v3767
        %3943 = vmatpush2.bf16.xpose.msra.mxu0 %v3766
        %3944 = vmatprep.subr.bf16.mxu0 %v3765
        %3945 = vmatpush2.bf16.xpose.msra.mxu0 %v3764
        %3946 = vmatprep.subr.bf16.mxu0 %v3763
        %3947 = vmatpush2.bf16.xpose.msra.mxu0 %v3762
        %3948 = vmatprep.mubr.bf16.mxu0 %v3675
        %3949 = vmatmul.mubr.bf16.gmra.mxu0 %v3674
        %v3950 = vpop.f32.mrf.mxu0
        %v3951 = vadd.f32 0.0, %v3950
        %v3952 = vpop.f32.mrf.mxu0
        %v3953 = vadd.f32 0.0, %v3952
        %v3954 = vpop.f32.mrf.mxu0
        %v3955 = vadd.f32 0.0, %v3954
        %v3956 = vpop.f32.mrf.mxu0
        %v3957 = vadd.f32 0.0, %v3956
        %3958 = vmatprep.mubr.bf16.mxu0 %v3677
        %3959 = vmatmul.mubr.bf16.gmra.mxu0 %v3676
        %v3960 = vpop.f32.mrf.mxu0
        %v3961 = vadd.f32 0.0, %v3960
        %v3962 = vpop.f32.mrf.mxu0
        %v3963 = vadd.f32 0.0, %v3962
        %v3964 = vpop.f32.mrf.mxu0
        %v3965 = vadd.f32 0.0, %v3964
        %v3966 = vpop.f32.mrf.mxu0
        %v3967 = vadd.f32 0.0, %v3966
        %3968 = vdwg.mxu0
        %3969 = vmatprep.subr.bf16.mxu0 %v3793
        %3970 = vmatpush1.bf16.xpose.msra.mxu0 %v3792
        %3971 = vmatprep.subr.bf16.mxu0 %v3791
        %3972 = vmatpush1.bf16.xpose.msra.mxu0 %v3790
        %3973 = vmatprep.subr.bf16.mxu0 %v3789
        %3974 = vmatpush1.bf16.xpose.msra.mxu0 %v3788
        %3975 = vmatprep.subr.bf16.mxu0 %v3787
        %3976 = vmatpush1.bf16.xpose.msra.mxu0 %v3786
        %3977 = vmatprep.subr.bf16.mxu0 %v3785
        %3978 = vmatpush1.bf16.xpose.msra.mxu0 %v3784
        %3979 = vmatprep.subr.bf16.mxu0 %v3783
        %3980 = vmatpush1.bf16.xpose.msra.mxu0 %v3782
        %3981 = vmatprep.subr.bf16.mxu0 %v3781
        %3982 = vmatpush1.bf16.xpose.msra.mxu0 %v3780
        %3983 = vmatprep.subr.bf16.mxu0 %v3779
        %3984 = vmatpush1.bf16.xpose.msra.mxu0 %v3778
        %3985 = vmatprep.subr.bf16.mxu0 %v3809
        %3986 = vmatpush2.bf16.xpose.msra.mxu0 %v3808
        %3987 = vmatprep.subr.bf16.mxu0 %v3807
        %3988 = vmatpush2.bf16.xpose.msra.mxu0 %v3806
        %3989 = vmatprep.subr.bf16.mxu0 %v3805
        %3990 = vmatpush2.bf16.xpose.msra.mxu0 %v3804
        %3991 = vmatprep.subr.bf16.mxu0 %v3803
        %3992 = vmatpush2.bf16.xpose.msra.mxu0 %v3802
        %3993 = vmatprep.subr.bf16.mxu0 %v3801
        %3994 = vmatpush2.bf16.xpose.msra.mxu0 %v3800
        %3995 = vmatprep.subr.bf16.mxu0 %v3799
        %3996 = vmatpush2.bf16.xpose.msra.mxu0 %v3798
        %3997 = vmatprep.subr.bf16.mxu0 %v3797
        %3998 = vmatpush2.bf16.xpose.msra.mxu0 %v3796
        %3999 = vmatprep.subr.bf16.mxu0 %v3795
        %4000 = vmatpush2.bf16.xpose.msra.mxu0 %v3794
        %4001 = vmatprep.mubr.bf16.mxu0 %v3679
        %4002 = vmatmul.mubr.bf16.gmra.mxu0 %v3678
        %v4003 = vpop.f32.mrf.mxu0
        %v4004 = vadd.f32 0.0, %v4003
        %v4005 = vpop.f32.mrf.mxu0
        %v4006 = vadd.f32 0.0, %v4005
        %v4007 = vpop.f32.mrf.mxu0
        %v4008 = vadd.f32 0.0, %v4007
        %v4009 = vpop.f32.mrf.mxu0
        %v4010 = vadd.f32 0.0, %v4009
        %4011 = vmatprep.mubr.bf16.mxu0 %v3681
        %4012 = vmatmul.mubr.bf16.gmra.mxu0 %v3680
        %v4013 = vpop.f32.mrf.mxu0
        %v4014 = vadd.f32 0.0, %v4013
        %v4015 = vpop.f32.mrf.mxu0
        %v4016 = vadd.f32 0.0, %v4015
        %v4017 = vpop.f32.mrf.mxu0
        %v4018 = vadd.f32 0.0, %v4017
        %v4019 = vpop.f32.mrf.mxu0
        %v4020 = vadd.f32 0.0, %v4019
        %4021 = vdwg.mxu0
        %v4022 = vld [vmem:[%s2] sm:$0xff]
        %v4023 = vld [vmem:[%s2 + $0x8] sm:$0xff]
        %v4024 = vpack.c.bf16 %v4023, %v4022
        %v4025 = vpack.c.bf16 %v3849, %v3845
        %v4026 = vpack.c.bf16 %v3851, %v3847
        %v4027 = vpack.c.bf16 %v3859, %v3855
        %v4028 = vpack.c.bf16 %v3861, %v3857
        %v4029 = vpack.c.bf16 %v3902, %v3898
        %v4030 = vpack.c.bf16 %v3904, %v3900
        %v4031 = vpack.c.bf16 %v3912, %v3908
        %v4032 = vpack.c.bf16 %v3914, %v3910
        %v4033 = vpack.c.bf16 %v3955, %v3951
        %v4034 = vpack.c.bf16 %v3957, %v3953
        %v4035 = vpack.c.bf16 %v3965, %v3961
        %v4036 = vpack.c.bf16 %v3967, %v3963
        %v4037 = vpack.c.bf16 %v4008, %v4004
        %v4038 = vpack.c.bf16 %v4010, %v4006
        %v4039 = vpack.c.bf16 %v4018, %v4014
        %v4040 = vpack.c.bf16 %v4020, %v4016
        %v4041 = vld [vmem:[%s3] sm:$0xff]
        %v4042 = vld [vmem:[%s3 + $0x8] sm:$0xff]
        %4044 = vset.pattern.permute.xlu0 0
        %4045 = vperm.xlu0 %4044, %v4041
        %v4046 = vpop.permute.xlu0 %4045
        %4049 = vset.pattern.permute.xlu0 0
        %4050 = vperm.xlu0 %4049, %v4042
        %v4051 = vpop.permute.xlu0 %4050
        %4053 = vmatprep.subr.bf16.mxu0 %v4040
        %4054 = vmatpush1.bf16.msra.mxu0 %v4039
        %4055 = vmatprep.subr.bf16.mxu0 %v4038
        %4056 = vmatpush1.bf16.msra.mxu0 %v4037
        %4057 = vmatprep.subr.bf16.mxu0 %v4036
        %4058 = vmatpush1.bf16.msra.mxu0 %v4035
        %4059 = vmatprep.subr.bf16.mxu0 %v4034
        %4060 = vmatpush1.bf16.msra.mxu0 %v4033
        %4061 = vmatprep.subr.bf16.mxu0 %v4032
        %4062 = vmatpush1.bf16.msra.mxu0 %v4031
        %4063 = vmatprep.subr.bf16.mxu0 %v4030
        %4064 = vmatpush1.bf16.msra.mxu0 %v4029
        %4065 = vmatprep.subr.bf16.mxu0 %v4028
        %4066 = vmatpush1.bf16.msra.mxu0 %v4027
        %4067 = vmatprep.subr.bf16.mxu0 %v4026
        %4068 = vmatpush1.bf16.msra.mxu0 %v4025
        %4069 = vmatprep.subr.bf16.mxu0 0
        %4070 = vmatpush2.bf16.msra.mxu0 0
        %4071 = vmatprep.subr.bf16.mxu0 0
        %4072 = vmatpush2.bf16.msra.mxu0 0
        %4073 = vmatprep.subr.bf16.mxu0 0
        %4074 = vmatpush2.bf16.msra.mxu0 0
        %4075 = vmatprep.subr.bf16.mxu0 0
        %4076 = vmatpush2.bf16.msra.mxu0 0
        %4077 = vmatprep.subr.bf16.mxu0 0
        %4078 = vmatpush2.bf16.msra.mxu0 0
        %4079 = vmatprep.subr.bf16.mxu0 0
        %4080 = vmatpush2.bf16.msra.mxu0 0
        %4081 = vmatprep.subr.bf16.mxu0 0
        %4082 = vmatpush2.bf16.msra.mxu0 0
        %4083 = vmatprep.subr.bf16.mxu0 0
        %4084 = vmatpush2.bf16.msra.mxu0 0
        %4085 = vmatprep.mubr.bf16.mxu0 0
        %4086 = vmatmul.mubr.bf16.gmra.mxu0 %v4024
        %v4087 = vpop.f32.mrf.mxu0
        %v4088 = vadd.f32 %v4046, %v4087
        %v4089 = vpop.f32.mrf.mxu0
        %v4090 = vadd.f32 %v4046, %v4089
        %v4091 = vpop.f32.mrf.mxu0
        %v4092 = vadd.f32 %v4051, %v4091
        %v4093 = vpop.f32.mrf.mxu0
        %v4094 = vadd.f32 %v4051, %v4093
        %4095 = vdwg.mxu0
        %4096 = vst [vmem:[%s190] sm:$0xff] %v4088
        %4097 = vst [vmem:[%s190 + $0x8] sm:$0xff] %v4090
        %4098 = vst [vmem:[%s190 + $0x10] sm:$0xff] %v4092
        %4099 = vst [vmem:[%s190 + $0x18] sm:$0xff] %v4094
        %s4100 = sand.u32 %s115, 1
        %s4101 = scalar_lea.sflag [#allocation3], %s4100
        %s4102 = sand.u32 %s115, 1
        %s4103 = smul.addr %s4102, 32
        %s4104 = scalar_lea.vmem [#allocation2], %s4103
        // Predicated region
        $region37: #{tpu_custom_call.1} parent=35 // pred_check
          %p4105 = pneg %p125
        $region38: #{tpu_custom_call.1} parent=35 // pred_check_branch
          %4107 = sbr.rel (%p4105) target = $region40
        $region39: #{tpu_custom_call.1} parent=35 // pred_region
          %s4109 = ssub.s32 512, 512
          %4110 = vsyncadd %s4101, %s4109
          %s4111 = smul.addr %s18, 4
          %s4112 = smul.addr %s4111, 128
          %s4113 = scalar_lea.hbm %s4, %s4112
          %s4114 = sshll.u32 %s4104, 4
          %s4115 = int_to_ptr.vmem [resolvable:$true] %s4114
          %4120 = dma.vmem_to_hbm [thread:$0]  %s4115, 512, %s4113, %s4101, 256, 256, 16
        $region40: #{tpu_custom_call.1} parent=35 // pred_fallthru
          _
      $region36: #{tpu_custom_call.1} parent=5 // pred_fallthru
        _
      %p4121 = scmp.le.s32.totalorder 2, %s13
      // Predicated region
      $region41: #{tpu_custom_call.1} parent=5 // pred_check
        %p4122 = pneg %p4121
      $region42: #{tpu_custom_call.1} parent=5 // pred_check_branch
        %4124 = sbr.rel (%p4122) target = $region44
      $region43: #{tpu_custom_call.1} parent=5 // pred_region
        %s4125 = ssub.s32 %s13, 2
        // Predicated region
        $region45: #{tpu_custom_call.1} parent=43 // pred_check
          %p4126 = pneg %p131
        $region46: #{tpu_custom_call.1} parent=43 // pred_check_branch
          %4128 = sbr.rel (%p4126) target = $region48
        $region47: #{tpu_custom_call.1} parent=43 // pred_region
          %s4129 = sand.u32 %s116, 1
          %s4130 = scalar_lea.sflag [#allocation3], %s4129
          %s4131 = sand.u32 %s116, 1
          %s4132 = smul.addr %s4131, 32
          %s4133 = scalar_lea.vmem [#allocation2], %s4132
          %4134 = dma.done %s4130, 512
        $region48: #{tpu_custom_call.1} parent=43 // pred_fallthru
          _
      $region44: #{tpu_custom_call.1} parent=5 // pred_fallthru
        _
    $region6: #{tpu_custom_call.1} parent=1 // loop_footer
      %s17 = sadd.s32 1, %s13
    $region7: #{tpu_custom_call.1} parent=1 // loop_footer_branch
      %12 = sbr.rel target = $region3
    $region8: #{tpu_custom_call.1} parent=1 // loop_exit
      _
    %4135 = vsyncpa [#allocation3], 1
    %s4136 = scalar_lea.sflag [#allocation3], 1
    %4137 = vsyncpa %s4136, 1

</llo_original>
